<compile_context>
chip_gen: v7x
topology: tpu7x:2x2x1
jax: 0.10.0
libtpu: 0.0.40
codegen_flags: <defaults>
</compile_context>

<pallas_src>
import jax
import jax.numpy as jnp
from jax.experimental import pallas as pl
from jax.experimental.pallas import tpu as pltpu


# ----------------------------- config / params ------------------------------

def make_config():
    cfg = {
        "input_dims": [8, 6, 10],     # d_l, d_a, d_v
        "h_dims": [16, 12, 8],        # dh_l, dh_a, dh_v
        "sentisize": 16,
        "shapes": 32,                 # h_att
        "drop": 0.0,
    }
    nn_cfg = {"l": 24, "a": 20, "v": 28}  # h_nn_l/a/v
    h_out = 32
    return cfg, nn_cfg, h_out


def param_shapes_for(cfg, nn_cfg, h_out):
    d_l, d_a, d_v = cfg["input_dims"]
    dh_l, dh_a, dh_v = cfg["h_dims"]
    s = cfg["sentisize"]
    h_att = cfg["shapes"]
    total_h = dh_l + dh_a + dh_v
    per_mod = {"l": (d_l, dh_l, nn_cfg["l"]),
               "a": (d_a, dh_a, nn_cfg["a"]),
               "v": (d_v, dh_v, nn_cfg["v"])}
    shapes = []
    for m in ("l", "a", "v"):
        dm, dhm, hnn = per_mod[m]
        shapes += [
            (f"W_{m}", (dm, 4 * dhm)),          # LSTHM W (input affine)
            (f"U_{m}", (dhm, 4 * dhm)),         # LSTHM U (hidden affine)
            (f"V_{m}", (s, 4 * dhm)),           # LSTHM V (hybrid/senti affine)
            (f"b_{m}", (1, 4 * dhm)),           # combined bias b_W + b_U + b_V
            (f"nn_{m}_W1", (dhm, hnn)),
            (f"nn_{m}_b1", (1, hnn)),
            (f"nn_{m}_W2", (hnn, s)),
            (f"nn_{m}_b2", (1, s)),
        ]
    shapes += [
        ("att_W1", (total_h, h_att)), ("att_b1", (1, h_att)),
        ("att_W2", (h_att, 3)),       ("att_b2", (1, 3)),
        ("out_W1", (total_h + s, h_out)), ("out_b1", (1, h_out)),
        ("out_W2", (h_out, 1)),           ("out_b2", (1, 1)),
    ]
    return shapes


def init_params(key, shapes):
    params = {}
    for name, shp in shapes:
        key, sub = jax.random.split(key)
        params[name] = (0.1 * jax.random.normal(sub, shp)).astype(jnp.float32)
    return params


def _round_up(x, m=128):
    return ((x + m - 1) // m) * m


# ----------------------------- weight pre-packing ----------------------------
# Lane-aligned fused layouts (all padded weight rows / bias cols exactly zero):
#   gates : [ f(128) | i(128) | o(128) | ch(128) ], each gate block holds the
#           three modality sub-blocks at offsets [0,16,28) (total_dh=36 real).
#   state : c,h padded to 128 lanes; z (senti) padded to 128 lanes;
#           hz = [ h(128) | z(128) ]  (so UV = [U ; V] stacked to 256 rows).
#   mlp1  : cols [0,72)=senti hidden (block-diag), [72,104)=att hidden, pad->128.
#   mlp2  : cols [0..128)=senti_l, [128..256)=senti_a, [256..384)=senti_v,
#           [384,387)=att logits, pad->512.

def pack_params(P, cfg, nn_cfg, h_out):
    d_l, d_a, d_v = cfg["input_dims"]
    dh_l, dh_a, dh_v = cfg["h_dims"]
    s = cfg["sentisize"]
    h_att = cfg["shapes"]
    dhs = [dh_l, dh_a, dh_v]
    ds = [d_l, d_a, d_v]
    hnns = [nn_cfg["l"], nn_cfg["a"], nn_cfg["v"]]
    total_dh = sum(dhs)
    d_tot = sum(ds)
    h_nn_tot = sum(hnns)
    mods = ["l", "a", "v"]
    h_off = [0, dh_l, dh_l + dh_a]
    d_off = [0, d_l, d_l + d_a]
    nn_off = [0, hnns[0], hnns[0] + hnns[1]]

    GP = _round_up(total_dh)          # 128 : lane width per gate block
    HP = GP                           # 128 : lane width of c / h state block
    ZP = _round_up(s)                 # 128 : lane width of z (senti) block
    SP = _round_up(s)                 # 128 : lane width per senti output block
    AP = 128                          # att-logit block (3 real lanes)
    gate_w = 4 * GP                   # 512
    hz_w = HP + ZP                    # 256
    mlp1_w = _round_up(h_nn_tot + h_att)   # 128
    mlp2_w = 3 * SP + AP              # 512

    def scatter_gate_cols(mat_m, mi):
        # (rows, 4*dh_m) torch gate layout [f i o ch] -> (rows, 4*GP) padded.
        dh = dhs[mi]
        out = jnp.zeros((mat_m.shape[0], gate_w), jnp.float32)
        for g in range(4):
            out = out.at[:, g * GP + h_off[mi]:
                            g * GP + h_off[mi] + dh].set(mat_m[:, g * dh:(g + 1) * dh])
        return out

    W_f = jnp.zeros((d_tot, gate_w), jnp.float32)
    UV_f = jnp.zeros((hz_w, gate_w), jnp.float32)       # [U ; V] stacked
    b_f = jnp.zeros((1, gate_w), jnp.float32)
    for mi, m in enumerate(mods):
        W_f = W_f.at[d_off[mi]:d_off[mi] + ds[mi], :].add(
            scatter_gate_cols(P[f"W_{m}"], mi))
        UV_f = UV_f.at[h_off[mi]:h_off[mi] + dhs[mi], :].add(
            scatter_gate_cols(P[f"U_{m}"], mi))
        UV_f = UV_f.at[HP:HP + s, :].add(scatter_gate_cols(P[f"V_{m}"], mi))
        b_f = b_f + scatter_gate_cols(P[f"b_{m}"], mi)

    # fused senti layer-1 (block-diag) || attention layer-1, over padded c rows
    W1_big = jnp.zeros((HP, mlp1_w), jnp.float32)
    b1_big = jnp.zeros((1, mlp1_w), jnp.float32)
    # fused senti layer-2 (block-diag) || attention layer-2, padded output blocks
    W2_big = jnp.zeros((mlp1_w, mlp2_w), jnp.float32)
    b2_big = jnp.zeros((1, mlp2_w), jnp.float32)
    for mi, m in enumerate(mods):
        W1_big = W1_big.at[h_off[mi]:h_off[mi] + dhs[mi],
                           nn_off[mi]:nn_off[mi] + hnns[mi]].set(P[f"nn_{m}_W1"])
        b1_big = b1_big.at[:, nn_off[mi]:nn_off[mi] + hnns[mi]].set(P[f"nn_{m}_b1"])
        W2_big = W2_big.at[nn_off[mi]:nn_off[mi] + hnns[mi],
                           mi * SP:mi * SP + s].set(P[f"nn_{m}_W2"])
        b2_big = b2_big.at[:, mi * SP:mi * SP + s].set(P[f"nn_{m}_b2"])
    W1_big = W1_big.at[:total_dh, h_nn_tot:h_nn_tot + h_att].set(P["att_W1"])
    b1_big = b1_big.at[:, h_nn_tot:h_nn_tot + h_att].set(P["att_b1"])
    W2_big = W2_big.at[h_nn_tot:h_nn_tot + h_att, 3 * SP:3 * SP + 3].set(P["att_W2"])
    b2_big = b2_big.at[:, 3 * SP:3 * SP + 3].set(P["att_b2"])

    # output MLP layer-1 rows follow the padded hz layout [h(HP) | z(ZP)]
    out_W1p = jnp.zeros((hz_w, h_out), jnp.float32)
    out_W1p = out_W1p.at[:total_dh, :].set(P["out_W1"][:total_dh])
    out_W1p = out_W1p.at[HP:HP + s, :].set(P["out_W1"][total_dh:])
    # layer-2 padded to a lane-dense 128-wide output (numerically inert)
    out_W2p = jnp.zeros((h_out, 128), jnp.float32).at[:, :1].set(P["out_W2"])
    out_b2p = jnp.zeros((1, 128), jnp.float32).at[:, :1].set(P["out_b2"])

    return dict(W_f=W_f, b_f=b_f, UV_f=UV_f,
                W1_big=W1_big, b1_big=b1_big, W2_big=W2_big, b2_big=b2_big,
                out_W1p=out_W1p, out_b1=P["out_b1"],
                out_W2p=out_W2p, out_b2p=out_b2p,
                GP=GP, HP=HP, ZP=ZP, SP=SP,
                mlp1_w=mlp1_w, mlp2_w=mlp2_w, total_dh=total_dh)


# --------------------------------- kernel -----------------------------------

def make_tman2_kernel(T, n_pad, GP, HP, ZP, SP, mlp1_w, mlp2_w, unroll):

    def kernel(xw_ref, uv_ref, w1_ref, b1_ref, w2_ref, b2_ref,
               ow1_ref, ob1_ref, ow2_ref, ob2_ref, out_ref):
        # recurrent-loop weights loaded once, before the loop
        UV = uv_ref[...]
        W1 = w1_ref[...]
        W2 = w2_ref[...]
        # bias broadcasts hoisted out of the (unrolled) loop
        b1 = jnp.broadcast_to(b1_ref[...], (n_pad, mlp1_w))
        b2 = jnp.broadcast_to(b2_ref[...], (n_pad, mlp2_w))

        hz0 = jnp.zeros((n_pad, HP + ZP), jnp.float32)     # [h | z]
        c0 = jnp.zeros((n_pad, HP), jnp.float32)

        def step(t, carry):
            hz, c = carry
            # x-projection (with combined gate bias) hoisted to the wrapper;
            # one fused recurrent matmul: h@U + z@V == hz @ [U; V]
            sums = xw_ref[t] + jnp.dot(hz, UV, preferred_element_type=jnp.float32)
            gates = jax.nn.sigmoid(sums[:, :3 * GP])        # f|i|o (128-aligned)
            ch_t = jnp.tanh(sums[:, 3 * GP:])               # ch
            f_t = gates[:, :GP]
            i_t = gates[:, GP:2 * GP]
            o_t = gates[:, 2 * GP:]
            c_new = f_t * c + i_t * ch_t
            h_new = jnp.tanh(c_new) * o_t

            # fused senti layer-1 + att layer-1 (one matmul), then fused
            # block-diag senti layer-2 + att layer-2 (one matmul).
            h1 = jax.nn.relu(
                jnp.dot(c_new, W1, preferred_element_type=jnp.float32) + b1)
            o2 = jnp.dot(h1, W2, preferred_element_type=jnp.float32) + b2

            logits = o2[:, 3 * SP:3 * SP + 3]               # (N, 3)
            mx = jnp.max(logits, axis=1, keepdims=True)
            e = jnp.exp(logits - mx)
            att = e * pl.reciprocal(jnp.sum(e, axis=1, keepdims=True), approx=False)

            z_new = (att[:, 0:1] * o2[:, :SP]
                     + att[:, 1:2] * o2[:, SP:2 * SP]
                     + att[:, 2:3] * o2[:, 2 * SP:3 * SP])
            hz_new = jnp.concatenate([h_new, z_new], axis=1)
            return hz_new, c_new

        hz, _ = jax.lax.fori_loop(0, T, step, (hz0, c0), unroll=unroll)

        # output MLP only after the recurrence; single fused [h|z] matmul.
        hid = jax.nn.relu(
            jnp.dot(hz, ow1_ref[...], preferred_element_type=jnp.float32)
            + ob1_ref[...])
        out_ref[...] = (jnp.dot(hid, ow2_ref[...],
                                preferred_element_type=jnp.float32) + ob2_ref[...])

    return kernel


def tman2_forward(x, params, cfg, nn_cfg, h_out):
    T, N, d_tot = x.shape
    pk = pack_params(params, cfg, nn_cfg, h_out)
    GP, HP, ZP, SP = pk["GP"], pk["HP"], pk["ZP"], pk["SP"]
    mlp1_w, mlp2_w = pk["mlp1_w"], pk["mlp2_w"]
    gate_w = 4 * GP
    hz_w = HP + ZP

    # pad batch up to the f32 sublane count (8); larger batches scale almost
    # free on the 256-wide MXU (v6e/v7x) up to 256 rows.
    n_pad = ((max(N, 8) + 7) // 8) * 8
    x_pad = jnp.zeros((T, n_pad, d_tot), jnp.float32).at[:, :N, :].set(x)

    # hoisted input projection: one big XLA matmul, combined gate bias folded in
    xw = jnp.einsum("tnd,dg->tng", x_pad, pk["W_f"]) + pk["b_f"]  # (T, n_pad, 512)

    unroll = min(T, 8)
    kernel = make_tman2_kernel(T, n_pad, GP, HP, ZP, SP, mlp1_w, mlp2_w,
                               unroll=True if unroll >= T else unroll)

    args = [xw, pk["UV_f"], pk["W1_big"], pk["b1_big"], pk["W2_big"], pk["b2_big"],
            pk["out_W1p"], pk["out_b1"], pk["out_W2p"], pk["out_b2p"]]

    vmem = pl.BlockSpec(memory_space=pltpu.MemorySpace.VMEM)

    per_step_flops = 2 * n_pad * (hz_w * gate_w + HP * mlp1_w + mlp1_w * mlp2_w)
    flops = T * per_step_flops + 2 * n_pad * (hz_w * h_out + h_out * 128)
    transcendentals = T * n_pad * (3 * GP + 2 * GP + 4)
    bytes_accessed = sum(int(a.size) * 4 for a in args) + n_pad * 128 * 4

    out_pad = pl.pallas_call(
        kernel,
        out_shape=jax.ShapeDtypeStruct((n_pad, 128), jnp.float32),
        in_specs=[vmem] * len(args),
        out_specs=vmem,
        compiler_params=pltpu.CompilerParams(vmem_limit_bytes=32 * 1024 * 1024),
        cost_estimate=pl.CostEstimate(flops=flops,
                                      transcendentals=transcendentals,
                                      bytes_accessed=bytes_accessed),
    )(*args)
    return out_pad[:N, :1]


# ----------------------------- pure-JAX reference ----------------------------

def tman2_reference(x, P, cfg):
    d_l, d_a, d_v = cfg["input_dims"]
    dh_l, dh_a, dh_v = cfg["h_dims"]
    s = cfg["sentisize"]
    T, N, _ = x.shape

    def lsthm(xm, c_prev, h_prev, senti, W, U, V, b, dh):
        sums = xm @ W + h_prev @ U + senti @ V + b
        f_t = jax.nn.sigmoid(sums[:, :dh])
        i_t = jax.nn.sigmoid(sums[:, dh:2 * dh])
        o_t = jax.nn.sigmoid(sums[:, 2 * dh:3 * dh])
        ch_t = jnp.tanh(sums[:, 3 * dh:])
        c_t = f_t * c_prev + i_t * ch_t
        return c_t, jnp.tanh(c_t) * o_t

    def mlp(v, W1, b1, W2, b2):
        return jax.nn.relu(v @ W1 + b1) @ W2 + b2

    def step(carry, x_t):
        h_l, h_a, h_v, c_l, c_a, c_v, senti = carry
        x_l, x_a, x_v = x_t[:, :d_l], x_t[:, d_l:d_l + d_a], x_t[:, d_l + d_a:]
        nc_l, nh_l = lsthm(x_l, c_l, h_l, senti, P["W_l"], P["U_l"], P["V_l"], P["b_l"], dh_l)
        nc_a, nh_a = lsthm(x_a, c_a, h_a, senti, P["W_a"], P["U_a"], P["V_a"], P["b_a"], dh_a)
        nc_v, nh_v = lsthm(x_v, c_v, h_v, senti, P["W_v"], P["U_v"], P["V_v"], P["b_v"], dh_v)
        s_l = mlp(nc_l, P["nn_l_W1"], P["nn_l_b1"], P["nn_l_W2"], P["nn_l_b2"])
        s_a = mlp(nc_a, P["nn_a_W1"], P["nn_a_b1"], P["nn_a_W2"], P["nn_a_b2"])
        s_v = mlp(nc_v, P["nn_v_W1"], P["nn_v_b1"], P["nn_v_W2"], P["nn_v_b2"])
        cs = jnp.concatenate([nc_l, nc_a, nc_v], axis=1)
        att = jax.nn.softmax(mlp(cs, P["att_W1"], P["att_b1"], P["att_W2"], P["att_b2"]), axis=1)
        attended = att[:, 0:1] * s_l + att[:, 1:2] * s_a + att[:, 2:3] * s_v
        return (nh_l, nh_a, nh_v, nc_l, nc_a, nc_v, attended), None

    carry0 = (jnp.zeros((N, dh_l)), jnp.zeros((N, dh_a)), jnp.zeros((N, dh_v)),
              jnp.zeros((N, dh_l)), jnp.zeros((N, dh_a)), jnp.zeros((N, dh_v)),
              jnp.zeros((N, s)))
    (h_l, h_a, h_v, _, _, _, senti), _ = jax.lax.scan(step, carry0, x)
    last_hs = jnp.concatenate([h_l, h_a, h_v, senti], axis=1)
    return mlp(last_hs, P["out_W1"], P["out_b1"], P["out_W2"], P["out_b2"])


# ----------------------------------- main ------------------------------------

if __name__ == "__main__":
    cfg, nn_cfg, h_out = make_config()
    shapes = param_shapes_for(cfg, nn_cfg, h_out)

    key = jax.random.PRNGKey(0)
    key, pkey, xkey = jax.random.split(key, 3)
    params = init_params(pkey, shapes)

    T, N = 8, 4
    d_tot = sum(cfg["input_dims"])           # 24
    x = jax.random.normal(xkey, (T, N, d_tot), dtype=jnp.float32)

    out = tman2_forward(x, params, cfg, nn_cfg, h_out)
    out = jax.block_until_ready(out)

    ref = tman2_reference(x, params, cfg)
    assert out.shape == (N, 1), out.shape
    assert jnp.allclose(out, ref, atol=1e-4, rtol=1e-4), (out, ref)

    print("KERNEL_OK")
</pallas_src>

<mosaic_0001>
module attributes {stable_mosaic.version = 11 : i64} {
  func.func @kernel(%arg0: memref<8x8x512xf32, #tpu.memory_space<vmem>>, %arg1: memref<256x512xf32, #tpu.memory_space<vmem>>, %arg2: memref<128x128xf32, #tpu.memory_space<vmem>>, %arg3: memref<1x128xf32, #tpu.memory_space<vmem>>, %arg4: memref<128x512xf32, #tpu.memory_space<vmem>>, %arg5: memref<1x512xf32, #tpu.memory_space<vmem>>, %arg6: memref<256x32xf32, #tpu.memory_space<vmem>>, %arg7: memref<1x32xf32, #tpu.memory_space<vmem>>, %arg8: memref<32x128xf32, #tpu.memory_space<vmem>>, %arg9: memref<1x128xf32, #tpu.memory_space<vmem>>, %arg10: memref<8x128xf32, #tpu.memory_space<vmem>>) attributes {dimension_semantics = [], scalar_prefetch = 0 : i64, scratch_operands = 0 : i64, tpu.core_type = #tpu.core_type<tc>} {
    %c0 = arith.constant 0 : index
    %c0_0 = arith.constant 0 : index
    %0 = vector.load %arg1[%c0, %c0_0] : memref<256x512xf32, #tpu.memory_space<vmem>>, vector<256x512xf32>
    %c0_1 = arith.constant 0 : index
    %c0_2 = arith.constant 0 : index
    %1 = vector.load %arg2[%c0_1, %c0_2] : memref<128x128xf32, #tpu.memory_space<vmem>>, vector<128x128xf32>
    %c0_3 = arith.constant 0 : index
    %c0_4 = arith.constant 0 : index
    %2 = vector.load %arg4[%c0_3, %c0_4] : memref<128x512xf32, #tpu.memory_space<vmem>>, vector<128x512xf32>
    %c0_5 = arith.constant 0 : index
    %c0_6 = arith.constant 0 : index
    %3 = vector.load %arg3[%c0_5, %c0_6] : memref<1x128xf32, #tpu.memory_space<vmem>>, vector<1x128xf32>
    %4 = vector.shape_cast %3 : vector<1x128xf32> to vector<1x128xf32>
    %5 = vector.broadcast %4 : vector<1x128xf32> to vector<8x128xf32>
    %c0_7 = arith.constant 0 : index
    %c0_8 = arith.constant 0 : index
    %6 = vector.load %arg5[%c0_7, %c0_8] : memref<1x512xf32, #tpu.memory_space<vmem>>, vector<1x512xf32>
    %7 = vector.shape_cast %6 : vector<1x512xf32> to vector<1x512xf32>
    %8 = vector.broadcast %7 : vector<1x512xf32> to vector<8x512xf32>
    %cst = arith.constant 0.000000e+00 : f32
    %9 = vector.broadcast %cst : f32 to vector<8x256xf32>
    %cst_9 = arith.constant 0.000000e+00 : f32
    %10 = vector.broadcast %cst_9 : f32 to vector<8x128xf32>
    %c0_i32 = arith.constant 0 : i32
    %11 = arith.index_cast %c0_i32 : i32 to index
    %c0_10 = arith.constant 0 : index
    %c0_11 = arith.constant 0 : index
    %12 = vector.load %arg0[%11, %c0_10, %c0_11] : memref<8x8x512xf32, #tpu.memory_space<vmem>>, vector<1x8x512xf32>
    %13 = vector.shape_cast %12 : vector<1x8x512xf32> to vector<8x512xf32>
    %cst_12 = arith.constant dense<0.000000e+00> : vector<8x512xf32>
    %14 = tpu.matmul %9, %0, %cst_12 {dimension_numbers = #tpu.dot_dimension_numbers<[1], [0], [0], [1], [0, 0, 1, 1], [], []>} : vector<8x256xf32>, vector<256x512xf32>, vector<8x512xf32> -> vector<8x512xf32>
    %15 = arith.addf %13, %14 : vector<8x512xf32>
    %16 = vector.extract_strided_slice %15 {offsets = [0, 0], sizes = [8, 384], strides = [1, 1]} : vector<8x512xf32> to vector<8x384xf32>
    %17 = arith.negf %16 : vector<8x384xf32>
    %18 = math.exp %17 : vector<8x384xf32>
    %cst_13 = arith.constant 1.000000e+00 : f32
    %19 = vector.broadcast %cst_13 : f32 to vector<8x384xf32>
    %20 = arith.addf %19, %18 : vector<8x384xf32>
    %21 = arith.divf %19, %20 : vector<8x384xf32>
    %22 = vector.extract_strided_slice %15 {offsets = [0, 384], sizes = [8, 128], strides = [1, 1]} : vector<8x512xf32> to vector<8x128xf32>
    %23 = math.tanh %22 : vector<8x128xf32>
    %24 = vector.extract_strided_slice %21 {offsets = [0, 0], sizes = [8, 128], strides = [1, 1]} : vector<8x384xf32> to vector<8x128xf32>
    %25 = vector.extract_strided_slice %21 {offsets = [0, 128], sizes = [8, 128], strides = [1, 1]} : vector<8x384xf32> to vector<8x128xf32>
    %26 = vector.extract_strided_slice %21 {offsets = [0, 256], sizes = [8, 128], strides = [1, 1]} : vector<8x384xf32> to vector<8x128xf32>
    %27 = arith.mulf %24, %10 : vector<8x128xf32>
    %28 = arith.mulf %25, %23 : vector<8x128xf32>
    %29 = arith.addf %27, %28 : vector<8x128xf32>
    %30 = math.tanh %29 : vector<8x128xf32>
    %31 = arith.mulf %30, %26 : vector<8x128xf32>
    %cst_14 = arith.constant dense<0.000000e+00> : vector<8x128xf32>
    %32 = tpu.matmul %29, %1, %cst_14 {dimension_numbers = #tpu.dot_dimension_numbers<[1], [0], [0], [1], [0, 0, 1, 1], [], []>} : vector<8x128xf32>, vector<128x128xf32>, vector<8x128xf32> -> vector<8x128xf32>
    %33 = arith.addf %32, %5 : vector<8x128xf32>
    %cst_15 = arith.constant 0.000000e+00 : f32
    %34 = vector.broadcast %cst_15 : f32 to vector<8x128xf32>
    %35 = arith.maximumf %33, %34 : vector<8x128xf32>
    %cst_16 = arith.constant dense<0.000000e+00> : vector<8x512xf32>
    %36 = tpu.matmul %35, %2, %cst_16 {dimension_numbers = #tpu.dot_dimension_numbers<[1], [0], [0], [1], [0, 0, 1, 1], [], []>} : vector<8x128xf32>, vector<128x512xf32>, vector<8x512xf32> -> vector<8x512xf32>
    %37 = arith.addf %36, %8 : vector<8x512xf32>
    %38 = vector.extract_strided_slice %37 {offsets = [0, 384], sizes = [8, 3], strides = [1, 1]} : vector<8x512xf32> to vector<8x3xf32>
    %cst_17 = arith.constant dense<0xFF800000> : vector<8xf32>
    %39 = vector.multi_reduction <maximumf>, %38, %cst_17 [1] : vector<8x3xf32> to vector<8xf32>
    %40 = vector.shape_cast %39 : vector<8xf32> to vector<8x1xf32>
    %41 = vector.broadcast %40 : vector<8x1xf32> to vector<8x3xf32>
    %42 = arith.subf %38, %41 : vector<8x3xf32>
    %43 = math.exp %42 : vector<8x3xf32>
    %cst_18 = arith.constant dense<0.000000e+00> : vector<8xf32>
    %44 = vector.multi_reduction <add>, %43, %cst_18 [1] : vector<8x3xf32> to vector<8xf32>
    %45 = vector.shape_cast %44 : vector<8xf32> to vector<8x1xf32>
    %46 = tpu.reciprocal %45 : vector<8x1xf32> -> vector<8x1xf32>
    %47 = vector.broadcast %46 : vector<8x1xf32> to vector<8x3xf32>
    %48 = arith.mulf %43, %47 : vector<8x3xf32>
    %49 = vector.extract_strided_slice %48 {offsets = [0, 0], sizes = [8, 1], strides = [1, 1]} : vector<8x3xf32> to vector<8x1xf32>
    %50 = vector.extract_strided_slice %37 {offsets = [0, 0], sizes = [8, 128], strides = [1, 1]} : vector<8x512xf32> to vector<8x128xf32>
    %51 = vector.broadcast %49 : vector<8x1xf32> to vector<8x128xf32>
    %52 = arith.mulf %51, %50 : vector<8x128xf32>
    %53 = vector.extract_strided_slice %48 {offsets = [0, 1], sizes = [8, 1], strides = [1, 1]} : vector<8x3xf32> to vector<8x1xf32>
    %54 = vector.extract_strided_slice %37 {offsets = [0, 128], sizes = [8, 128], strides = [1, 1]} : vector<8x512xf32> to vector<8x128xf32>
    %55 = vector.broadcast %53 : vector<8x1xf32> to vector<8x128xf32>
    %56 = arith.mulf %55, %54 : vector<8x128xf32>
    %57 = arith.addf %52, %56 : vector<8x128xf32>
    %58 = vector.extract_strided_slice %48 {offsets = [0, 2], sizes = [8, 1], strides = [1, 1]} : vector<8x3xf32> to vector<8x1xf32>
    %59 = vector.extract_strided_slice %37 {offsets = [0, 256], sizes = [8, 128], strides = [1, 1]} : vector<8x512xf32> to vector<8x128xf32>
    %60 = vector.broadcast %58 : vector<8x1xf32> to vector<8x128xf32>
    %61 = arith.mulf %60, %59 : vector<8x128xf32>
    %62 = arith.addf %57, %61 : vector<8x128xf32>
    %63 = tpu.concatenate %31, %62 in 1 : vector<8x128xf32>, vector<8x128xf32> -> vector<8x256xf32>
    %c1_i32 = arith.constant 1 : i32
    %64 = arith.index_cast %c1_i32 : i32 to index
    %c0_19 = arith.constant 0 : index
    %c0_20 = arith.constant 0 : index
    %65 = vector.load %arg0[%64, %c0_19, %c0_20] : memref<8x8x512xf32, #tpu.memory_space<vmem>>, vector<1x8x512xf32>
    %66 = vector.shape_cast %65 : vector<1x8x512xf32> to vector<8x512xf32>
    %cst_21 = arith.constant dense<0.000000e+00> : vector<8x512xf32>
    %67 = tpu.matmul %63, %0, %cst_21 {dimension_numbers = #tpu.dot_dimension_numbers<[1], [0], [0], [1], [0, 0, 1, 1], [], []>} : vector<8x256xf32>, vector<256x512xf32>, vector<8x512xf32> -> vector<8x512xf32>
    %68 = arith.addf %66, %67 : vector<8x512xf32>
    %69 = vector.extract_strided_slice %68 {offsets = [0, 0], sizes = [8, 384], strides = [1, 1]} : vector<8x512xf32> to vector<8x384xf32>
    %70 = arith.negf %69 : vector<8x384xf32>
    %71 = math.exp %70 : vector<8x384xf32>
    %cst_22 = arith.constant 1.000000e+00 : f32
    %72 = vector.broadcast %cst_22 : f32 to vector<8x384xf32>
    %73 = arith.addf %72, %71 : vector<8x384xf32>
    %74 = arith.divf %72, %73 : vector<8x384xf32>
    %75 = vector.extract_strided_slice %68 {offsets = [0, 384], sizes = [8, 128], strides = [1, 1]} : vector<8x512xf32> to vector<8x128xf32>
    %76 = math.tanh %75 : vector<8x128xf32>
    %77 = vector.extract_strided_slice %74 {offsets = [0, 0], sizes = [8, 128], strides = [1, 1]} : vector<8x384xf32> to vector<8x128xf32>
    %78 = vector.extract_strided_slice %74 {offsets = [0, 128], sizes = [8, 128], strides = [1, 1]} : vector<8x384xf32> to vector<8x128xf32>
    %79 = vector.extract_strided_slice %74 {offsets = [0, 256], sizes = [8, 128], strides = [1, 1]} : vector<8x384xf32> to vector<8x128xf32>
    %80 = arith.mulf %77, %29 : vector<8x128xf32>
    %81 = arith.mulf %78, %76 : vector<8x128xf32>
    %82 = arith.addf %80, %81 : vector<8x128xf32>
    %83 = math.tanh %82 : vector<8x128xf32>
    %84 = arith.mulf %83, %79 : vector<8x128xf32>
    %cst_23 = arith.constant dense<0.000000e+00> : vector<8x128xf32>
    %85 = tpu.matmul %82, %1, %cst_23 {dimension_numbers = #tpu.dot_dimension_numbers<[1], [0], [0], [1], [0, 0, 1, 1], [], []>} : vector<8x128xf32>, vector<128x128xf32>, vector<8x128xf32> -> vector<8x128xf32>
    %86 = arith.addf %85, %5 : vector<8x128xf32>
    %cst_24 = arith.constant 0.000000e+00 : f32
    %87 = vector.broadcast %cst_24 : f32 to vector<8x128xf32>
    %88 = arith.maximumf %86, %87 : vector<8x128xf32>
    %cst_25 = arith.constant dense<0.000000e+00> : vector<8x512xf32>
    %89 = tpu.matmul %88, %2, %cst_25 {dimension_numbers = #tpu.dot_dimension_numbers<[1], [0], [0], [1], [0, 0, 1, 1], [], []>} : vector<8x128xf32>, vector<128x512xf32>, vector<8x512xf32> -> vector<8x512xf32>
    %90 = arith.addf %89, %8 : vector<8x512xf32>
    %91 = vector.extract_strided_slice %90 {offsets = [0, 384], sizes = [8, 3], strides = [1, 1]} : vector<8x512xf32> to vector<8x3xf32>
    %cst_26 = arith.constant dense<0xFF800000> : vector<8xf32>
    %92 = vector.multi_reduction <maximumf>, %91, %cst_26 [1] : vector<8x3xf32> to vector<8xf32>
    %93 = vector.shape_cast %92 : vector<8xf32> to vector<8x1xf32>
    %94 = vector.broadcast %93 : vector<8x1xf32> to vector<8x3xf32>
    %95 = arith.subf %91, %94 : vector<8x3xf32>
    %96 = math.exp %95 : vector<8x3xf32>
    %cst_27 = arith.constant dense<0.000000e+00> : vector<8xf32>
    %97 = vector.multi_reduction <add>, %96, %cst_27 [1] : vector<8x3xf32> to vector<8xf32>
    %98 = vector.shape_cast %97 : vector<8xf32> to vector<8x1xf32>
    %99 = tpu.reciprocal %98 : vector<8x1xf32> -> vector<8x1xf32>
    %100 = vector.broadcast %99 : vector<8x1xf32> to vector<8x3xf32>
    %101 = arith.mulf %96, %100 : vector<8x3xf32>
    %102 = vector.extract_strided_slice %101 {offsets = [0, 0], sizes = [8, 1], strides = [1, 1]} : vector<8x3xf32> to vector<8x1xf32>
    %103 = vector.extract_strided_slice %90 {offsets = [0, 0], sizes = [8, 128], strides = [1, 1]} : vector<8x512xf32> to vector<8x128xf32>
    %104 = vector.broadcast %102 : vector<8x1xf32> to vector<8x128xf32>
    %105 = arith.mulf %104, %103 : vector<8x128xf32>
    %106 = vector.extract_strided_slice %101 {offsets = [0, 1], sizes = [8, 1], strides = [1, 1]} : vector<8x3xf32> to vector<8x1xf32>
    %107 = vector.extract_strided_slice %90 {offsets = [0, 128], sizes = [8, 128], strides = [1, 1]} : vector<8x512xf32> to vector<8x128xf32>
    %108 = vector.broadcast %106 : vector<8x1xf32> to vector<8x128xf32>
    %109 = arith.mulf %108, %107 : vector<8x128xf32>
    %110 = arith.addf %105, %109 : vector<8x128xf32>
    %111 = vector.extract_strided_slice %101 {offsets = [0, 2], sizes = [8, 1], strides = [1, 1]} : vector<8x3xf32> to vector<8x1xf32>
    %112 = vector.extract_strided_slice %90 {offsets = [0, 256], sizes = [8, 128], strides = [1, 1]} : vector<8x512xf32> to vector<8x128xf32>
    %113 = vector.broadcast %111 : vector<8x1xf32> to vector<8x128xf32>
    %114 = arith.mulf %113, %112 : vector<8x128xf32>
    %115 = arith.addf %110, %114 : vector<8x128xf32>
    %116 = tpu.concatenate %84, %115 in 1 : vector<8x128xf32>, vector<8x128xf32> -> vector<8x256xf32>
    %c2_i32 = arith.constant 2 : i32
    %117 = arith.index_cast %c2_i32 : i32 to index
    %c0_28 = arith.constant 0 : index
    %c0_29 = arith.constant 0 : index
    %118 = vector.load %arg0[%117, %c0_28, %c0_29] : memref<8x8x512xf32, #tpu.memory_space<vmem>>, vector<1x8x512xf32>
    %119 = vector.shape_cast %118 : vector<1x8x512xf32> to vector<8x512xf32>
    %cst_30 = arith.constant dense<0.000000e+00> : vector<8x512xf32>
    %120 = tpu.matmul %116, %0, %cst_30 {dimension_numbers = #tpu.dot_dimension_numbers<[1], [0], [0], [1], [0, 0, 1, 1], [], []>} : vector<8x256xf32>, vector<256x512xf32>, vector<8x512xf32> -> vector<8x512xf32>
    %121 = arith.addf %119, %120 : vector<8x512xf32>
    %122 = vector.extract_strided_slice %121 {offsets = [0, 0], sizes = [8, 384], strides = [1, 1]} : vector<8x512xf32> to vector<8x384xf32>
    %123 = arith.negf %122 : vector<8x384xf32>
    %124 = math.exp %123 : vector<8x384xf32>
    %cst_31 = arith.constant 1.000000e+00 : f32
    %125 = vector.broadcast %cst_31 : f32 to vector<8x384xf32>
    %126 = arith.addf %125, %124 : vector<8x384xf32>
    %127 = arith.divf %125, %126 : vector<8x384xf32>
    %128 = vector.extract_strided_slice %121 {offsets = [0, 384], sizes = [8, 128], strides = [1, 1]} : vector<8x512xf32> to vector<8x128xf32>
    %129 = math.tanh %128 : vector<8x128xf32>
    %130 = vector.extract_strided_slice %127 {offsets = [0, 0], sizes = [8, 128], strides = [1, 1]} : vector<8x384xf32> to vector<8x128xf32>
    %131 = vector.extract_strided_slice %127 {offsets = [0, 128], sizes = [8, 128], strides = [1, 1]} : vector<8x384xf32> to vector<8x128xf32>
    %132 = vector.extract_strided_slice %127 {offsets = [0, 256], sizes = [8, 128], strides = [1, 1]} : vector<8x384xf32> to vector<8x128xf32>
    %133 = arith.mulf %130, %82 : vector<8x128xf32>
    %134 = arith.mulf %131, %129 : vector<8x128xf32>
    %135 = arith.addf %133, %134 : vector<8x128xf32>
    %136 = math.tanh %135 : vector<8x128xf32>
    %137 = arith.mulf %136, %132 : vector<8x128xf32>
    %cst_32 = arith.constant dense<0.000000e+00> : vector<8x128xf32>
    %138 = tpu.matmul %135, %1, %cst_32 {dimension_numbers = #tpu.dot_dimension_numbers<[1], [0], [0], [1], [0, 0, 1, 1], [], []>} : vector<8x128xf32>, vector<128x128xf32>, vector<8x128xf32> -> vector<8x128xf32>
    %139 = arith.addf %138, %5 : vector<8x128xf32>
    %cst_33 = arith.constant 0.000000e+00 : f32
    %140 = vector.broadcast %cst_33 : f32 to vector<8x128xf32>
    %141 = arith.maximumf %139, %140 : vector<8x128xf32>
    %cst_34 = arith.constant dense<0.000000e+00> : vector<8x512xf32>
    %142 = tpu.matmul %141, %2, %cst_34 {dimension_numbers = #tpu.dot_dimension_numbers<[1], [0], [0], [1], [0, 0, 1, 1], [], []>} : vector<8x128xf32>, vector<128x512xf32>, vector<8x512xf32> -> vector<8x512xf32>
    %143 = arith.addf %142, %8 : vector<8x512xf32>
    %144 = vector.extract_strided_slice %143 {offsets = [0, 384], sizes = [8, 3], strides = [1, 1]} : vector<8x512xf32> to vector<8x3xf32>
    %cst_35 = arith.constant dense<0xFF800000> : vector<8xf32>
    %145 = vector.multi_reduction <maximumf>, %144, %cst_35 [1] : vector<8x3xf32> to vector<8xf32>
    %146 = vector.shape_cast %145 : vector<8xf32> to vector<8x1xf32>
    %147 = vector.broadcast %146 : vector<8x1xf32> to vector<8x3xf32>
    %148 = arith.subf %144, %147 : vector<8x3xf32>
    %149 = math.exp %148 : vector<8x3xf32>
    %cst_36 = arith.constant dense<0.000000e+00> : vector<8xf32>
    %150 = vector.multi_reduction <add>, %149, %cst_36 [1] : vector<8x3xf32> to vector<8xf32>
    %151 = vector.shape_cast %150 : vector<8xf32> to vector<8x1xf32>
    %152 = tpu.reciprocal %151 : vector<8x1xf32> -> vector<8x1xf32>
    %153 = vector.broadcast %152 : vector<8x1xf32> to vector<8x3xf32>
    %154 = arith.mulf %149, %153 : vector<8x3xf32>
    %155 = vector.extract_strided_slice %154 {offsets = [0, 0], sizes = [8, 1], strides = [1, 1]} : vector<8x3xf32> to vector<8x1xf32>
    %156 = vector.extract_strided_slice %143 {offsets = [0, 0], sizes = [8, 128], strides = [1, 1]} : vector<8x512xf32> to vector<8x128xf32>
    %157 = vector.broadcast %155 : vector<8x1xf32> to vector<8x128xf32>
    %158 = arith.mulf %157, %156 : vector<8x128xf32>
    %159 = vector.extract_strided_slice %154 {offsets = [0, 1], sizes = [8, 1], strides = [1, 1]} : vector<8x3xf32> to vector<8x1xf32>
    %160 = vector.extract_strided_slice %143 {offsets = [0, 128], sizes = [8, 128], strides = [1, 1]} : vector<8x512xf32> to vector<8x128xf32>
    %161 = vector.broadcast %159 : vector<8x1xf32> to vector<8x128xf32>
    %162 = arith.mulf %161, %160 : vector<8x128xf32>
    %163 = arith.addf %158, %162 : vector<8x128xf32>
    %164 = vector.extract_strided_slice %154 {offsets = [0, 2], sizes = [8, 1], strides = [1, 1]} : vector<8x3xf32> to vector<8x1xf32>
    %165 = vector.extract_strided_slice %143 {offsets = [0, 256], sizes = [8, 128], strides = [1, 1]} : vector<8x512xf32> to vector<8x128xf32>
    %166 = vector.broadcast %164 : vector<8x1xf32> to vector<8x128xf32>
    %167 = arith.mulf %166, %165 : vector<8x128xf32>
    %168 = arith.addf %163, %167 : vector<8x128xf32>
    %169 = tpu.concatenate %137, %168 in 1 : vector<8x128xf32>, vector<8x128xf32> -> vector<8x256xf32>
    %c3_i32 = arith.constant 3 : i32
    %170 = arith.index_cast %c3_i32 : i32 to index
    %c0_37 = arith.constant 0 : index
    %c0_38 = arith.constant 0 : index
    %171 = vector.load %arg0[%170, %c0_37, %c0_38] : memref<8x8x512xf32, #tpu.memory_space<vmem>>, vector<1x8x512xf32>
    %172 = vector.shape_cast %171 : vector<1x8x512xf32> to vector<8x512xf32>
    %cst_39 = arith.constant dense<0.000000e+00> : vector<8x512xf32>
    %173 = tpu.matmul %169, %0, %cst_39 {dimension_numbers = #tpu.dot_dimension_numbers<[1], [0], [0], [1], [0, 0, 1, 1], [], []>} : vector<8x256xf32>, vector<256x512xf32>, vector<8x512xf32> -> vector<8x512xf32>
    %174 = arith.addf %172, %173 : vector<8x512xf32>
    %175 = vector.extract_strided_slice %174 {offsets = [0, 0], sizes = [8, 384], strides = [1, 1]} : vector<8x512xf32> to vector<8x384xf32>
    %176 = arith.negf %175 : vector<8x384xf32>
    %177 = math.exp %176 : vector<8x384xf32>
    %cst_40 = arith.constant 1.000000e+00 : f32
    %178 = vector.broadcast %cst_40 : f32 to vector<8x384xf32>
    %179 = arith.addf %178, %177 : vector<8x384xf32>
    %180 = arith.divf %178, %179 : vector<8x384xf32>
    %181 = vector.extract_strided_slice %174 {offsets = [0, 384], sizes = [8, 128], strides = [1, 1]} : vector<8x512xf32> to vector<8x128xf32>
    %182 = math.tanh %181 : vector<8x128xf32>
    %183 = vector.extract_strided_slice %180 {offsets = [0, 0], sizes = [8, 128], strides = [1, 1]} : vector<8x384xf32> to vector<8x128xf32>
    %184 = vector.extract_strided_slice %180 {offsets = [0, 128], sizes = [8, 128], strides = [1, 1]} : vector<8x384xf32> to vector<8x128xf32>
    %185 = vector.extract_strided_slice %180 {offsets = [0, 256], sizes = [8, 128], strides = [1, 1]} : vector<8x384xf32> to vector<8x128xf32>
    %186 = arith.mulf %183, %135 : vector<8x128xf32>
    %187 = arith.mulf %184, %182 : vector<8x128xf32>
    %188 = arith.addf %186, %187 : vector<8x128xf32>
    %189 = math.tanh %188 : vector<8x128xf32>
    %190 = arith.mulf %189, %185 : vector<8x128xf32>
    %cst_41 = arith.constant dense<0.000000e+00> : vector<8x128xf32>
    %191 = tpu.matmul %188, %1, %cst_41 {dimension_numbers = #tpu.dot_dimension_numbers<[1], [0], [0], [1], [0, 0, 1, 1], [], []>} : vector<8x128xf32>, vector<128x128xf32>, vector<8x128xf32> -> vector<8x128xf32>
    %192 = arith.addf %191, %5 : vector<8x128xf32>
    %cst_42 = arith.constant 0.000000e+00 : f32
    %193 = vector.broadcast %cst_42 : f32 to vector<8x128xf32>
    %194 = arith.maximumf %192, %193 : vector<8x128xf32>
    %cst_43 = arith.constant dense<0.000000e+00> : vector<8x512xf32>
    %195 = tpu.matmul %194, %2, %cst_43 {dimension_numbers = #tpu.dot_dimension_numbers<[1], [0], [0], [1], [0, 0, 1, 1], [], []>} : vector<8x128xf32>, vector<128x512xf32>, vector<8x512xf32> -> vector<8x512xf32>
    %196 = arith.addf %195, %8 : vector<8x512xf32>
    %197 = vector.extract_strided_slice %196 {offsets = [0, 384], sizes = [8, 3], strides = [1, 1]} : vector<8x512xf32> to vector<8x3xf32>
    %cst_44 = arith.constant dense<0xFF800000> : vector<8xf32>
    %198 = vector.multi_reduction <maximumf>, %197, %cst_44 [1] : vector<8x3xf32> to vector<8xf32>
    %199 = vector.shape_cast %198 : vector<8xf32> to vector<8x1xf32>
    %200 = vector.broadcast %199 : vector<8x1xf32> to vector<8x3xf32>
    %201 = arith.subf %197, %200 : vector<8x3xf32>
    %202 = math.exp %201 : vector<8x3xf32>
    %cst_45 = arith.constant dense<0.000000e+00> : vector<8xf32>
    %203 = vector.multi_reduction <add>, %202, %cst_45 [1] : vector<8x3xf32> to vector<8xf32>
    %204 = vector.shape_cast %203 : vector<8xf32> to vector<8x1xf32>
    %205 = tpu.reciprocal %204 : vector<8x1xf32> -> vector<8x1xf32>
    %206 = vector.broadcast %205 : vector<8x1xf32> to vector<8x3xf32>
    %207 = arith.mulf %202, %206 : vector<8x3xf32>
    %208 = vector.extract_strided_slice %207 {offsets = [0, 0], sizes = [8, 1], strides = [1, 1]} : vector<8x3xf32> to vector<8x1xf32>
    %209 = vector.extract_strided_slice %196 {offsets = [0, 0], sizes = [8, 128], strides = [1, 1]} : vector<8x512xf32> to vector<8x128xf32>
    %210 = vector.broadcast %208 : vector<8x1xf32> to vector<8x128xf32>
    %211 = arith.mulf %210, %209 : vector<8x128xf32>
    %212 = vector.extract_strided_slice %207 {offsets = [0, 1], sizes = [8, 1], strides = [1, 1]} : vector<8x3xf32> to vector<8x1xf32>
    %213 = vector.extract_strided_slice %196 {offsets = [0, 128], sizes = [8, 128], strides = [1, 1]} : vector<8x512xf32> to vector<8x128xf32>
    %214 = vector.broadcast %212 : vector<8x1xf32> to vector<8x128xf32>
    %215 = arith.mulf %214, %213 : vector<8x128xf32>
    %216 = arith.addf %211, %215 : vector<8x128xf32>
    %217 = vector.extract_strided_slice %207 {offsets = [0, 2], sizes = [8, 1], strides = [1, 1]} : vector<8x3xf32> to vector<8x1xf32>
    %218 = vector.extract_strided_slice %196 {offsets = [0, 256], sizes = [8, 128], strides = [1, 1]} : vector<8x512xf32> to vector<8x128xf32>
    %219 = vector.broadcast %217 : vector<8x1xf32> to vector<8x128xf32>
    %220 = arith.mulf %219, %218 : vector<8x128xf32>
    %221 = arith.addf %216, %220 : vector<8x128xf32>
    %222 = tpu.concatenate %190, %221 in 1 : vector<8x128xf32>, vector<8x128xf32> -> vector<8x256xf32>
    %c4_i32 = arith.constant 4 : i32
    %223 = arith.index_cast %c4_i32 : i32 to index
    %c0_46 = arith.constant 0 : index
    %c0_47 = arith.constant 0 : index
    %224 = vector.load %arg0[%223, %c0_46, %c0_47] : memref<8x8x512xf32, #tpu.memory_space<vmem>>, vector<1x8x512xf32>
    %225 = vector.shape_cast %224 : vector<1x8x512xf32> to vector<8x512xf32>
    %cst_48 = arith.constant dense<0.000000e+00> : vector<8x512xf32>
    %226 = tpu.matmul %222, %0, %cst_48 {dimension_numbers = #tpu.dot_dimension_numbers<[1], [0], [0], [1], [0, 0, 1, 1], [], []>} : vector<8x256xf32>, vector<256x512xf32>, vector<8x512xf32> -> vector<8x512xf32>
    %227 = arith.addf %225, %226 : vector<8x512xf32>
    %228 = vector.extract_strided_slice %227 {offsets = [0, 0], sizes = [8, 384], strides = [1, 1]} : vector<8x512xf32> to vector<8x384xf32>
    %229 = arith.negf %228 : vector<8x384xf32>
    %230 = math.exp %229 : vector<8x384xf32>
    %cst_49 = arith.constant 1.000000e+00 : f32
    %231 = vector.broadcast %cst_49 : f32 to vector<8x384xf32>
    %232 = arith.addf %231, %230 : vector<8x384xf32>
    %233 = arith.divf %231, %232 : vector<8x384xf32>
    %234 = vector.extract_strided_slice %227 {offsets = [0, 384], sizes = [8, 128], strides = [1, 1]} : vector<8x512xf32> to vector<8x128xf32>
    %235 = math.tanh %234 : vector<8x128xf32>
    %236 = vector.extract_strided_slice %233 {offsets = [0, 0], sizes = [8, 128], strides = [1, 1]} : vector<8x384xf32> to vector<8x128xf32>
    %237 = vector.extract_strided_slice %233 {offsets = [0, 128], sizes = [8, 128], strides = [1, 1]} : vector<8x384xf32> to vector<8x128xf32>
    %238 = vector.extract_strided_slice %233 {offsets = [0, 256], sizes = [8, 128], strides = [1, 1]} : vector<8x384xf32> to vector<8x128xf32>
    %239 = arith.mulf %236, %188 : vector<8x128xf32>
    %240 = arith.mulf %237, %235 : vector<8x128xf32>
    %241 = arith.addf %239, %240 : vector<8x128xf32>
    %242 = math.tanh %241 : vector<8x128xf32>
    %243 = arith.mulf %242, %238 : vector<8x128xf32>
    %cst_50 = arith.constant dense<0.000000e+00> : vector<8x128xf32>
    %244 = tpu.matmul %241, %1, %cst_50 {dimension_numbers = #tpu.dot_dimension_numbers<[1], [0], [0], [1], [0, 0, 1, 1], [], []>} : vector<8x128xf32>, vector<128x128xf32>, vector<8x128xf32> -> vector<8x128xf32>
    %245 = arith.addf %244, %5 : vector<8x128xf32>
    %cst_51 = arith.constant 0.000000e+00 : f32
    %246 = vector.broadcast %cst_51 : f32 to vector<8x128xf32>
    %247 = arith.maximumf %245, %246 : vector<8x128xf32>
    %cst_52 = arith.constant dense<0.000000e+00> : vector<8x512xf32>
    %248 = tpu.matmul %247, %2, %cst_52 {dimension_numbers = #tpu.dot_dimension_numbers<[1], [0], [0], [1], [0, 0, 1, 1], [], []>} : vector<8x128xf32>, vector<128x512xf32>, vector<8x512xf32> -> vector<8x512xf32>
    %249 = arith.addf %248, %8 : vector<8x512xf32>
    %250 = vector.extract_strided_slice %249 {offsets = [0, 384], sizes = [8, 3], strides = [1, 1]} : vector<8x512xf32> to vector<8x3xf32>
    %cst_53 = arith.constant dense<0xFF800000> : vector<8xf32>
    %251 = vector.multi_reduction <maximumf>, %250, %cst_53 [1] : vector<8x3xf32> to vector<8xf32>
    %252 = vector.shape_cast %251 : vector<8xf32> to vector<8x1xf32>
    %253 = vector.broadcast %252 : vector<8x1xf32> to vector<8x3xf32>
    %254 = arith.subf %250, %253 : vector<8x3xf32>
    %255 = math.exp %254 : vector<8x3xf32>
    %cst_54 = arith.constant dense<0.000000e+00> : vector<8xf32>
    %256 = vector.multi_reduction <add>, %255, %cst_54 [1] : vector<8x3xf32> to vector<8xf32>
    %257 = vector.shape_cast %256 : vector<8xf32> to vector<8x1xf32>
    %258 = tpu.reciprocal %257 : vector<8x1xf32> -> vector<8x1xf32>
    %259 = vector.broadcast %258 : vector<8x1xf32> to vector<8x3xf32>
    %260 = arith.mulf %255, %259 : vector<8x3xf32>
    %261 = vector.extract_strided_slice %260 {offsets = [0, 0], sizes = [8, 1], strides = [1, 1]} : vector<8x3xf32> to vector<8x1xf32>
    %262 = vector.extract_strided_slice %249 {offsets = [0, 0], sizes = [8, 128], strides = [1, 1]} : vector<8x512xf32> to vector<8x128xf32>
    %263 = vector.broadcast %261 : vector<8x1xf32> to vector<8x128xf32>
    %264 = arith.mulf %263, %262 : vector<8x128xf32>
    %265 = vector.extract_strided_slice %260 {offsets = [0, 1], sizes = [8, 1], strides = [1, 1]} : vector<8x3xf32> to vector<8x1xf32>
    %266 = vector.extract_strided_slice %249 {offsets = [0, 128], sizes = [8, 128], strides = [1, 1]} : vector<8x512xf32> to vector<8x128xf32>
    %267 = vector.broadcast %265 : vector<8x1xf32> to vector<8x128xf32>
    %268 = arith.mulf %267, %266 : vector<8x128xf32>
    %269 = arith.addf %264, %268 : vector<8x128xf32>
    %270 = vector.extract_strided_slice %260 {offsets = [0, 2], sizes = [8, 1], strides = [1, 1]} : vector<8x3xf32> to vector<8x1xf32>
    %271 = vector.extract_strided_slice %249 {offsets = [0, 256], sizes = [8, 128], strides = [1, 1]} : vector<8x512xf32> to vector<8x128xf32>
    %272 = vector.broadcast %270 : vector<8x1xf32> to vector<8x128xf32>
    %273 = arith.mulf %272, %271 : vector<8x128xf32>
    %274 = arith.addf %269, %273 : vector<8x128xf32>
    %275 = tpu.concatenate %243, %274 in 1 : vector<8x128xf32>, vector<8x128xf32> -> vector<8x256xf32>
    %c5_i32 = arith.constant 5 : i32
    %276 = arith.index_cast %c5_i32 : i32 to index
    %c0_55 = arith.constant 0 : index
    %c0_56 = arith.constant 0 : index
    %277 = vector.load %arg0[%276, %c0_55, %c0_56] : memref<8x8x512xf32, #tpu.memory_space<vmem>>, vector<1x8x512xf32>
    %278 = vector.shape_cast %277 : vector<1x8x512xf32> to vector<8x512xf32>
    %cst_57 = arith.constant dense<0.000000e+00> : vector<8x512xf32>
    %279 = tpu.matmul %275, %0, %cst_57 {dimension_numbers = #tpu.dot_dimension_numbers<[1], [0], [0], [1], [0, 0, 1, 1], [], []>} : vector<8x256xf32>, vector<256x512xf32>, vector<8x512xf32> -> vector<8x512xf32>
    %280 = arith.addf %278, %279 : vector<8x512xf32>
    %281 = vector.extract_strided_slice %280 {offsets = [0, 0], sizes = [8, 384], strides = [1, 1]} : vector<8x512xf32> to vector<8x384xf32>
    %282 = arith.negf %281 : vector<8x384xf32>
    %283 = math.exp %282 : vector<8x384xf32>
    %cst_58 = arith.constant 1.000000e+00 : f32
    %284 = vector.broadcast %cst_58 : f32 to vector<8x384xf32>
    %285 = arith.addf %284, %283 : vector<8x384xf32>
    %286 = arith.divf %284, %285 : vector<8x384xf32>
    %287 = vector.extract_strided_slice %280 {offsets = [0, 384], sizes = [8, 128], strides = [1, 1]} : vector<8x512xf32> to vector<8x128xf32>
    %288 = math.tanh %287 : vector<8x128xf32>
    %289 = vector.extract_strided_slice %286 {offsets = [0, 0], sizes = [8, 128], strides = [1, 1]} : vector<8x384xf32> to vector<8x128xf32>
    %290 = vector.extract_strided_slice %286 {offsets = [0, 128], sizes = [8, 128], strides = [1, 1]} : vector<8x384xf32> to vector<8x128xf32>
    %291 = vector.extract_strided_slice %286 {offsets = [0, 256], sizes = [8, 128], strides = [1, 1]} : vector<8x384xf32> to vector<8x128xf32>
    %292 = arith.mulf %289, %241 : vector<8x128xf32>
    %293 = arith.mulf %290, %288 : vector<8x128xf32>
    %294 = arith.addf %292, %293 : vector<8x128xf32>
    %295 = math.tanh %294 : vector<8x128xf32>
    %296 = arith.mulf %295, %291 : vector<8x128xf32>
    %cst_59 = arith.constant dense<0.000000e+00> : vector<8x128xf32>
    %297 = tpu.matmul %294, %1, %cst_59 {dimension_numbers = #tpu.dot_dimension_numbers<[1], [0], [0], [1], [0, 0, 1, 1], [], []>} : vector<8x128xf32>, vector<128x128xf32>, vector<8x128xf32> -> vector<8x128xf32>
    %298 = arith.addf %297, %5 : vector<8x128xf32>
    %cst_60 = arith.constant 0.000000e+00 : f32
    %299 = vector.broadcast %cst_60 : f32 to vector<8x128xf32>
    %300 = arith.maximumf %298, %299 : vector<8x128xf32>
    %cst_61 = arith.constant dense<0.000000e+00> : vector<8x512xf32>
    %301 = tpu.matmul %300, %2, %cst_61 {dimension_numbers = #tpu.dot_dimension_numbers<[1], [0], [0], [1], [0, 0, 1, 1], [], []>} : vector<8x128xf32>, vector<128x512xf32>, vector<8x512xf32> -> vector<8x512xf32>
    %302 = arith.addf %301, %8 : vector<8x512xf32>
    %303 = vector.extract_strided_slice %302 {offsets = [0, 384], sizes = [8, 3], strides = [1, 1]} : vector<8x512xf32> to vector<8x3xf32>
    %cst_62 = arith.constant dense<0xFF800000> : vector<8xf32>
    %304 = vector.multi_reduction <maximumf>, %303, %cst_62 [1] : vector<8x3xf32> to vector<8xf32>
    %305 = vector.shape_cast %304 : vector<8xf32> to vector<8x1xf32>
    %306 = vector.broadcast %305 : vector<8x1xf32> to vector<8x3xf32>
    %307 = arith.subf %303, %306 : vector<8x3xf32>
    %308 = math.exp %307 : vector<8x3xf32>
    %cst_63 = arith.constant dense<0.000000e+00> : vector<8xf32>
    %309 = vector.multi_reduction <add>, %308, %cst_63 [1] : vector<8x3xf32> to vector<8xf32>
    %310 = vector.shape_cast %309 : vector<8xf32> to vector<8x1xf32>
    %311 = tpu.reciprocal %310 : vector<8x1xf32> -> vector<8x1xf32>
    %312 = vector.broadcast %311 : vector<8x1xf32> to vector<8x3xf32>
    %313 = arith.mulf %308, %312 : vector<8x3xf32>
    %314 = vector.extract_strided_slice %313 {offsets = [0, 0], sizes = [8, 1], strides = [1, 1]} : vector<8x3xf32> to vector<8x1xf32>
    %315 = vector.extract_strided_slice %302 {offsets = [0, 0], sizes = [8, 128], strides = [1, 1]} : vector<8x512xf32> to vector<8x128xf32>
    %316 = vector.broadcast %314 : vector<8x1xf32> to vector<8x128xf32>
    %317 = arith.mulf %316, %315 : vector<8x128xf32>
    %318 = vector.extract_strided_slice %313 {offsets = [0, 1], sizes = [8, 1], strides = [1, 1]} : vector<8x3xf32> to vector<8x1xf32>
    %319 = vector.extract_strided_slice %302 {offsets = [0, 128], sizes = [8, 128], strides = [1, 1]} : vector<8x512xf32> to vector<8x128xf32>
    %320 = vector.broadcast %318 : vector<8x1xf32> to vector<8x128xf32>
    %321 = arith.mulf %320, %319 : vector<8x128xf32>
    %322 = arith.addf %317, %321 : vector<8x128xf32>
    %323 = vector.extract_strided_slice %313 {offsets = [0, 2], sizes = [8, 1], strides = [1, 1]} : vector<8x3xf32> to vector<8x1xf32>
    %324 = vector.extract_strided_slice %302 {offsets = [0, 256], sizes = [8, 128], strides = [1, 1]} : vector<8x512xf32> to vector<8x128xf32>
    %325 = vector.broadcast %323 : vector<8x1xf32> to vector<8x128xf32>
    %326 = arith.mulf %325, %324 : vector<8x128xf32>
    %327 = arith.addf %322, %326 : vector<8x128xf32>
    %328 = tpu.concatenate %296, %327 in 1 : vector<8x128xf32>, vector<8x128xf32> -> vector<8x256xf32>
    %c6_i32 = arith.constant 6 : i32
    %329 = arith.index_cast %c6_i32 : i32 to index
    %c0_64 = arith.constant 0 : index
    %c0_65 = arith.constant 0 : index
    %330 = vector.load %arg0[%329, %c0_64, %c0_65] : memref<8x8x512xf32, #tpu.memory_space<vmem>>, vector<1x8x512xf32>
    %331 = vector.shape_cast %330 : vector<1x8x512xf32> to vector<8x512xf32>
    %cst_66 = arith.constant dense<0.000000e+00> : vector<8x512xf32>
    %332 = tpu.matmul %328, %0, %cst_66 {dimension_numbers = #tpu.dot_dimension_numbers<[1], [0], [0], [1], [0, 0, 1, 1], [], []>} : vector<8x256xf32>, vector<256x512xf32>, vector<8x512xf32> -> vector<8x512xf32>
    %333 = arith.addf %331, %332 : vector<8x512xf32>
    %334 = vector.extract_strided_slice %333 {offsets = [0, 0], sizes = [8, 384], strides = [1, 1]} : vector<8x512xf32> to vector<8x384xf32>
    %335 = arith.negf %334 : vector<8x384xf32>
    %336 = math.exp %335 : vector<8x384xf32>
    %cst_67 = arith.constant 1.000000e+00 : f32
    %337 = vector.broadcast %cst_67 : f32 to vector<8x384xf32>
    %338 = arith.addf %337, %336 : vector<8x384xf32>
    %339 = arith.divf %337, %338 : vector<8x384xf32>
    %340 = vector.extract_strided_slice %333 {offsets = [0, 384], sizes = [8, 128], strides = [1, 1]} : vector<8x512xf32> to vector<8x128xf32>
    %341 = math.tanh %340 : vector<8x128xf32>
    %342 = vector.extract_strided_slice %339 {offsets = [0, 0], sizes = [8, 128], strides = [1, 1]} : vector<8x384xf32> to vector<8x128xf32>
    %343 = vector.extract_strided_slice %339 {offsets = [0, 128], sizes = [8, 128], strides = [1, 1]} : vector<8x384xf32> to vector<8x128xf32>
    %344 = vector.extract_strided_slice %339 {offsets = [0, 256], sizes = [8, 128], strides = [1, 1]} : vector<8x384xf32> to vector<8x128xf32>
    %345 = arith.mulf %342, %294 : vector<8x128xf32>
    %346 = arith.mulf %343, %341 : vector<8x128xf32>
    %347 = arith.addf %345, %346 : vector<8x128xf32>
    %348 = math.tanh %347 : vector<8x128xf32>
    %349 = arith.mulf %348, %344 : vector<8x128xf32>
    %cst_68 = arith.constant dense<0.000000e+00> : vector<8x128xf32>
    %350 = tpu.matmul %347, %1, %cst_68 {dimension_numbers = #tpu.dot_dimension_numbers<[1], [0], [0], [1], [0, 0, 1, 1], [], []>} : vector<8x128xf32>, vector<128x128xf32>, vector<8x128xf32> -> vector<8x128xf32>
    %351 = arith.addf %350, %5 : vector<8x128xf32>
    %cst_69 = arith.constant 0.000000e+00 : f32
    %352 = vector.broadcast %cst_69 : f32 to vector<8x128xf32>
    %353 = arith.maximumf %351, %352 : vector<8x128xf32>
    %cst_70 = arith.constant dense<0.000000e+00> : vector<8x512xf32>
    %354 = tpu.matmul %353, %2, %cst_70 {dimension_numbers = #tpu.dot_dimension_numbers<[1], [0], [0], [1], [0, 0, 1, 1], [], []>} : vector<8x128xf32>, vector<128x512xf32>, vector<8x512xf32> -> vector<8x512xf32>
    %355 = arith.addf %354, %8 : vector<8x512xf32>
    %356 = vector.extract_strided_slice %355 {offsets = [0, 384], sizes = [8, 3], strides = [1, 1]} : vector<8x512xf32> to vector<8x3xf32>
    %cst_71 = arith.constant dense<0xFF800000> : vector<8xf32>
    %357 = vector.multi_reduction <maximumf>, %356, %cst_71 [1] : vector<8x3xf32> to vector<8xf32>
    %358 = vector.shape_cast %357 : vector<8xf32> to vector<8x1xf32>
    %359 = vector.broadcast %358 : vector<8x1xf32> to vector<8x3xf32>
    %360 = arith.subf %356, %359 : vector<8x3xf32>
    %361 = math.exp %360 : vector<8x3xf32>
    %cst_72 = arith.constant dense<0.000000e+00> : vector<8xf32>
    %362 = vector.multi_reduction <add>, %361, %cst_72 [1] : vector<8x3xf32> to vector<8xf32>
    %363 = vector.shape_cast %362 : vector<8xf32> to vector<8x1xf32>
    %364 = tpu.reciprocal %363 : vector<8x1xf32> -> vector<8x1xf32>
    %365 = vector.broadcast %364 : vector<8x1xf32> to vector<8x3xf32>
    %366 = arith.mulf %361, %365 : vector<8x3xf32>
    %367 = vector.extract_strided_slice %366 {offsets = [0, 0], sizes = [8, 1], strides = [1, 1]} : vector<8x3xf32> to vector<8x1xf32>
    %368 = vector.extract_strided_slice %355 {offsets = [0, 0], sizes = [8, 128], strides = [1, 1]} : vector<8x512xf32> to vector<8x128xf32>
    %369 = vector.broadcast %367 : vector<8x1xf32> to vector<8x128xf32>
    %370 = arith.mulf %369, %368 : vector<8x128xf32>
    %371 = vector.extract_strided_slice %366 {offsets = [0, 1], sizes = [8, 1], strides = [1, 1]} : vector<8x3xf32> to vector<8x1xf32>
    %372 = vector.extract_strided_slice %355 {offsets = [0, 128], sizes = [8, 128], strides = [1, 1]} : vector<8x512xf32> to vector<8x128xf32>
    %373 = vector.broadcast %371 : vector<8x1xf32> to vector<8x128xf32>
    %374 = arith.mulf %373, %372 : vector<8x128xf32>
    %375 = arith.addf %370, %374 : vector<8x128xf32>
    %376 = vector.extract_strided_slice %366 {offsets = [0, 2], sizes = [8, 1], strides = [1, 1]} : vector<8x3xf32> to vector<8x1xf32>
    %377 = vector.extract_strided_slice %355 {offsets = [0, 256], sizes = [8, 128], strides = [1, 1]} : vector<8x512xf32> to vector<8x128xf32>
    %378 = vector.broadcast %376 : vector<8x1xf32> to vector<8x128xf32>
    %379 = arith.mulf %378, %377 : vector<8x128xf32>
    %380 = arith.addf %375, %379 : vector<8x128xf32>
    %381 = tpu.concatenate %349, %380 in 1 : vector<8x128xf32>, vector<8x128xf32> -> vector<8x256xf32>
    %c7_i32 = arith.constant 7 : i32
    %382 = arith.index_cast %c7_i32 : i32 to index
    %c0_73 = arith.constant 0 : index
    %c0_74 = arith.constant 0 : index
    %383 = vector.load %arg0[%382, %c0_73, %c0_74] : memref<8x8x512xf32, #tpu.memory_space<vmem>>, vector<1x8x512xf32>
    %384 = vector.shape_cast %383 : vector<1x8x512xf32> to vector<8x512xf32>
    %cst_75 = arith.constant dense<0.000000e+00> : vector<8x512xf32>
    %385 = tpu.matmul %381, %0, %cst_75 {dimension_numbers = #tpu.dot_dimension_numbers<[1], [0], [0], [1], [0, 0, 1, 1], [], []>} : vector<8x256xf32>, vector<256x512xf32>, vector<8x512xf32> -> vector<8x512xf32>
    %386 = arith.addf %384, %385 : vector<8x512xf32>
    %387 = vector.extract_strided_slice %386 {offsets = [0, 0], sizes = [8, 384], strides = [1, 1]} : vector<8x512xf32> to vector<8x384xf32>
    %388 = arith.negf %387 : vector<8x384xf32>
    %389 = math.exp %388 : vector<8x384xf32>
    %cst_76 = arith.constant 1.000000e+00 : f32
    %390 = vector.broadcast %cst_76 : f32 to vector<8x384xf32>
    %391 = arith.addf %390, %389 : vector<8x384xf32>
    %392 = arith.divf %390, %391 : vector<8x384xf32>
    %393 = vector.extract_strided_slice %386 {offsets = [0, 384], sizes = [8, 128], strides = [1, 1]} : vector<8x512xf32> to vector<8x128xf32>
    %394 = math.tanh %393 : vector<8x128xf32>
    %395 = vector.extract_strided_slice %392 {offsets = [0, 0], sizes = [8, 128], strides = [1, 1]} : vector<8x384xf32> to vector<8x128xf32>
    %396 = vector.extract_strided_slice %392 {offsets = [0, 128], sizes = [8, 128], strides = [1, 1]} : vector<8x384xf32> to vector<8x128xf32>
    %397 = vector.extract_strided_slice %392 {offsets = [0, 256], sizes = [8, 128], strides = [1, 1]} : vector<8x384xf32> to vector<8x128xf32>
    %398 = arith.mulf %395, %347 : vector<8x128xf32>
    %399 = arith.mulf %396, %394 : vector<8x128xf32>
    %400 = arith.addf %398, %399 : vector<8x128xf32>
    %401 = math.tanh %400 : vector<8x128xf32>
    %402 = arith.mulf %401, %397 : vector<8x128xf32>
    %cst_77 = arith.constant dense<0.000000e+00> : vector<8x128xf32>
    %403 = tpu.matmul %400, %1, %cst_77 {dimension_numbers = #tpu.dot_dimension_numbers<[1], [0], [0], [1], [0, 0, 1, 1], [], []>} : vector<8x128xf32>, vector<128x128xf32>, vector<8x128xf32> -> vector<8x128xf32>
    %404 = arith.addf %403, %5 : vector<8x128xf32>
    %cst_78 = arith.constant 0.000000e+00 : f32
    %405 = vector.broadcast %cst_78 : f32 to vector<8x128xf32>
    %406 = arith.maximumf %404, %405 : vector<8x128xf32>
    %cst_79 = arith.constant dense<0.000000e+00> : vector<8x512xf32>
    %407 = tpu.matmul %406, %2, %cst_79 {dimension_numbers = #tpu.dot_dimension_numbers<[1], [0], [0], [1], [0, 0, 1, 1], [], []>} : vector<8x128xf32>, vector<128x512xf32>, vector<8x512xf32> -> vector<8x512xf32>
    %408 = arith.addf %407, %8 : vector<8x512xf32>
    %409 = vector.extract_strided_slice %408 {offsets = [0, 384], sizes = [8, 3], strides = [1, 1]} : vector<8x512xf32> to vector<8x3xf32>
    %cst_80 = arith.constant dense<0xFF800000> : vector<8xf32>
    %410 = vector.multi_reduction <maximumf>, %409, %cst_80 [1] : vector<8x3xf32> to vector<8xf32>
    %411 = vector.shape_cast %410 : vector<8xf32> to vector<8x1xf32>
    %412 = vector.broadcast %411 : vector<8x1xf32> to vector<8x3xf32>
    %413 = arith.subf %409, %412 : vector<8x3xf32>
    %414 = math.exp %413 : vector<8x3xf32>
    %cst_81 = arith.constant dense<0.000000e+00> : vector<8xf32>
    %415 = vector.multi_reduction <add>, %414, %cst_81 [1] : vector<8x3xf32> to vector<8xf32>
    %416 = vector.shape_cast %415 : vector<8xf32> to vector<8x1xf32>
    %417 = tpu.reciprocal %416 : vector<8x1xf32> -> vector<8x1xf32>
    %418 = vector.broadcast %417 : vector<8x1xf32> to vector<8x3xf32>
    %419 = arith.mulf %414, %418 : vector<8x3xf32>
    %420 = vector.extract_strided_slice %419 {offsets = [0, 0], sizes = [8, 1], strides = [1, 1]} : vector<8x3xf32> to vector<8x1xf32>
    %421 = vector.extract_strided_slice %408 {offsets = [0, 0], sizes = [8, 128], strides = [1, 1]} : vector<8x512xf32> to vector<8x128xf32>
    %422 = vector.broadcast %420 : vector<8x1xf32> to vector<8x128xf32>
    %423 = arith.mulf %422, %421 : vector<8x128xf32>
    %424 = vector.extract_strided_slice %419 {offsets = [0, 1], sizes = [8, 1], strides = [1, 1]} : vector<8x3xf32> to vector<8x1xf32>
    %425 = vector.extract_strided_slice %408 {offsets = [0, 128], sizes = [8, 128], strides = [1, 1]} : vector<8x512xf32> to vector<8x128xf32>
    %426 = vector.broadcast %424 : vector<8x1xf32> to vector<8x128xf32>
    %427 = arith.mulf %426, %425 : vector<8x128xf32>
    %428 = arith.addf %423, %427 : vector<8x128xf32>
    %429 = vector.extract_strided_slice %419 {offsets = [0, 2], sizes = [8, 1], strides = [1, 1]} : vector<8x3xf32> to vector<8x1xf32>
    %430 = vector.extract_strided_slice %408 {offsets = [0, 256], sizes = [8, 128], strides = [1, 1]} : vector<8x512xf32> to vector<8x128xf32>
    %431 = vector.broadcast %429 : vector<8x1xf32> to vector<8x128xf32>
    %432 = arith.mulf %431, %430 : vector<8x128xf32>
    %433 = arith.addf %428, %432 : vector<8x128xf32>
    %434 = tpu.concatenate %402, %433 in 1 : vector<8x128xf32>, vector<8x128xf32> -> vector<8x256xf32>
    %c8_i32 = arith.constant 8 : i32
    %c0_82 = arith.constant 0 : index
    %c0_83 = arith.constant 0 : index
    %435 = vector.load %arg6[%c0_82, %c0_83] : memref<256x32xf32, #tpu.memory_space<vmem>>, vector<256x32xf32>
    %cst_84 = arith.constant dense<0.000000e+00> : vector<8x32xf32>
    %436 = tpu.matmul %434, %435, %cst_84 {dimension_numbers = #tpu.dot_dimension_numbers<[1], [0], [0], [1], [0, 0, 1, 1], [], []>} : vector<8x256xf32>, vector<256x32xf32>, vector<8x32xf32> -> vector<8x32xf32>
    %c0_85 = arith.constant 0 : index
    %c0_86 = arith.constant 0 : index
    %437 = vector.load %arg7[%c0_85, %c0_86] : memref<1x32xf32, #tpu.memory_space<vmem>>, vector<1x32xf32>
    %438 = vector.broadcast %437 : vector<1x32xf32> to vector<8x32xf32>
    %439 = arith.addf %436, %438 : vector<8x32xf32>
    %cst_87 = arith.constant 0.000000e+00 : f32
    %440 = vector.broadcast %cst_87 : f32 to vector<8x32xf32>
    %441 = arith.maximumf %439, %440 : vector<8x32xf32>
    %c0_88 = arith.constant 0 : index
    %c0_89 = arith.constant 0 : index
    %442 = vector.load %arg8[%c0_88, %c0_89] : memref<32x128xf32, #tpu.memory_space<vmem>>, vector<32x128xf32>
    %cst_90 = arith.constant dense<0.000000e+00> : vector<8x128xf32>
    %443 = tpu.matmul %441, %442, %cst_90 {dimension_numbers = #tpu.dot_dimension_numbers<[1], [0], [0], [1], [0, 0, 1, 1], [], []>} : vector<8x32xf32>, vector<32x128xf32>, vector<8x128xf32> -> vector<8x128xf32>
    %c0_91 = arith.constant 0 : index
    %c0_92 = arith.constant 0 : index
    %444 = vector.load %arg9[%c0_91, %c0_92] : memref<1x128xf32, #tpu.memory_space<vmem>>, vector<1x128xf32>
    %445 = vector.broadcast %444 : vector<1x128xf32> to vector<8x128xf32>
    %446 = arith.addf %443, %445 : vector<8x128xf32>
    %c0_93 = arith.constant 0 : index
    %c0_94 = arith.constant 0 : index
    %447 = vector.load %arg10[%c0_93, %c0_94] : memref<8x128xf32, #tpu.memory_space<vmem>>, vector<8x128xf32>
    tpu.vector_store %arg10[%c0_93, %c0_94], %446 {strides = array<i32>} : memref<8x128xf32, #tpu.memory_space<vmem>>, vector<8x128xf32>,
    return
  }
}

</mosaic_0001>

<llo_original>
// kernel: tpu_custom_call.1
$region0: #{tpu_custom_call.1}
  #allocation0 [shape = 'u32[]', space=smem, size = 0x4, offset = 0x4, fixed_abs, tag = 'smem constant byte address 0x4 - core index']
  #allocation1 [shape = 'u32[144,128]{1,0:T(1,128)}', space=vmem, size = 0x12000, scoped, tag = 'internal scratch']
  %s0 = inlined_call_operand.vmem [shape: f32[8,8,512], index: 0, kind: input, shape index: {}]
  %s1 = inlined_call_operand.hbm [shape: f32[256,512], index: 1, kind: input, shape index: {}]
  %s2 = inlined_call_operand.hbm [shape: f32[128,128], index: 2, kind: input, shape index: {}]
  %s3 = inlined_call_operand.vmem [shape: f32[1,128], index: 3, kind: input, shape index: {}]
  %s4 = inlined_call_operand.hbm [shape: f32[128,512], index: 4, kind: input, shape index: {}]
  %s5 = inlined_call_operand.vmem [shape: f32[1,512], index: 5, kind: input, shape index: {}]
  %s6 = inlined_call_operand.vmem [shape: f32[256,32], index: 6, kind: input, shape index: {}]
  %s7 = inlined_call_operand.vmem [shape: f32[1,32], index: 7, kind: input, shape index: {}]
  %s8 = inlined_call_operand.vmem [shape: f32[32,128], index: 8, kind: input, shape index: {}]
  %s9 = inlined_call_operand.vmem [shape: f32[1,128], index: 9, kind: input, shape index: {}]
  %s10 = inlined_call_operand.hbm [shape: f32[8,128], index: 10, kind: output, shape index: {}]
  %s11 = sld [smem:[#allocation0]]
  $region62: #{tpu_custom_call.1} parent=0
    _
  %s13 = ssub.s32 1, %s11
  %s14 = scalar_select 0, %s13, %s11
  $region1: #{tpu_custom_call.1} parent=0
    #allocation2 [shape = 'u8[524288]{0}', space=vmem, size = 0x80000, scoped, tag = 'input window, operand 1, single buffered']
    #allocation3 [shape = 's32[1]{0}', space=sflag, size = 0x4, scoped, tag = 'scoped memory for tpu_custom_call.1']
    #allocation4 [shape = 's32[1]{0}', space=sflag, size = 0x4, scoped, tag = 'scoped memory for tpu_custom_call.1']
    #allocation5 [shape = 'u8[65536]{0}', space=vmem, size = 0x10000, scoped, tag = 'input window, operand 2, single buffered']
    #allocation6 [shape = 's32[1]{0}', space=sflag, size = 0x4, scoped, tag = 'scoped memory for tpu_custom_call.1']
    #allocation7 [shape = 'u8[262144]{0}', space=vmem, size = 0x40000, scoped, tag = 'input window, operand 4, single buffered']
    #allocation8 [shape = 'u8[4096]{0}', space=vmem, size = 0x1000, scoped, tag = 'output window, operand 0, single buffered']
    %15 = vsyncpa [#allocation3], 0
    %16 = vsyncpa [#allocation6], 0
    %17 = vsyncpa [#allocation4], 0
    // Predicated region
    $region2: #{tpu_custom_call.1} parent=1 // pred_check
      _
    $region3: #{tpu_custom_call.1} parent=1 // pred_check_branch
      %19 = sbr.rel (0) target = $region5
    $region4: #{tpu_custom_call.1} parent=1 // pred_region
      _
    $region5: #{tpu_custom_call.1} parent=1 // pred_fallthru
      _
    // Predicated region
    $region6: #{tpu_custom_call.1} parent=1 // pred_check
      _
    $region7: #{tpu_custom_call.1} parent=1 // pred_check_branch
      %21 = sbr.rel (0) target = $region9
    $region8: #{tpu_custom_call.1} parent=1 // pred_region
      %s23 = ssub.s32 16384, 16384
      %24 = vsyncadd [#allocation3], %s23
      %s25 = sshll.u32 [#allocation2], 4
      %s26 = int_to_ptr.vmem [resolvable:$true] %s25
      %31 = dma.hbm_to_vmem [thread:$0]  %s1, 16384, %s26, [#allocation3], 512, 512, 32
    $region9: #{tpu_custom_call.1} parent=1 // pred_fallthru
      _
    // Predicated region
    $region10: #{tpu_custom_call.1} parent=1 // pred_check
      _
    $region11: #{tpu_custom_call.1} parent=1 // pred_check_branch
      %33 = sbr.rel (0) target = $region13
    $region12: #{tpu_custom_call.1} parent=1 // pred_region
      %s35 = ssub.s32 2048, 2048
      %36 = vsyncadd [#allocation6], %s35
      %s37 = sshll.u32 [#allocation5], 4
      %s38 = int_to_ptr.vmem [resolvable:$true] %s37
      %43 = dma.hbm_to_vmem [thread:$0]  %s2, 2048, %s38, [#allocation6], 128, 128, 8
    $region13: #{tpu_custom_call.1} parent=1 // pred_fallthru
      _
    // Predicated region
    $region14: #{tpu_custom_call.1} parent=1 // pred_check
      _
    $region15: #{tpu_custom_call.1} parent=1 // pred_check_branch
      %45 = sbr.rel (0) target = $region17
    $region16: #{tpu_custom_call.1} parent=1 // pred_region
      _
    $region17: #{tpu_custom_call.1} parent=1 // pred_fallthru
      _
    // Predicated region
    $region18: #{tpu_custom_call.1} parent=1 // pred_check
      _
    $region19: #{tpu_custom_call.1} parent=1 // pred_check_branch
      %47 = sbr.rel (0) target = $region21
    $region20: #{tpu_custom_call.1} parent=1 // pred_region
      %s49 = ssub.s32 8192, 8192
      %50 = vsyncadd [#allocation6], %s49
      %s51 = sshll.u32 [#allocation7], 4
      %s52 = int_to_ptr.vmem [resolvable:$true] %s51
      %57 = dma.hbm_to_vmem [thread:$0]  %s4, 8192, %s52, [#allocation6], 512, 512, 32
    $region21: #{tpu_custom_call.1} parent=1 // pred_fallthru
      _
    // Predicated region
    $region22: #{tpu_custom_call.1} parent=1 // pred_check
      _
    $region23: #{tpu_custom_call.1} parent=1 // pred_check_branch
      %59 = sbr.rel (0) target = $region25
    $region24: #{tpu_custom_call.1} parent=1 // pred_region
      _
    $region25: #{tpu_custom_call.1} parent=1 // pred_fallthru
      _
    // Predicated region
    $region26: #{tpu_custom_call.1} parent=1 // pred_check
      _
    $region27: #{tpu_custom_call.1} parent=1 // pred_check_branch
      %61 = sbr.rel (0) target = $region29
    $region28: #{tpu_custom_call.1} parent=1 // pred_region
      _
    $region29: #{tpu_custom_call.1} parent=1 // pred_fallthru
      _
    // Predicated region
    $region30: #{tpu_custom_call.1} parent=1 // pred_check
      _
    $region31: #{tpu_custom_call.1} parent=1 // pred_check_branch
      %63 = sbr.rel (0) target = $region33
    $region32: #{tpu_custom_call.1} parent=1 // pred_region
      _
    $region33: #{tpu_custom_call.1} parent=1 // pred_fallthru
      _
    // Predicated region
    $region34: #{tpu_custom_call.1} parent=1 // pred_check
      _
    $region35: #{tpu_custom_call.1} parent=1 // pred_check_branch
      %65 = sbr.rel (0) target = $region37
    $region36: #{tpu_custom_call.1} parent=1 // pred_region
      _
    $region37: #{tpu_custom_call.1} parent=1 // pred_fallthru
      _
    // Predicated region
    $region38: #{tpu_custom_call.1} parent=1 // pred_check
      _
    $region39: #{tpu_custom_call.1} parent=1 // pred_check_branch
      %67 = sbr.rel (0) target = $region41
    $region40: #{tpu_custom_call.1} parent=1 // pred_region
      _
    $region41: #{tpu_custom_call.1} parent=1 // pred_fallthru
      _
    // Predicated region
    $region42: #{tpu_custom_call.1} parent=1 // pred_check
      _
    $region43: #{tpu_custom_call.1} parent=1 // pred_check_branch
      %69 = sbr.rel (0) target = $region45
    $region44: #{tpu_custom_call.1} parent=1 // pred_region
      %70 = dma.done [#allocation3], 16384
    $region45: #{tpu_custom_call.1} parent=1 // pred_fallthru
      _
    // Predicated region
    $region46: #{tpu_custom_call.1} parent=1 // pred_check
      _
    $region47: #{tpu_custom_call.1} parent=1 // pred_check_branch
      %72 = sbr.rel (0) target = $region49
    $region48: #{tpu_custom_call.1} parent=1 // pred_region
      %73 = dma.done [#allocation6], 2048
    $region49: #{tpu_custom_call.1} parent=1 // pred_fallthru
      _
    // Predicated region
    $region50: #{tpu_custom_call.1} parent=1 // pred_check
      _
    $region51: #{tpu_custom_call.1} parent=1 // pred_check_branch
      %75 = sbr.rel (0) target = $region53
    $region52: #{tpu_custom_call.1} parent=1 // pred_region
      %76 = dma.done [#allocation6], 8192
    $region53: #{tpu_custom_call.1} parent=1 // pred_fallthru
      _
    %v77 = vld [vmem:[#allocation2] sm:$0xff]
    %v78 = vld [vmem:[#allocation2 + $0x8] sm:$0xff]
    %v79 = vld [vmem:[#allocation2 + $0x10] sm:$0xff]
    %v80 = vld [vmem:[#allocation2 + $0x18] sm:$0xff]
    %v81 = vld [vmem:[#allocation2 + $0x20] sm:$0xff]
    %v82 = vld [vmem:[#allocation2 + $0x28] sm:$0xff]
    %v83 = vld [vmem:[#allocation2 + $0x30] sm:$0xff]
    %v84 = vld [vmem:[#allocation2 + $0x38] sm:$0xff]
    %v85 = vld [vmem:[#allocation2 + $0x40] sm:$0xff]
    %v86 = vld [vmem:[#allocation2 + $0x48] sm:$0xff]
    %v87 = vld [vmem:[#allocation2 + $0x50] sm:$0xff]
    %v88 = vld [vmem:[#allocation2 + $0x58] sm:$0xff]
    %v89 = vld [vmem:[#allocation2 + $0x60] sm:$0xff]
    %v90 = vld [vmem:[#allocation2 + $0x68] sm:$0xff]
    %v91 = vld [vmem:[#allocation2 + $0x70] sm:$0xff]
    %v92 = vld [vmem:[#allocation2 + $0x78] sm:$0xff]
    %v93 = vld [vmem:[#allocation2 + $0x80] sm:$0xff]
    %v94 = vld [vmem:[#allocation2 + $0x88] sm:$0xff]
    %v95 = vld [vmem:[#allocation2 + $0x90] sm:$0xff]
    %v96 = vld [vmem:[#allocation2 + $0x98] sm:$0xff]
    %v97 = vld [vmem:[#allocation2 + $0xa0] sm:$0xff]
    %v98 = vld [vmem:[#allocation2 + $0xa8] sm:$0xff]
    %v99 = vld [vmem:[#allocation2 + $0xb0] sm:$0xff]
    %v100 = vld [vmem:[#allocation2 + $0xb8] sm:$0xff]
    %v101 = vld [vmem:[#allocation2 + $0xc0] sm:$0xff]
    %v102 = vld [vmem:[#allocation2 + $0xc8] sm:$0xff]
    %v103 = vld [vmem:[#allocation2 + $0xd0] sm:$0xff]
    %v104 = vld [vmem:[#allocation2 + $0xd8] sm:$0xff]
    %v105 = vld [vmem:[#allocation2 + $0xe0] sm:$0xff]
    %v106 = vld [vmem:[#allocation2 + $0xe8] sm:$0xff]
    %v107 = vld [vmem:[#allocation2 + $0xf0] sm:$0xff]
    %v108 = vld [vmem:[#allocation2 + $0xf8] sm:$0xff]
    %v109 = vld [vmem:[#allocation2 + $0x100] sm:$0xff]
    %v110 = vld [vmem:[#allocation2 + $0x108] sm:$0xff]
    %v111 = vld [vmem:[#allocation2 + $0x110] sm:$0xff]
    %v112 = vld [vmem:[#allocation2 + $0x118] sm:$0xff]
    %v113 = vld [vmem:[#allocation2 + $0x120] sm:$0xff]
    %v114 = vld [vmem:[#allocation2 + $0x128] sm:$0xff]
    %v115 = vld [vmem:[#allocation2 + $0x130] sm:$0xff]
    %v116 = vld [vmem:[#allocation2 + $0x138] sm:$0xff]
    %v117 = vld [vmem:[#allocation2 + $0x140] sm:$0xff]
    %v118 = vld [vmem:[#allocation2 + $0x148] sm:$0xff]
    %v119 = vld [vmem:[#allocation2 + $0x150] sm:$0xff]
    %v120 = vld [vmem:[#allocation2 + $0x158] sm:$0xff]
    %v121 = vld [vmem:[#allocation2 + $0x160] sm:$0xff]
    %v122 = vld [vmem:[#allocation2 + $0x168] sm:$0xff]
    %v123 = vld [vmem:[#allocation2 + $0x170] sm:$0xff]
    %v124 = vld [vmem:[#allocation2 + $0x178] sm:$0xff]
    %v125 = vld [vmem:[#allocation2 + $0x180] sm:$0xff]
    %v126 = vld [vmem:[#allocation2 + $0x188] sm:$0xff]
    %v127 = vld [vmem:[#allocation2 + $0x190] sm:$0xff]
    %v128 = vld [vmem:[#allocation2 + $0x198] sm:$0xff]
    %v129 = vld [vmem:[#allocation2 + $0x1a0] sm:$0xff]
    %v130 = vld [vmem:[#allocation2 + $0x1a8] sm:$0xff]
    %v131 = vld [vmem:[#allocation2 + $0x1b0] sm:$0xff]
    %v132 = vld [vmem:[#allocation2 + $0x1b8] sm:$0xff]
    %v133 = vld [vmem:[#allocation2 + $0x1c0] sm:$0xff]
    %v134 = vld [vmem:[#allocation2 + $0x1c8] sm:$0xff]
    %v135 = vld [vmem:[#allocation2 + $0x1d0] sm:$0xff]
    %v136 = vld [vmem:[#allocation2 + $0x1d8] sm:$0xff]
    %v137 = vld [vmem:[#allocation2 + $0x1e0] sm:$0xff]
    %v138 = vld [vmem:[#allocation2 + $0x1e8] sm:$0xff]
    %v139 = vld [vmem:[#allocation2 + $0x1f0] sm:$0xff]
    %v140 = vld [vmem:[#allocation2 + $0x1f8] sm:$0xff]
    %v141 = vld [vmem:[#allocation2 + $0x200] sm:$0xff]
    %v142 = vld [vmem:[#allocation2 + $0x208] sm:$0xff]
    %v143 = vld [vmem:[#allocation2 + $0x210] sm:$0xff]
    %v144 = vld [vmem:[#allocation2 + $0x218] sm:$0xff]
    %v145 = vld [vmem:[#allocation2 + $0x220] sm:$0xff]
    %v146 = vld [vmem:[#allocation2 + $0x228] sm:$0xff]
    %v147 = vld [vmem:[#allocation2 + $0x230] sm:$0xff]
    %v148 = vld [vmem:[#allocation2 + $0x238] sm:$0xff]
    %v149 = vld [vmem:[#allocation2 + $0x240] sm:$0xff]
    %v150 = vld [vmem:[#allocation2 + $0x248] sm:$0xff]
    %v151 = vld [vmem:[#allocation2 + $0x250] sm:$0xff]
    %v152 = vld [vmem:[#allocation2 + $0x258] sm:$0xff]
    %v153 = vld [vmem:[#allocation2 + $0x260] sm:$0xff]
    %v154 = vld [vmem:[#allocation2 + $0x268] sm:$0xff]
    %v155 = vld [vmem:[#allocation2 + $0x270] sm:$0xff]
    %v156 = vld [vmem:[#allocation2 + $0x278] sm:$0xff]
    %v157 = vld [vmem:[#allocation2 + $0x280] sm:$0xff]
    %v158 = vld [vmem:[#allocation2 + $0x288] sm:$0xff]
    %v159 = vld [vmem:[#allocation2 + $0x290] sm:$0xff]
    %v160 = vld [vmem:[#allocation2 + $0x298] sm:$0xff]
    %v161 = vld [vmem:[#allocation2 + $0x2a0] sm:$0xff]
    %v162 = vld [vmem:[#allocation2 + $0x2a8] sm:$0xff]
    %v163 = vld [vmem:[#allocation2 + $0x2b0] sm:$0xff]
    %v164 = vld [vmem:[#allocation2 + $0x2b8] sm:$0xff]
    %v165 = vld [vmem:[#allocation2 + $0x2c0] sm:$0xff]
    %v166 = vld [vmem:[#allocation2 + $0x2c8] sm:$0xff]
    %v167 = vld [vmem:[#allocation2 + $0x2d0] sm:$0xff]
    %v168 = vld [vmem:[#allocation2 + $0x2d8] sm:$0xff]
    %v169 = vld [vmem:[#allocation2 + $0x2e0] sm:$0xff]
    %v170 = vld [vmem:[#allocation2 + $0x2e8] sm:$0xff]
    %v171 = vld [vmem:[#allocation2 + $0x2f0] sm:$0xff]
    %v172 = vld [vmem:[#allocation2 + $0x2f8] sm:$0xff]
    %v173 = vld [vmem:[#allocation2 + $0x300] sm:$0xff]
    %v174 = vld [vmem:[#allocation2 + $0x308] sm:$0xff]
    %v175 = vld [vmem:[#allocation2 + $0x310] sm:$0xff]
    %v176 = vld [vmem:[#allocation2 + $0x318] sm:$0xff]
    %v177 = vld [vmem:[#allocation2 + $0x320] sm:$0xff]
    %v178 = vld [vmem:[#allocation2 + $0x328] sm:$0xff]
    %v179 = vld [vmem:[#allocation2 + $0x330] sm:$0xff]
    %v180 = vld [vmem:[#allocation2 + $0x338] sm:$0xff]
    %v181 = vld [vmem:[#allocation2 + $0x340] sm:$0xff]
    %v182 = vld [vmem:[#allocation2 + $0x348] sm:$0xff]
    %v183 = vld [vmem:[#allocation2 + $0x350] sm:$0xff]
    %v184 = vld [vmem:[#allocation2 + $0x358] sm:$0xff]
    %v185 = vld [vmem:[#allocation2 + $0x360] sm:$0xff]
    %v186 = vld [vmem:[#allocation2 + $0x368] sm:$0xff]
    %v187 = vld [vmem:[#allocation2 + $0x370] sm:$0xff]
    %v188 = vld [vmem:[#allocation2 + $0x378] sm:$0xff]
    %v189 = vld [vmem:[#allocation2 + $0x380] sm:$0xff]
    %v190 = vld [vmem:[#allocation2 + $0x388] sm:$0xff]
    %v191 = vld [vmem:[#allocation2 + $0x390] sm:$0xff]
    %v192 = vld [vmem:[#allocation2 + $0x398] sm:$0xff]
    %v193 = vld [vmem:[#allocation2 + $0x3a0] sm:$0xff]
    %v194 = vld [vmem:[#allocation2 + $0x3a8] sm:$0xff]
    %v195 = vld [vmem:[#allocation2 + $0x3b0] sm:$0xff]
    %v196 = vld [vmem:[#allocation2 + $0x3b8] sm:$0xff]
    %v197 = vld [vmem:[#allocation2 + $0x3c0] sm:$0xff]
    %v198 = vld [vmem:[#allocation2 + $0x3c8] sm:$0xff]
    %v199 = vld [vmem:[#allocation2 + $0x3d0] sm:$0xff]
    %v200 = vld [vmem:[#allocation2 + $0x3d8] sm:$0xff]
    %v201 = vld [vmem:[#allocation2 + $0x3e0] sm:$0xff]
    %v202 = vld [vmem:[#allocation2 + $0x3e8] sm:$0xff]
    %v203 = vld [vmem:[#allocation2 + $0x3f0] sm:$0xff]
    %v204 = vld [vmem:[#allocation2 + $0x3f8] sm:$0xff]
    %v205 = vld [vmem:[#allocation5] sm:$0xff]
    %v206 = vld [vmem:[#allocation5 + $0x8] sm:$0xff]
    %v207 = vld [vmem:[#allocation5 + $0x10] sm:$0xff]
    %v208 = vld [vmem:[#allocation5 + $0x18] sm:$0xff]
    %v209 = vld [vmem:[#allocation5 + $0x20] sm:$0xff]
    %v210 = vld [vmem:[#allocation5 + $0x28] sm:$0xff]
    %v211 = vld [vmem:[#allocation5 + $0x30] sm:$0xff]
    %v212 = vld [vmem:[#allocation5 + $0x38] sm:$0xff]
    %v213 = vld [vmem:[#allocation5 + $0x40] sm:$0xff]
    %v214 = vld [vmem:[#allocation5 + $0x48] sm:$0xff]
    %v215 = vld [vmem:[#allocation5 + $0x50] sm:$0xff]
    %v216 = vld [vmem:[#allocation5 + $0x58] sm:$0xff]
    %v217 = vld [vmem:[#allocation5 + $0x60] sm:$0xff]
    %v218 = vld [vmem:[#allocation5 + $0x68] sm:$0xff]
    %v219 = vld [vmem:[#allocation5 + $0x70] sm:$0xff]
    %v220 = vld [vmem:[#allocation5 + $0x78] sm:$0xff]
    %v221 = vld [vmem:[#allocation7] sm:$0xff]
    %v222 = vld [vmem:[#allocation7 + $0x8] sm:$0xff]
    %v223 = vld [vmem:[#allocation7 + $0x10] sm:$0xff]
    %v224 = vld [vmem:[#allocation7 + $0x18] sm:$0xff]
    %v225 = vld [vmem:[#allocation7 + $0x20] sm:$0xff]
    %v226 = vld [vmem:[#allocation7 + $0x28] sm:$0xff]
    %v227 = vld [vmem:[#allocation7 + $0x30] sm:$0xff]
    %v228 = vld [vmem:[#allocation7 + $0x38] sm:$0xff]
    %v229 = vld [vmem:[#allocation7 + $0x40] sm:$0xff]
    %v230 = vld [vmem:[#allocation7 + $0x48] sm:$0xff]
    %v231 = vld [vmem:[#allocation7 + $0x50] sm:$0xff]
    %v232 = vld [vmem:[#allocation7 + $0x58] sm:$0xff]
    %v233 = vld [vmem:[#allocation7 + $0x60] sm:$0xff]
    %v234 = vld [vmem:[#allocation7 + $0x68] sm:$0xff]
    %v235 = vld [vmem:[#allocation7 + $0x70] sm:$0xff]
    %v236 = vld [vmem:[#allocation7 + $0x78] sm:$0xff]
    %v237 = vld [vmem:[#allocation7 + $0x80] sm:$0xff]
    %v238 = vld [vmem:[#allocation7 + $0x88] sm:$0xff]
    %v239 = vld [vmem:[#allocation7 + $0x90] sm:$0xff]
    %v240 = vld [vmem:[#allocation7 + $0x98] sm:$0xff]
    %v241 = vld [vmem:[#allocation7 + $0xa0] sm:$0xff]
    %v242 = vld [vmem:[#allocation7 + $0xa8] sm:$0xff]
    %v243 = vld [vmem:[#allocation7 + $0xb0] sm:$0xff]
    %v244 = vld [vmem:[#allocation7 + $0xb8] sm:$0xff]
    %v245 = vld [vmem:[#allocation7 + $0xc0] sm:$0xff]
    %v246 = vld [vmem:[#allocation7 + $0xc8] sm:$0xff]
    %v247 = vld [vmem:[#allocation7 + $0xd0] sm:$0xff]
    %v248 = vld [vmem:[#allocation7 + $0xd8] sm:$0xff]
    %v249 = vld [vmem:[#allocation7 + $0xe0] sm:$0xff]
    %v250 = vld [vmem:[#allocation7 + $0xe8] sm:$0xff]
    %v251 = vld [vmem:[#allocation7 + $0xf0] sm:$0xff]
    %v252 = vld [vmem:[#allocation7 + $0xf8] sm:$0xff]
    %v253 = vld [vmem:[#allocation7 + $0x100] sm:$0xff]
    %v254 = vld [vmem:[#allocation7 + $0x108] sm:$0xff]
    %v255 = vld [vmem:[#allocation7 + $0x110] sm:$0xff]
    %v256 = vld [vmem:[#allocation7 + $0x118] sm:$0xff]
    %v257 = vld [vmem:[#allocation7 + $0x120] sm:$0xff]
    %v258 = vld [vmem:[#allocation7 + $0x128] sm:$0xff]
    %v259 = vld [vmem:[#allocation7 + $0x130] sm:$0xff]
    %v260 = vld [vmem:[#allocation7 + $0x138] sm:$0xff]
    %v261 = vld [vmem:[#allocation7 + $0x140] sm:$0xff]
    %v262 = vld [vmem:[#allocation7 + $0x148] sm:$0xff]
    %v263 = vld [vmem:[#allocation7 + $0x150] sm:$0xff]
    %v264 = vld [vmem:[#allocation7 + $0x158] sm:$0xff]
    %v265 = vld [vmem:[#allocation7 + $0x160] sm:$0xff]
    %v266 = vld [vmem:[#allocation7 + $0x168] sm:$0xff]
    %v267 = vld [vmem:[#allocation7 + $0x170] sm:$0xff]
    %v268 = vld [vmem:[#allocation7 + $0x178] sm:$0xff]
    %v269 = vld [vmem:[#allocation7 + $0x180] sm:$0xff]
    %v270 = vld [vmem:[#allocation7 + $0x188] sm:$0xff]
    %v271 = vld [vmem:[#allocation7 + $0x190] sm:$0xff]
    %v272 = vld [vmem:[#allocation7 + $0x198] sm:$0xff]
    %v273 = vld [vmem:[#allocation7 + $0x1a0] sm:$0xff]
    %v274 = vld [vmem:[#allocation7 + $0x1a8] sm:$0xff]
    %v275 = vld [vmem:[#allocation7 + $0x1b0] sm:$0xff]
    %v276 = vld [vmem:[#allocation7 + $0x1b8] sm:$0xff]
    %v277 = vld [vmem:[#allocation7 + $0x1c0] sm:$0xff]
    %v278 = vld [vmem:[#allocation7 + $0x1c8] sm:$0xff]
    %v279 = vld [vmem:[#allocation7 + $0x1d0] sm:$0xff]
    %v280 = vld [vmem:[#allocation7 + $0x1d8] sm:$0xff]
    %v281 = vld [vmem:[#allocation7 + $0x1e0] sm:$0xff]
    %v282 = vld [vmem:[#allocation7 + $0x1e8] sm:$0xff]
    %v283 = vld [vmem:[#allocation7 + $0x1f0] sm:$0xff]
    %v284 = vld [vmem:[#allocation7 + $0x1f8] sm:$0xff]
    %v285 = vld [vmem:[%s3] sm:$0x1]
    %v287 = vlaneseq
    %v288 = vshrl.u32 %v287, 7
    %v289 = vsub.s32 0, %v288
    %v290 = vrot.slane %v285, %v289
    %v292 = vld [vmem:[%s5] sm:$0xf]
    %v294 = vlaneseq
    %v295 = vshrl.u32 %v294, 7
    %v296 = vsub.s32 0, %v295
    %v297 = vrot.slane %v292, %v296
    %v298 = vlaneseq
    %v299 = vshrl.u32 %v298, 7
    %v300 = vsub.s32 1, %v299
    %v301 = vrot.slane %v292, %v300
    %v302 = vlaneseq
    %v303 = vshrl.u32 %v302, 7
    %v304 = vsub.s32 2, %v303
    %v305 = vrot.slane %v292, %v304
    %v306 = vlaneseq
    %v307 = vshrl.u32 %v306, 7
    %v308 = vsub.s32 3, %v307
    %v309 = vrot.slane %v292, %v308
    %v314 = vld [vmem:[%s0] sm:$0xff]
    %v315 = vld [vmem:[%s0 + $0x8] sm:$0xff]
    %v316 = vld [vmem:[%s0 + $0x10] sm:$0xff]
    %v317 = vld [vmem:[%s0 + $0x18] sm:$0xff]
    %318 = vmatprep.subr.mxu0 %v78
    %319 = vmatpush1.msra.mxu0 %v77
    %320 = vmatprep.subr.mxu0 %v82
    %321 = vmatpush1.msra.mxu0 %v81
    %322 = vmatprep.subr.mxu0 %v86
    %323 = vmatpush1.msra.mxu0 %v85
    %324 = vmatprep.subr.mxu0 %v90
    %325 = vmatpush1.msra.mxu0 %v89
    %326 = vmatprep.subr.mxu0 %v94
    %327 = vmatpush1.msra.mxu0 %v93
    %328 = vmatprep.subr.mxu0 %v98
    %329 = vmatpush1.msra.mxu0 %v97
    %330 = vmatprep.subr.mxu0 %v102
    %331 = vmatpush1.msra.mxu0 %v101
    %332 = vmatprep.subr.mxu0 %v106
    %333 = vmatpush1.msra.mxu0 %v105
    %334 = vmatprep.subr.mxu0 %v110
    %335 = vmatpush1.msra.mxu0 %v109
    %336 = vmatprep.subr.mxu0 %v114
    %337 = vmatpush1.msra.mxu0 %v113
    %338 = vmatprep.subr.mxu0 %v118
    %339 = vmatpush1.msra.mxu0 %v117
    %340 = vmatprep.subr.mxu0 %v122
    %341 = vmatpush1.msra.mxu0 %v121
    %342 = vmatprep.subr.mxu0 %v126
    %343 = vmatpush1.msra.mxu0 %v125
    %344 = vmatprep.subr.mxu0 %v130
    %345 = vmatpush1.msra.mxu0 %v129
    %346 = vmatprep.subr.mxu0 %v134
    %347 = vmatpush1.msra.mxu0 %v133
    %348 = vmatprep.subr.mxu0 %v138
    %349 = vmatpush1.msra.mxu0 %v137
    %350 = vmatprep.subr.mxu0 %v142
    %351 = vmatpush1.msra.mxu0 %v141
    %352 = vmatprep.subr.mxu0 %v146
    %353 = vmatpush1.msra.mxu0 %v145
    %354 = vmatprep.subr.mxu0 %v150
    %355 = vmatpush1.msra.mxu0 %v149
    %356 = vmatprep.subr.mxu0 %v154
    %357 = vmatpush1.msra.mxu0 %v153
    %358 = vmatprep.subr.mxu0 %v158
    %359 = vmatpush1.msra.mxu0 %v157
    %360 = vmatprep.subr.mxu0 %v162
    %361 = vmatpush1.msra.mxu0 %v161
    %362 = vmatprep.subr.mxu0 %v166
    %363 = vmatpush1.msra.mxu0 %v165
    %364 = vmatprep.subr.mxu0 %v170
    %365 = vmatpush1.msra.mxu0 %v169
    %366 = vmatprep.subr.mxu0 %v174
    %367 = vmatpush1.msra.mxu0 %v173
    %368 = vmatprep.subr.mxu0 %v178
    %369 = vmatpush1.msra.mxu0 %v177
    %370 = vmatprep.subr.mxu0 %v182
    %371 = vmatpush1.msra.mxu0 %v181
    %372 = vmatprep.subr.mxu0 %v186
    %373 = vmatpush1.msra.mxu0 %v185
    %374 = vmatprep.subr.mxu0 %v190
    %375 = vmatpush1.msra.mxu0 %v189
    %376 = vmatprep.subr.mxu0 %v194
    %377 = vmatpush1.msra.mxu0 %v193
    %378 = vmatprep.subr.mxu0 %v198
    %379 = vmatpush1.msra.mxu0 %v197
    %380 = vmatprep.subr.mxu0 %v202
    %381 = vmatpush1.msra.mxu0 %v201
    %382 = vmatprep.mubr.f32.mxu0 0.0
    %383 = vmatmul.mubr.f32.gmra.mrb[0].mxu0 0.0
    %v384 = vpop.f32.mrb[0].mxu0
    %v385 = vadd.f32 0.0, %v384
    %v386 = vpop.f32.mrb[0].mxu0
    %v387 = vadd.f32 0.0, %v386
    %388 = vdwg.mxu0
    %389 = vmatprep.subr.mxu0 %v80
    %390 = vmatpush1.msra.mxu0 %v79
    %391 = vmatprep.subr.mxu0 %v84
    %392 = vmatpush1.msra.mxu0 %v83
    %393 = vmatprep.subr.mxu0 %v88
    %394 = vmatpush1.msra.mxu0 %v87
    %395 = vmatprep.subr.mxu0 %v92
    %396 = vmatpush1.msra.mxu0 %v91
    %397 = vmatprep.subr.mxu0 %v96
    %398 = vmatpush1.msra.mxu0 %v95
    %399 = vmatprep.subr.mxu0 %v100
    %400 = vmatpush1.msra.mxu0 %v99
    %401 = vmatprep.subr.mxu0 %v104
    %402 = vmatpush1.msra.mxu0 %v103
    %403 = vmatprep.subr.mxu0 %v108
    %404 = vmatpush1.msra.mxu0 %v107
    %405 = vmatprep.subr.mxu0 %v112
    %406 = vmatpush1.msra.mxu0 %v111
    %407 = vmatprep.subr.mxu0 %v116
    %408 = vmatpush1.msra.mxu0 %v115
    %409 = vmatprep.subr.mxu0 %v120
    %410 = vmatpush1.msra.mxu0 %v119
    %411 = vmatprep.subr.mxu0 %v124
    %412 = vmatpush1.msra.mxu0 %v123
    %413 = vmatprep.subr.mxu0 %v128
    %414 = vmatpush1.msra.mxu0 %v127
    %415 = vmatprep.subr.mxu0 %v132
    %416 = vmatpush1.msra.mxu0 %v131
    %417 = vmatprep.subr.mxu0 %v136
    %418 = vmatpush1.msra.mxu0 %v135
    %419 = vmatprep.subr.mxu0 %v140
    %420 = vmatpush1.msra.mxu0 %v139
    %421 = vmatprep.subr.mxu0 %v144
    %422 = vmatpush1.msra.mxu0 %v143
    %423 = vmatprep.subr.mxu0 %v148
    %424 = vmatpush1.msra.mxu0 %v147
    %425 = vmatprep.subr.mxu0 %v152
    %426 = vmatpush1.msra.mxu0 %v151
    %427 = vmatprep.subr.mxu0 %v156
    %428 = vmatpush1.msra.mxu0 %v155
    %429 = vmatprep.subr.mxu0 %v160
    %430 = vmatpush1.msra.mxu0 %v159
    %431 = vmatprep.subr.mxu0 %v164
    %432 = vmatpush1.msra.mxu0 %v163
    %433 = vmatprep.subr.mxu0 %v168
    %434 = vmatpush1.msra.mxu0 %v167
    %435 = vmatprep.subr.mxu0 %v172
    %436 = vmatpush1.msra.mxu0 %v171
    %437 = vmatprep.subr.mxu0 %v176
    %438 = vmatpush1.msra.mxu0 %v175
    %439 = vmatprep.subr.mxu0 %v180
    %440 = vmatpush1.msra.mxu0 %v179
    %441 = vmatprep.subr.mxu0 %v184
    %442 = vmatpush1.msra.mxu0 %v183
    %443 = vmatprep.subr.mxu0 %v188
    %444 = vmatpush1.msra.mxu0 %v187
    %445 = vmatprep.subr.mxu0 %v192
    %446 = vmatpush1.msra.mxu0 %v191
    %447 = vmatprep.subr.mxu0 %v196
    %448 = vmatpush1.msra.mxu0 %v195
    %449 = vmatprep.subr.mxu0 %v200
    %450 = vmatpush1.msra.mxu0 %v199
    %451 = vmatprep.subr.mxu0 %v204
    %452 = vmatpush1.msra.mxu0 %v203
    %453 = vmatprep.mubr.f32.mxu0 0.0
    %454 = vmatmul.mubr.f32.gmra.mrb[0].mxu0 0.0
    %v455 = vpop.f32.mrb[0].mxu0
    %v456 = vadd.f32 0.0, %v455
    %v457 = vpop.f32.mrb[0].mxu0
    %v458 = vadd.f32 0.0, %v457
    %459 = vdwg.mxu0
    %v460 = vadd.f32 %v314, %v385
    %v461 = vadd.f32 %v315, %v387
    %v462 = vadd.f32 %v316, %v456
    %v463 = vadd.f32 %v317, %v458
    %v464 = vxor.u32 %v460, 2147483648
    %v465 = vxor.u32 %v461, 2147483648
    %v466 = vxor.u32 %v462, 2147483648
    %v467 = vmul.f32 %v464, 1.442695
    %v468 = vpow.pop %v467
    %v469 = vmul.f32 %v465, 1.442695
    %v470 = vpow.pop %v469
    %v471 = vmul.f32 %v466, 1.442695
    %v472 = vpow.pop %v471
    %v473 = vadd.f32 %v468, 1.0
    %v474 = vadd.f32 %v470, 1.0
    %v475 = vadd.f32 %v472, 1.0
    %v476 = vrcp.pop %v473
    %v477 = vmul.f32 1.0, %v476
    %v478 = vrcp.pop %v474
    %v479 = vmul.f32 1.0, %v478
    %v480 = vrcp.pop %v475
    %v481 = vmul.f32 1.0, %v480
    %v482 = vtanh.pop %v463
    %v483 = vmul.f32 %v477, 0.0
    %v484 = vmul.f32 %v479, %v482
    %v485 = vadd.f32 %v483, %v484
    %v486 = vtanh.pop %v485
    %v487 = vmul.f32 %v486, %v481
    %488 = vmatprep.subr.mxu0 0.0
    %489 = vmatpush1.msra.mxu0 %v205
    %490 = vmatprep.subr.mxu0 0.0
    %491 = vmatpush1.msra.mxu0 %v206
    %492 = vmatprep.subr.mxu0 0.0
    %493 = vmatpush1.msra.mxu0 %v207
    %494 = vmatprep.subr.mxu0 0.0
    %495 = vmatpush1.msra.mxu0 %v208
    %496 = vmatprep.subr.mxu0 0.0
    %497 = vmatpush1.msra.mxu0 %v209
    %498 = vmatprep.subr.mxu0 0.0
    %499 = vmatpush1.msra.mxu0 %v210
    %500 = vmatprep.subr.mxu0 0.0
    %501 = vmatpush1.msra.mxu0 %v211
    %502 = vmatprep.subr.mxu0 0.0
    %503 = vmatpush1.msra.mxu0 %v212
    %504 = vmatprep.subr.mxu0 0.0
    %505 = vmatpush1.msra.mxu0 %v213
    %506 = vmatprep.subr.mxu0 0.0
    %507 = vmatpush1.msra.mxu0 %v214
    %508 = vmatprep.subr.mxu0 0.0
    %509 = vmatpush1.msra.mxu0 %v215
    %510 = vmatprep.subr.mxu0 0.0
    %511 = vmatpush1.msra.mxu0 %v216
    %512 = vmatprep.subr.mxu0 0.0
    %513 = vmatpush1.msra.mxu0 %v217
    %514 = vmatprep.subr.mxu0 0.0
    %515 = vmatpush1.msra.mxu0 %v218
    %516 = vmatprep.subr.mxu0 0.0
    %517 = vmatpush1.msra.mxu0 %v219
    %518 = vmatprep.subr.mxu0 0.0
    %519 = vmatpush1.msra.mxu0 %v220
    %520 = vmatprep.subr.mxu0 0.0
    %521 = vmatpush1.msra.mxu0 0.0
    %522 = vmatprep.subr.mxu0 0.0
    %523 = vmatpush1.msra.mxu0 0.0
    %524 = vmatprep.subr.mxu0 0.0
    %525 = vmatpush1.msra.mxu0 0.0
    %526 = vmatprep.subr.mxu0 0.0
    %527 = vmatpush1.msra.mxu0 0.0
    %528 = vmatprep.subr.mxu0 0.0
    %529 = vmatpush1.msra.mxu0 0.0
    %530 = vmatprep.subr.mxu0 0.0
    %531 = vmatpush1.msra.mxu0 0.0
    %532 = vmatprep.subr.mxu0 0.0
    %533 = vmatpush1.msra.mxu0 0.0
    %534 = vmatprep.subr.mxu0 0.0
    %535 = vmatpush1.msra.mxu0 0.0
    %536 = vmatprep.subr.mxu0 0.0
    %537 = vmatpush1.msra.mxu0 0.0
    %538 = vmatprep.subr.mxu0 0.0
    %539 = vmatpush1.msra.mxu0 0.0
    %540 = vmatprep.subr.mxu0 0.0
    %541 = vmatpush1.msra.mxu0 0.0
    %542 = vmatprep.subr.mxu0 0.0
    %543 = vmatpush1.msra.mxu0 0.0
    %544 = vmatprep.subr.mxu0 0.0
    %545 = vmatpush1.msra.mxu0 0.0
    %546 = vmatprep.subr.mxu0 0.0
    %547 = vmatpush1.msra.mxu0 0.0
    %548 = vmatprep.subr.mxu0 0.0
    %549 = vmatpush1.msra.mxu0 0.0
    %550 = vmatprep.subr.mxu0 0.0
    %551 = vmatpush1.msra.mxu0 0.0
    %552 = vmatprep.mubr.f32.mxu0 0.0
    %553 = vmatmul.mubr.f32.gmra.mrb[0].mxu0 %v485
    %v554 = vpop.f32.mrb[0].mxu0
    %v555 = vadd.f32 %v290, %v554
    %v556 = vpop.f32.mrb[0].mxu0
    %557 = vdwg.mxu0
    %v558 = vmax.f32 %v555, 0.0
    %559 = vmatprep.subr.mxu0 %v222
    %560 = vmatpush1.msra.mxu0 %v221
    %561 = vmatprep.subr.mxu0 %v226
    %562 = vmatpush1.msra.mxu0 %v225
    %563 = vmatprep.subr.mxu0 %v230
    %564 = vmatpush1.msra.mxu0 %v229
    %565 = vmatprep.subr.mxu0 %v234
    %566 = vmatpush1.msra.mxu0 %v233
    %567 = vmatprep.subr.mxu0 %v238
    %568 = vmatpush1.msra.mxu0 %v237
    %569 = vmatprep.subr.mxu0 %v242
    %570 = vmatpush1.msra.mxu0 %v241
    %571 = vmatprep.subr.mxu0 %v246
    %572 = vmatpush1.msra.mxu0 %v245
    %573 = vmatprep.subr.mxu0 %v250
    %574 = vmatpush1.msra.mxu0 %v249
    %575 = vmatprep.subr.mxu0 %v254
    %576 = vmatpush1.msra.mxu0 %v253
    %577 = vmatprep.subr.mxu0 %v258
    %578 = vmatpush1.msra.mxu0 %v257
    %579 = vmatprep.subr.mxu0 %v262
    %580 = vmatpush1.msra.mxu0 %v261
    %581 = vmatprep.subr.mxu0 %v266
    %582 = vmatpush1.msra.mxu0 %v265
    %583 = vmatprep.subr.mxu0 %v270
    %584 = vmatpush1.msra.mxu0 %v269
    %585 = vmatprep.subr.mxu0 %v274
    %586 = vmatpush1.msra.mxu0 %v273
    %587 = vmatprep.subr.mxu0 %v278
    %588 = vmatpush1.msra.mxu0 %v277
    %589 = vmatprep.subr.mxu0 %v282
    %590 = vmatpush1.msra.mxu0 %v281
    %591 = vmatprep.subr.mxu0 0.0
    %592 = vmatpush1.msra.mxu0 0.0
    %593 = vmatprep.subr.mxu0 0.0
    %594 = vmatpush1.msra.mxu0 0.0
    %595 = vmatprep.subr.mxu0 0.0
    %596 = vmatpush1.msra.mxu0 0.0
    %597 = vmatprep.subr.mxu0 0.0
    %598 = vmatpush1.msra.mxu0 0.0
    %599 = vmatprep.subr.mxu0 0.0
    %600 = vmatpush1.msra.mxu0 0.0
    %601 = vmatprep.subr.mxu0 0.0
    %602 = vmatpush1.msra.mxu0 0.0
    %603 = vmatprep.subr.mxu0 0.0
    %604 = vmatpush1.msra.mxu0 0.0
    %605 = vmatprep.subr.mxu0 0.0
    %606 = vmatpush1.msra.mxu0 0.0
    %607 = vmatprep.subr.mxu0 0.0
    %608 = vmatpush1.msra.mxu0 0.0
    %609 = vmatprep.subr.mxu0 0.0
    %610 = vmatpush1.msra.mxu0 0.0
    %611 = vmatprep.subr.mxu0 0.0
    %612 = vmatpush1.msra.mxu0 0.0
    %613 = vmatprep.subr.mxu0 0.0
    %614 = vmatpush1.msra.mxu0 0.0
    %615 = vmatprep.subr.mxu0 0.0
    %616 = vmatpush1.msra.mxu0 0.0
    %617 = vmatprep.subr.mxu0 0.0
    %618 = vmatpush1.msra.mxu0 0.0
    %619 = vmatprep.subr.mxu0 0.0
    %620 = vmatpush1.msra.mxu0 0.0
    %621 = vmatprep.subr.mxu0 0.0
    %622 = vmatpush1.msra.mxu0 0.0
    %623 = vmatprep.mubr.f32.mxu0 0.0
    %624 = vmatmul.mubr.f32.gmra.mrb[0].mxu0 %v558
    %v625 = vpop.f32.mrb[0].mxu0
    %v626 = vadd.f32 %v297, %v625
    %v627 = vpop.f32.mrb[0].mxu0
    %v628 = vadd.f32 %v301, %v627
    %629 = vdwg.mxu0
    %630 = vmatprep.subr.mxu0 %v224
    %631 = vmatpush1.msra.mxu0 %v223
    %632 = vmatprep.subr.mxu0 %v228
    %633 = vmatpush1.msra.mxu0 %v227
    %634 = vmatprep.subr.mxu0 %v232
    %635 = vmatpush1.msra.mxu0 %v231
    %636 = vmatprep.subr.mxu0 %v236
    %637 = vmatpush1.msra.mxu0 %v235
    %638 = vmatprep.subr.mxu0 %v240
    %639 = vmatpush1.msra.mxu0 %v239
    %640 = vmatprep.subr.mxu0 %v244
    %641 = vmatpush1.msra.mxu0 %v243
    %642 = vmatprep.subr.mxu0 %v248
    %643 = vmatpush1.msra.mxu0 %v247
    %644 = vmatprep.subr.mxu0 %v252
    %645 = vmatpush1.msra.mxu0 %v251
    %646 = vmatprep.subr.mxu0 %v256
    %647 = vmatpush1.msra.mxu0 %v255
    %648 = vmatprep.subr.mxu0 %v260
    %649 = vmatpush1.msra.mxu0 %v259
    %650 = vmatprep.subr.mxu0 %v264
    %651 = vmatpush1.msra.mxu0 %v263
    %652 = vmatprep.subr.mxu0 %v268
    %653 = vmatpush1.msra.mxu0 %v267
    %654 = vmatprep.subr.mxu0 %v272
    %655 = vmatpush1.msra.mxu0 %v271
    %656 = vmatprep.subr.mxu0 %v276
    %657 = vmatpush1.msra.mxu0 %v275
    %658 = vmatprep.subr.mxu0 %v280
    %659 = vmatpush1.msra.mxu0 %v279
    %660 = vmatprep.subr.mxu0 %v284
    %661 = vmatpush1.msra.mxu0 %v283
    %662 = vmatprep.subr.mxu0 0.0
    %663 = vmatpush1.msra.mxu0 0.0
    %664 = vmatprep.subr.mxu0 0.0
    %665 = vmatpush1.msra.mxu0 0.0
    %666 = vmatprep.subr.mxu0 0.0
    %667 = vmatpush1.msra.mxu0 0.0
    %668 = vmatprep.subr.mxu0 0.0
    %669 = vmatpush1.msra.mxu0 0.0
    %670 = vmatprep.subr.mxu0 0.0
    %671 = vmatpush1.msra.mxu0 0.0
    %672 = vmatprep.subr.mxu0 0.0
    %673 = vmatpush1.msra.mxu0 0.0
    %674 = vmatprep.subr.mxu0 0.0
    %675 = vmatpush1.msra.mxu0 0.0
    %676 = vmatprep.subr.mxu0 0.0
    %677 = vmatpush1.msra.mxu0 0.0
    %678 = vmatprep.subr.mxu0 0.0
    %679 = vmatpush1.msra.mxu0 0.0
    %680 = vmatprep.subr.mxu0 0.0
    %681 = vmatpush1.msra.mxu0 0.0
    %682 = vmatprep.subr.mxu0 0.0
    %683 = vmatpush1.msra.mxu0 0.0
    %684 = vmatprep.subr.mxu0 0.0
    %685 = vmatpush1.msra.mxu0 0.0
    %686 = vmatprep.subr.mxu0 0.0
    %687 = vmatpush1.msra.mxu0 0.0
    %688 = vmatprep.subr.mxu0 0.0
    %689 = vmatpush1.msra.mxu0 0.0
    %690 = vmatprep.subr.mxu0 0.0
    %691 = vmatpush1.msra.mxu0 0.0
    %692 = vmatprep.subr.mxu0 0.0
    %693 = vmatpush1.msra.mxu0 0.0
    %694 = vmatprep.mubr.f32.mxu0 0.0
    %695 = vmatmul.mubr.f32.gmra.mrb[0].mxu0 %v558
    %v696 = vpop.f32.mrb[0].mxu0
    %v697 = vadd.f32 %v305, %v696
    %v698 = vpop.f32.mrb[0].mxu0
    %v699 = vadd.f32 %v309, %v698
    %700 = vdwg.mxu0
    %vm701 = vcmask 23552
    %v702 = vsel %vm701, %v699, -inf
    %703 = vmax.xlane.f32.xlu0 %v702
    %v704 = vpop.xlane.xlu0 %703
    %v705 = vsub.f32 %v699, %v704
    %v706 = vmul.f32 %v705, 1.442695
    %v707 = vpow.pop %v706
    %v708 = vsel %vm701, %v707, 0.0
    %709 = vadd.xlane.f32.xlu0 %v708
    %v710 = vpop.xlane.xlu0 %709
    %v711 = vrcp.pop %v710
    %v712 = vmul.f32 %v707, %v711
    %714 = vset.pattern.permute.xlu0 0
    %715 = vperm.xlu0 %714, %v712
    %v716 = vpop.permute.xlu0 %715
    %v718 = vmul.f32 %v716, %v626
    %719 = vset.pattern.permute.xlu0 1
    %720 = vperm.xlu0 %719, %v712
    %v721 = vpop.permute.xlu0 %720
    %v723 = vmul.f32 %v721, %v628
    %v724 = vadd.f32 %v718, %v723
    %725 = vset.pattern.permute.xlu0 2
    %726 = vperm.xlu0 %725, %v712
    %v727 = vpop.permute.xlu0 %726
    %v729 = vmul.f32 %v727, %v697
    %v730 = vadd.f32 %v724, %v729
    %s731 = scalar_lea.vmem %s0, 32
    %v732 = vld [vmem:[%s731] sm:$0xff]
    %v733 = vld [vmem:[%s731 + $0x8] sm:$0xff]
    %v734 = vld [vmem:[%s731 + $0x10] sm:$0xff]
    %v735 = vld [vmem:[%s731 + $0x18] sm:$0xff]
    %736 = vmatprep.subr.mxu0 %v78
    %737 = vmatpush1.msra.mxu0 %v77
    %738 = vmatprep.subr.mxu0 %v82
    %739 = vmatpush1.msra.mxu0 %v81
    %740 = vmatprep.subr.mxu0 %v86
    %741 = vmatpush1.msra.mxu0 %v85
    %742 = vmatprep.subr.mxu0 %v90
    %743 = vmatpush1.msra.mxu0 %v89
    %744 = vmatprep.subr.mxu0 %v94
    %745 = vmatpush1.msra.mxu0 %v93
    %746 = vmatprep.subr.mxu0 %v98
    %747 = vmatpush1.msra.mxu0 %v97
    %748 = vmatprep.subr.mxu0 %v102
    %749 = vmatpush1.msra.mxu0 %v101
    %750 = vmatprep.subr.mxu0 %v106
    %751 = vmatpush1.msra.mxu0 %v105
    %752 = vmatprep.subr.mxu0 %v110
    %753 = vmatpush1.msra.mxu0 %v109
    %754 = vmatprep.subr.mxu0 %v114
    %755 = vmatpush1.msra.mxu0 %v113
    %756 = vmatprep.subr.mxu0 %v118
    %757 = vmatpush1.msra.mxu0 %v117
    %758 = vmatprep.subr.mxu0 %v122
    %759 = vmatpush1.msra.mxu0 %v121
    %760 = vmatprep.subr.mxu0 %v126
    %761 = vmatpush1.msra.mxu0 %v125
    %762 = vmatprep.subr.mxu0 %v130
    %763 = vmatpush1.msra.mxu0 %v129
    %764 = vmatprep.subr.mxu0 %v134
    %765 = vmatpush1.msra.mxu0 %v133
    %766 = vmatprep.subr.mxu0 %v138
    %767 = vmatpush1.msra.mxu0 %v137
    %768 = vmatprep.subr.mxu0 %v142
    %769 = vmatpush1.msra.mxu0 %v141
    %770 = vmatprep.subr.mxu0 %v146
    %771 = vmatpush1.msra.mxu0 %v145
    %772 = vmatprep.subr.mxu0 %v150
    %773 = vmatpush1.msra.mxu0 %v149
    %774 = vmatprep.subr.mxu0 %v154
    %775 = vmatpush1.msra.mxu0 %v153
    %776 = vmatprep.subr.mxu0 %v158
    %777 = vmatpush1.msra.mxu0 %v157
    %778 = vmatprep.subr.mxu0 %v162
    %779 = vmatpush1.msra.mxu0 %v161
    %780 = vmatprep.subr.mxu0 %v166
    %781 = vmatpush1.msra.mxu0 %v165
    %782 = vmatprep.subr.mxu0 %v170
    %783 = vmatpush1.msra.mxu0 %v169
    %784 = vmatprep.subr.mxu0 %v174
    %785 = vmatpush1.msra.mxu0 %v173
    %786 = vmatprep.subr.mxu0 %v178
    %787 = vmatpush1.msra.mxu0 %v177
    %788 = vmatprep.subr.mxu0 %v182
    %789 = vmatpush1.msra.mxu0 %v181
    %790 = vmatprep.subr.mxu0 %v186
    %791 = vmatpush1.msra.mxu0 %v185
    %792 = vmatprep.subr.mxu0 %v190
    %793 = vmatpush1.msra.mxu0 %v189
    %794 = vmatprep.subr.mxu0 %v194
    %795 = vmatpush1.msra.mxu0 %v193
    %796 = vmatprep.subr.mxu0 %v198
    %797 = vmatpush1.msra.mxu0 %v197
    %798 = vmatprep.subr.mxu0 %v202
    %799 = vmatpush1.msra.mxu0 %v201
    %800 = vmatprep.mubr.f32.mxu0 %v730
    %801 = vmatmul.mubr.f32.gmra.mrb[0].mxu0 %v487
    %v802 = vpop.f32.mrb[0].mxu0
    %v803 = vadd.f32 0.0, %v802
    %v804 = vpop.f32.mrb[0].mxu0
    %v805 = vadd.f32 0.0, %v804
    %806 = vdwg.mxu0
    %807 = vmatprep.subr.mxu0 %v80
    %808 = vmatpush1.msra.mxu0 %v79
    %809 = vmatprep.subr.mxu0 %v84
    %810 = vmatpush1.msra.mxu0 %v83
    %811 = vmatprep.subr.mxu0 %v88
    %812 = vmatpush1.msra.mxu0 %v87
    %813 = vmatprep.subr.mxu0 %v92
    %814 = vmatpush1.msra.mxu0 %v91
    %815 = vmatprep.subr.mxu0 %v96
    %816 = vmatpush1.msra.mxu0 %v95
    %817 = vmatprep.subr.mxu0 %v100
    %818 = vmatpush1.msra.mxu0 %v99
    %819 = vmatprep.subr.mxu0 %v104
    %820 = vmatpush1.msra.mxu0 %v103
    %821 = vmatprep.subr.mxu0 %v108
    %822 = vmatpush1.msra.mxu0 %v107
    %823 = vmatprep.subr.mxu0 %v112
    %824 = vmatpush1.msra.mxu0 %v111
    %825 = vmatprep.subr.mxu0 %v116
    %826 = vmatpush1.msra.mxu0 %v115
    %827 = vmatprep.subr.mxu0 %v120
    %828 = vmatpush1.msra.mxu0 %v119
    %829 = vmatprep.subr.mxu0 %v124
    %830 = vmatpush1.msra.mxu0 %v123
    %831 = vmatprep.subr.mxu0 %v128
    %832 = vmatpush1.msra.mxu0 %v127
    %833 = vmatprep.subr.mxu0 %v132
    %834 = vmatpush1.msra.mxu0 %v131
    %835 = vmatprep.subr.mxu0 %v136
    %836 = vmatpush1.msra.mxu0 %v135
    %837 = vmatprep.subr.mxu0 %v140
    %838 = vmatpush1.msra.mxu0 %v139
    %839 = vmatprep.subr.mxu0 %v144
    %840 = vmatpush1.msra.mxu0 %v143
    %841 = vmatprep.subr.mxu0 %v148
    %842 = vmatpush1.msra.mxu0 %v147
    %843 = vmatprep.subr.mxu0 %v152
    %844 = vmatpush1.msra.mxu0 %v151
    %845 = vmatprep.subr.mxu0 %v156
    %846 = vmatpush1.msra.mxu0 %v155
    %847 = vmatprep.subr.mxu0 %v160
    %848 = vmatpush1.msra.mxu0 %v159
    %849 = vmatprep.subr.mxu0 %v164
    %850 = vmatpush1.msra.mxu0 %v163
    %851 = vmatprep.subr.mxu0 %v168
    %852 = vmatpush1.msra.mxu0 %v167
    %853 = vmatprep.subr.mxu0 %v172
    %854 = vmatpush1.msra.mxu0 %v171
    %855 = vmatprep.subr.mxu0 %v176
    %856 = vmatpush1.msra.mxu0 %v175
    %857 = vmatprep.subr.mxu0 %v180
    %858 = vmatpush1.msra.mxu0 %v179
    %859 = vmatprep.subr.mxu0 %v184
    %860 = vmatpush1.msra.mxu0 %v183
    %861 = vmatprep.subr.mxu0 %v188
    %862 = vmatpush1.msra.mxu0 %v187
    %863 = vmatprep.subr.mxu0 %v192
    %864 = vmatpush1.msra.mxu0 %v191
    %865 = vmatprep.subr.mxu0 %v196
    %866 = vmatpush1.msra.mxu0 %v195
    %867 = vmatprep.subr.mxu0 %v200
    %868 = vmatpush1.msra.mxu0 %v199
    %869 = vmatprep.subr.mxu0 %v204
    %870 = vmatpush1.msra.mxu0 %v203
    %871 = vmatprep.mubr.f32.mxu0 %v730
    %872 = vmatmul.mubr.f32.gmra.mrb[0].mxu0 %v487
    %v873 = vpop.f32.mrb[0].mxu0
    %v874 = vadd.f32 0.0, %v873
    %v875 = vpop.f32.mrb[0].mxu0
    %v876 = vadd.f32 0.0, %v875
    %877 = vdwg.mxu0
    %v878 = vadd.f32 %v732, %v803
    %v879 = vadd.f32 %v733, %v805
    %v880 = vadd.f32 %v734, %v874
    %v881 = vadd.f32 %v735, %v876
    %v882 = vxor.u32 %v878, 2147483648
    %v883 = vxor.u32 %v879, 2147483648
    %v884 = vxor.u32 %v880, 2147483648
    %v885 = vmul.f32 %v882, 1.442695
    %v886 = vpow.pop %v885
    %v887 = vmul.f32 %v883, 1.442695
    %v888 = vpow.pop %v887
    %v889 = vmul.f32 %v884, 1.442695
    %v890 = vpow.pop %v889
    %v891 = vadd.f32 %v886, 1.0
    %v892 = vadd.f32 %v888, 1.0
    %v893 = vadd.f32 %v890, 1.0
    %v894 = vrcp.pop %v891
    %v895 = vmul.f32 1.0, %v894
    %v896 = vrcp.pop %v892
    %v897 = vmul.f32 1.0, %v896
    %v898 = vrcp.pop %v893
    %v899 = vmul.f32 1.0, %v898
    %v900 = vtanh.pop %v881
    %v901 = vmul.f32 %v895, %v485
    %v902 = vmul.f32 %v897, %v900
    %v903 = vadd.f32 %v901, %v902
    %v904 = vtanh.pop %v903
    %v905 = vmul.f32 %v904, %v899
    %906 = vmatprep.subr.mxu0 0.0
    %907 = vmatpush1.msra.mxu0 %v205
    %908 = vmatprep.subr.mxu0 0.0
    %909 = vmatpush1.msra.mxu0 %v206
    %910 = vmatprep.subr.mxu0 0.0
    %911 = vmatpush1.msra.mxu0 %v207
    %912 = vmatprep.subr.mxu0 0.0
    %913 = vmatpush1.msra.mxu0 %v208
    %914 = vmatprep.subr.mxu0 0.0
    %915 = vmatpush1.msra.mxu0 %v209
    %916 = vmatprep.subr.mxu0 0.0
    %917 = vmatpush1.msra.mxu0 %v210
    %918 = vmatprep.subr.mxu0 0.0
    %919 = vmatpush1.msra.mxu0 %v211
    %920 = vmatprep.subr.mxu0 0.0
    %921 = vmatpush1.msra.mxu0 %v212
    %922 = vmatprep.subr.mxu0 0.0
    %923 = vmatpush1.msra.mxu0 %v213
    %924 = vmatprep.subr.mxu0 0.0
    %925 = vmatpush1.msra.mxu0 %v214
    %926 = vmatprep.subr.mxu0 0.0
    %927 = vmatpush1.msra.mxu0 %v215
    %928 = vmatprep.subr.mxu0 0.0
    %929 = vmatpush1.msra.mxu0 %v216
    %930 = vmatprep.subr.mxu0 0.0
    %931 = vmatpush1.msra.mxu0 %v217
    %932 = vmatprep.subr.mxu0 0.0
    %933 = vmatpush1.msra.mxu0 %v218
    %934 = vmatprep.subr.mxu0 0.0
    %935 = vmatpush1.msra.mxu0 %v219
    %936 = vmatprep.subr.mxu0 0.0
    %937 = vmatpush1.msra.mxu0 %v220
    %938 = vmatprep.subr.mxu0 0.0
    %939 = vmatpush1.msra.mxu0 0.0
    %940 = vmatprep.subr.mxu0 0.0
    %941 = vmatpush1.msra.mxu0 0.0
    %942 = vmatprep.subr.mxu0 0.0
    %943 = vmatpush1.msra.mxu0 0.0
    %944 = vmatprep.subr.mxu0 0.0
    %945 = vmatpush1.msra.mxu0 0.0
    %946 = vmatprep.subr.mxu0 0.0
    %947 = vmatpush1.msra.mxu0 0.0
    %948 = vmatprep.subr.mxu0 0.0
    %949 = vmatpush1.msra.mxu0 0.0
    %950 = vmatprep.subr.mxu0 0.0
    %951 = vmatpush1.msra.mxu0 0.0
    %952 = vmatprep.subr.mxu0 0.0
    %953 = vmatpush1.msra.mxu0 0.0
    %954 = vmatprep.subr.mxu0 0.0
    %955 = vmatpush1.msra.mxu0 0.0
    %956 = vmatprep.subr.mxu0 0.0
    %957 = vmatpush1.msra.mxu0 0.0
    %958 = vmatprep.subr.mxu0 0.0
    %959 = vmatpush1.msra.mxu0 0.0
    %960 = vmatprep.subr.mxu0 0.0
    %961 = vmatpush1.msra.mxu0 0.0
    %962 = vmatprep.subr.mxu0 0.0
    %963 = vmatpush1.msra.mxu0 0.0
    %964 = vmatprep.subr.mxu0 0.0
    %965 = vmatpush1.msra.mxu0 0.0
    %966 = vmatprep.subr.mxu0 0.0
    %967 = vmatpush1.msra.mxu0 0.0
    %968 = vmatprep.subr.mxu0 0.0
    %969 = vmatpush1.msra.mxu0 0.0
    %970 = vmatprep.mubr.f32.mxu0 0.0
    %971 = vmatmul.mubr.f32.gmra.mrb[0].mxu0 %v903
    %v972 = vpop.f32.mrb[0].mxu0
    %v973 = vadd.f32 %v290, %v972
    %v974 = vpop.f32.mrb[0].mxu0
    %975 = vdwg.mxu0
    %v976 = vmax.f32 %v973, 0.0
    %977 = vmatprep.subr.mxu0 %v222
    %978 = vmatpush1.msra.mxu0 %v221
    %979 = vmatprep.subr.mxu0 %v226
    %980 = vmatpush1.msra.mxu0 %v225
    %981 = vmatprep.subr.mxu0 %v230
    %982 = vmatpush1.msra.mxu0 %v229
    %983 = vmatprep.subr.mxu0 %v234
    %984 = vmatpush1.msra.mxu0 %v233
    %985 = vmatprep.subr.mxu0 %v238
    %986 = vmatpush1.msra.mxu0 %v237
    %987 = vmatprep.subr.mxu0 %v242
    %988 = vmatpush1.msra.mxu0 %v241
    %989 = vmatprep.subr.mxu0 %v246
    %990 = vmatpush1.msra.mxu0 %v245
    %991 = vmatprep.subr.mxu0 %v250
    %992 = vmatpush1.msra.mxu0 %v249
    %993 = vmatprep.subr.mxu0 %v254
    %994 = vmatpush1.msra.mxu0 %v253
    %995 = vmatprep.subr.mxu0 %v258
    %996 = vmatpush1.msra.mxu0 %v257
    %997 = vmatprep.subr.mxu0 %v262
    %998 = vmatpush1.msra.mxu0 %v261
    %999 = vmatprep.subr.mxu0 %v266
    %1000 = vmatpush1.msra.mxu0 %v265
    %1001 = vmatprep.subr.mxu0 %v270
    %1002 = vmatpush1.msra.mxu0 %v269
    %1003 = vmatprep.subr.mxu0 %v274
    %1004 = vmatpush1.msra.mxu0 %v273
    %1005 = vmatprep.subr.mxu0 %v278
    %1006 = vmatpush1.msra.mxu0 %v277
    %1007 = vmatprep.subr.mxu0 %v282
    %1008 = vmatpush1.msra.mxu0 %v281
    %1009 = vmatprep.subr.mxu0 0.0
    %1010 = vmatpush1.msra.mxu0 0.0
    %1011 = vmatprep.subr.mxu0 0.0
    %1012 = vmatpush1.msra.mxu0 0.0
    %1013 = vmatprep.subr.mxu0 0.0
    %1014 = vmatpush1.msra.mxu0 0.0
    %1015 = vmatprep.subr.mxu0 0.0
    %1016 = vmatpush1.msra.mxu0 0.0
    %1017 = vmatprep.subr.mxu0 0.0
    %1018 = vmatpush1.msra.mxu0 0.0
    %1019 = vmatprep.subr.mxu0 0.0
    %1020 = vmatpush1.msra.mxu0 0.0
    %1021 = vmatprep.subr.mxu0 0.0
    %1022 = vmatpush1.msra.mxu0 0.0
    %1023 = vmatprep.subr.mxu0 0.0
    %1024 = vmatpush1.msra.mxu0 0.0
    %1025 = vmatprep.subr.mxu0 0.0
    %1026 = vmatpush1.msra.mxu0 0.0
    %1027 = vmatprep.subr.mxu0 0.0
    %1028 = vmatpush1.msra.mxu0 0.0
    %1029 = vmatprep.subr.mxu0 0.0
    %1030 = vmatpush1.msra.mxu0 0.0
    %1031 = vmatprep.subr.mxu0 0.0
    %1032 = vmatpush1.msra.mxu0 0.0
    %1033 = vmatprep.subr.mxu0 0.0
    %1034 = vmatpush1.msra.mxu0 0.0
    %1035 = vmatprep.subr.mxu0 0.0
    %1036 = vmatpush1.msra.mxu0 0.0
    %1037 = vmatprep.subr.mxu0 0.0
    %1038 = vmatpush1.msra.mxu0 0.0
    %1039 = vmatprep.subr.mxu0 0.0
    %1040 = vmatpush1.msra.mxu0 0.0
    %1041 = vmatprep.mubr.f32.mxu0 0.0
    %1042 = vmatmul.mubr.f32.gmra.mrb[0].mxu0 %v976
    %v1043 = vpop.f32.mrb[0].mxu0
    %v1044 = vadd.f32 %v297, %v1043
    %v1045 = vpop.f32.mrb[0].mxu0
    %v1046 = vadd.f32 %v301, %v1045
    %1047 = vdwg.mxu0
    %1048 = vmatprep.subr.mxu0 %v224
    %1049 = vmatpush1.msra.mxu0 %v223
    %1050 = vmatprep.subr.mxu0 %v228
    %1051 = vmatpush1.msra.mxu0 %v227
    %1052 = vmatprep.subr.mxu0 %v232
    %1053 = vmatpush1.msra.mxu0 %v231
    %1054 = vmatprep.subr.mxu0 %v236
    %1055 = vmatpush1.msra.mxu0 %v235
    %1056 = vmatprep.subr.mxu0 %v240
    %1057 = vmatpush1.msra.mxu0 %v239
    %1058 = vmatprep.subr.mxu0 %v244
    %1059 = vmatpush1.msra.mxu0 %v243
    %1060 = vmatprep.subr.mxu0 %v248
    %1061 = vmatpush1.msra.mxu0 %v247
    %1062 = vmatprep.subr.mxu0 %v252
    %1063 = vmatpush1.msra.mxu0 %v251
    %1064 = vmatprep.subr.mxu0 %v256
    %1065 = vmatpush1.msra.mxu0 %v255
    %1066 = vmatprep.subr.mxu0 %v260
    %1067 = vmatpush1.msra.mxu0 %v259
    %1068 = vmatprep.subr.mxu0 %v264
    %1069 = vmatpush1.msra.mxu0 %v263
    %1070 = vmatprep.subr.mxu0 %v268
    %1071 = vmatpush1.msra.mxu0 %v267
    %1072 = vmatprep.subr.mxu0 %v272
    %1073 = vmatpush1.msra.mxu0 %v271
    %1074 = vmatprep.subr.mxu0 %v276
    %1075 = vmatpush1.msra.mxu0 %v275
    %1076 = vmatprep.subr.mxu0 %v280
    %1077 = vmatpush1.msra.mxu0 %v279
    %1078 = vmatprep.subr.mxu0 %v284
    %1079 = vmatpush1.msra.mxu0 %v283
    %1080 = vmatprep.subr.mxu0 0.0
    %1081 = vmatpush1.msra.mxu0 0.0
    %1082 = vmatprep.subr.mxu0 0.0
    %1083 = vmatpush1.msra.mxu0 0.0
    %1084 = vmatprep.subr.mxu0 0.0
    %1085 = vmatpush1.msra.mxu0 0.0
    %1086 = vmatprep.subr.mxu0 0.0
    %1087 = vmatpush1.msra.mxu0 0.0
    %1088 = vmatprep.subr.mxu0 0.0
    %1089 = vmatpush1.msra.mxu0 0.0
    %1090 = vmatprep.subr.mxu0 0.0
    %1091 = vmatpush1.msra.mxu0 0.0
    %1092 = vmatprep.subr.mxu0 0.0
    %1093 = vmatpush1.msra.mxu0 0.0
    %1094 = vmatprep.subr.mxu0 0.0
    %1095 = vmatpush1.msra.mxu0 0.0
    %1096 = vmatprep.subr.mxu0 0.0
    %1097 = vmatpush1.msra.mxu0 0.0
    %1098 = vmatprep.subr.mxu0 0.0
    %1099 = vmatpush1.msra.mxu0 0.0
    %1100 = vmatprep.subr.mxu0 0.0
    %1101 = vmatpush1.msra.mxu0 0.0
    %1102 = vmatprep.subr.mxu0 0.0
    %1103 = vmatpush1.msra.mxu0 0.0
    %1104 = vmatprep.subr.mxu0 0.0
    %1105 = vmatpush1.msra.mxu0 0.0
    %1106 = vmatprep.subr.mxu0 0.0
    %1107 = vmatpush1.msra.mxu0 0.0
    %1108 = vmatprep.subr.mxu0 0.0
    %1109 = vmatpush1.msra.mxu0 0.0
    %1110 = vmatprep.subr.mxu0 0.0
    %1111 = vmatpush1.msra.mxu0 0.0
    %1112 = vmatprep.mubr.f32.mxu0 0.0
    %1113 = vmatmul.mubr.f32.gmra.mrb[0].mxu0 %v976
    %v1114 = vpop.f32.mrb[0].mxu0
    %v1115 = vadd.f32 %v305, %v1114
    %v1116 = vpop.f32.mrb[0].mxu0
    %v1117 = vadd.f32 %v309, %v1116
    %1118 = vdwg.mxu0
    %v1119 = vsel %vm701, %v1117, -inf
    %1120 = vmax.xlane.f32.xlu0 %v1119
    %v1121 = vpop.xlane.xlu0 %1120
    %v1122 = vsub.f32 %v1117, %v1121
    %v1123 = vmul.f32 %v1122, 1.442695
    %v1124 = vpow.pop %v1123
    %v1125 = vsel %vm701, %v1124, 0.0
    %1126 = vadd.xlane.f32.xlu0 %v1125
    %v1127 = vpop.xlane.xlu0 %1126
    %v1128 = vrcp.pop %v1127
    %v1129 = vmul.f32 %v1124, %v1128
    %1131 = vset.pattern.permute.xlu0 0
    %1132 = vperm.xlu0 %1131, %v1129
    %v1133 = vpop.permute.xlu0 %1132
    %v1135 = vmul.f32 %v1133, %v1044
    %1136 = vset.pattern.permute.xlu0 1
    %1137 = vperm.xlu0 %1136, %v1129
    %v1138 = vpop.permute.xlu0 %1137
    %v1140 = vmul.f32 %v1138, %v1046
    %v1141 = vadd.f32 %v1135, %v1140
    %1142 = vset.pattern.permute.xlu0 2
    %1143 = vperm.xlu0 %1142, %v1129
    %v1144 = vpop.permute.xlu0 %1143
    %v1146 = vmul.f32 %v1144, %v1115
    %v1147 = vadd.f32 %v1141, %v1146
    %s1148 = scalar_lea.vmem %s0, 64
    %v1149 = vld [vmem:[%s1148] sm:$0xff]
    %v1150 = vld [vmem:[%s1148 + $0x8] sm:$0xff]
    %v1151 = vld [vmem:[%s1148 + $0x10] sm:$0xff]
    %v1152 = vld [vmem:[%s1148 + $0x18] sm:$0xff]
    %1153 = vmatprep.subr.mxu0 %v78
    %1154 = vmatpush1.msra.mxu0 %v77
    %1155 = vmatprep.subr.mxu0 %v82
    %1156 = vmatpush1.msra.mxu0 %v81
    %1157 = vmatprep.subr.mxu0 %v86
    %1158 = vmatpush1.msra.mxu0 %v85
    %1159 = vmatprep.subr.mxu0 %v90
    %1160 = vmatpush1.msra.mxu0 %v89
    %1161 = vmatprep.subr.mxu0 %v94
    %1162 = vmatpush1.msra.mxu0 %v93
    %1163 = vmatprep.subr.mxu0 %v98
    %1164 = vmatpush1.msra.mxu0 %v97
    %1165 = vmatprep.subr.mxu0 %v102
    %1166 = vmatpush1.msra.mxu0 %v101
    %1167 = vmatprep.subr.mxu0 %v106
    %1168 = vmatpush1.msra.mxu0 %v105
    %1169 = vmatprep.subr.mxu0 %v110
    %1170 = vmatpush1.msra.mxu0 %v109
    %1171 = vmatprep.subr.mxu0 %v114
    %1172 = vmatpush1.msra.mxu0 %v113
    %1173 = vmatprep.subr.mxu0 %v118
    %1174 = vmatpush1.msra.mxu0 %v117
    %1175 = vmatprep.subr.mxu0 %v122
    %1176 = vmatpush1.msra.mxu0 %v121
    %1177 = vmatprep.subr.mxu0 %v126
    %1178 = vmatpush1.msra.mxu0 %v125
    %1179 = vmatprep.subr.mxu0 %v130
    %1180 = vmatpush1.msra.mxu0 %v129
    %1181 = vmatprep.subr.mxu0 %v134
    %1182 = vmatpush1.msra.mxu0 %v133
    %1183 = vmatprep.subr.mxu0 %v138
    %1184 = vmatpush1.msra.mxu0 %v137
    %1185 = vmatprep.subr.mxu0 %v142
    %1186 = vmatpush1.msra.mxu0 %v141
    %1187 = vmatprep.subr.mxu0 %v146
    %1188 = vmatpush1.msra.mxu0 %v145
    %1189 = vmatprep.subr.mxu0 %v150
    %1190 = vmatpush1.msra.mxu0 %v149
    %1191 = vmatprep.subr.mxu0 %v154
    %1192 = vmatpush1.msra.mxu0 %v153
    %1193 = vmatprep.subr.mxu0 %v158
    %1194 = vmatpush1.msra.mxu0 %v157
    %1195 = vmatprep.subr.mxu0 %v162
    %1196 = vmatpush1.msra.mxu0 %v161
    %1197 = vmatprep.subr.mxu0 %v166
    %1198 = vmatpush1.msra.mxu0 %v165
    %1199 = vmatprep.subr.mxu0 %v170
    %1200 = vmatpush1.msra.mxu0 %v169
    %1201 = vmatprep.subr.mxu0 %v174
    %1202 = vmatpush1.msra.mxu0 %v173
    %1203 = vmatprep.subr.mxu0 %v178
    %1204 = vmatpush1.msra.mxu0 %v177
    %1205 = vmatprep.subr.mxu0 %v182
    %1206 = vmatpush1.msra.mxu0 %v181
    %1207 = vmatprep.subr.mxu0 %v186
    %1208 = vmatpush1.msra.mxu0 %v185
    %1209 = vmatprep.subr.mxu0 %v190
    %1210 = vmatpush1.msra.mxu0 %v189
    %1211 = vmatprep.subr.mxu0 %v194
    %1212 = vmatpush1.msra.mxu0 %v193
    %1213 = vmatprep.subr.mxu0 %v198
    %1214 = vmatpush1.msra.mxu0 %v197
    %1215 = vmatprep.subr.mxu0 %v202
    %1216 = vmatpush1.msra.mxu0 %v201
    %1217 = vmatprep.mubr.f32.mxu0 %v1147
    %1218 = vmatmul.mubr.f32.gmra.mrb[0].mxu0 %v905
    %v1219 = vpop.f32.mrb[0].mxu0
    %v1220 = vadd.f32 0.0, %v1219
    %v1221 = vpop.f32.mrb[0].mxu0
    %v1222 = vadd.f32 0.0, %v1221
    %1223 = vdwg.mxu0
    %1224 = vmatprep.subr.mxu0 %v80
    %1225 = vmatpush1.msra.mxu0 %v79
    %1226 = vmatprep.subr.mxu0 %v84
    %1227 = vmatpush1.msra.mxu0 %v83
    %1228 = vmatprep.subr.mxu0 %v88
    %1229 = vmatpush1.msra.mxu0 %v87
    %1230 = vmatprep.subr.mxu0 %v92
    %1231 = vmatpush1.msra.mxu0 %v91
    %1232 = vmatprep.subr.mxu0 %v96
    %1233 = vmatpush1.msra.mxu0 %v95
    %1234 = vmatprep.subr.mxu0 %v100
    %1235 = vmatpush1.msra.mxu0 %v99
    %1236 = vmatprep.subr.mxu0 %v104
    %1237 = vmatpush1.msra.mxu0 %v103
    %1238 = vmatprep.subr.mxu0 %v108
    %1239 = vmatpush1.msra.mxu0 %v107
    %1240 = vmatprep.subr.mxu0 %v112
    %1241 = vmatpush1.msra.mxu0 %v111
    %1242 = vmatprep.subr.mxu0 %v116
    %1243 = vmatpush1.msra.mxu0 %v115
    %1244 = vmatprep.subr.mxu0 %v120
    %1245 = vmatpush1.msra.mxu0 %v119
    %1246 = vmatprep.subr.mxu0 %v124
    %1247 = vmatpush1.msra.mxu0 %v123
    %1248 = vmatprep.subr.mxu0 %v128
    %1249 = vmatpush1.msra.mxu0 %v127
    %1250 = vmatprep.subr.mxu0 %v132
    %1251 = vmatpush1.msra.mxu0 %v131
    %1252 = vmatprep.subr.mxu0 %v136
    %1253 = vmatpush1.msra.mxu0 %v135
    %1254 = vmatprep.subr.mxu0 %v140
    %1255 = vmatpush1.msra.mxu0 %v139
    %1256 = vmatprep.subr.mxu0 %v144
    %1257 = vmatpush1.msra.mxu0 %v143
    %1258 = vmatprep.subr.mxu0 %v148
    %1259 = vmatpush1.msra.mxu0 %v147
    %1260 = vmatprep.subr.mxu0 %v152
    %1261 = vmatpush1.msra.mxu0 %v151
    %1262 = vmatprep.subr.mxu0 %v156
    %1263 = vmatpush1.msra.mxu0 %v155
    %1264 = vmatprep.subr.mxu0 %v160
    %1265 = vmatpush1.msra.mxu0 %v159
    %1266 = vmatprep.subr.mxu0 %v164
    %1267 = vmatpush1.msra.mxu0 %v163
    %1268 = vmatprep.subr.mxu0 %v168
    %1269 = vmatpush1.msra.mxu0 %v167
    %1270 = vmatprep.subr.mxu0 %v172
    %1271 = vmatpush1.msra.mxu0 %v171
    %1272 = vmatprep.subr.mxu0 %v176
    %1273 = vmatpush1.msra.mxu0 %v175
    %1274 = vmatprep.subr.mxu0 %v180
    %1275 = vmatpush1.msra.mxu0 %v179
    %1276 = vmatprep.subr.mxu0 %v184
    %1277 = vmatpush1.msra.mxu0 %v183
    %1278 = vmatprep.subr.mxu0 %v188
    %1279 = vmatpush1.msra.mxu0 %v187
    %1280 = vmatprep.subr.mxu0 %v192
    %1281 = vmatpush1.msra.mxu0 %v191
    %1282 = vmatprep.subr.mxu0 %v196
    %1283 = vmatpush1.msra.mxu0 %v195
    %1284 = vmatprep.subr.mxu0 %v200
    %1285 = vmatpush1.msra.mxu0 %v199
    %1286 = vmatprep.subr.mxu0 %v204
    %1287 = vmatpush1.msra.mxu0 %v203
    %1288 = vmatprep.mubr.f32.mxu0 %v1147
    %1289 = vmatmul.mubr.f32.gmra.mrb[0].mxu0 %v905
    %v1290 = vpop.f32.mrb[0].mxu0
    %v1291 = vadd.f32 0.0, %v1290
    %v1292 = vpop.f32.mrb[0].mxu0
    %v1293 = vadd.f32 0.0, %v1292
    %1294 = vdwg.mxu0
    %v1295 = vadd.f32 %v1149, %v1220
    %v1296 = vadd.f32 %v1150, %v1222
    %v1297 = vadd.f32 %v1151, %v1291
    %v1298 = vadd.f32 %v1152, %v1293
    %v1299 = vxor.u32 %v1295, 2147483648
    %v1300 = vxor.u32 %v1296, 2147483648
    %v1301 = vxor.u32 %v1297, 2147483648
    %v1302 = vmul.f32 %v1299, 1.442695
    %v1303 = vpow.pop %v1302
    %v1304 = vmul.f32 %v1300, 1.442695
    %v1305 = vpow.pop %v1304
    %v1306 = vmul.f32 %v1301, 1.442695
    %v1307 = vpow.pop %v1306
    %v1308 = vadd.f32 %v1303, 1.0
    %v1309 = vadd.f32 %v1305, 1.0
    %v1310 = vadd.f32 %v1307, 1.0
    %v1311 = vrcp.pop %v1308
    %v1312 = vmul.f32 1.0, %v1311
    %v1313 = vrcp.pop %v1309
    %v1314 = vmul.f32 1.0, %v1313
    %v1315 = vrcp.pop %v1310
    %v1316 = vmul.f32 1.0, %v1315
    %v1317 = vtanh.pop %v1298
    %v1318 = vmul.f32 %v1312, %v903
    %v1319 = vmul.f32 %v1314, %v1317
    %v1320 = vadd.f32 %v1318, %v1319
    %v1321 = vtanh.pop %v1320
    %v1322 = vmul.f32 %v1321, %v1316
    %1323 = vmatprep.subr.mxu0 0.0
    %1324 = vmatpush1.msra.mxu0 %v205
    %1325 = vmatprep.subr.mxu0 0.0
    %1326 = vmatpush1.msra.mxu0 %v206
    %1327 = vmatprep.subr.mxu0 0.0
    %1328 = vmatpush1.msra.mxu0 %v207
    %1329 = vmatprep.subr.mxu0 0.0
    %1330 = vmatpush1.msra.mxu0 %v208
    %1331 = vmatprep.subr.mxu0 0.0
    %1332 = vmatpush1.msra.mxu0 %v209
    %1333 = vmatprep.subr.mxu0 0.0
    %1334 = vmatpush1.msra.mxu0 %v210
    %1335 = vmatprep.subr.mxu0 0.0
    %1336 = vmatpush1.msra.mxu0 %v211
    %1337 = vmatprep.subr.mxu0 0.0
    %1338 = vmatpush1.msra.mxu0 %v212
    %1339 = vmatprep.subr.mxu0 0.0
    %1340 = vmatpush1.msra.mxu0 %v213
    %1341 = vmatprep.subr.mxu0 0.0
    %1342 = vmatpush1.msra.mxu0 %v214
    %1343 = vmatprep.subr.mxu0 0.0
    %1344 = vmatpush1.msra.mxu0 %v215
    %1345 = vmatprep.subr.mxu0 0.0
    %1346 = vmatpush1.msra.mxu0 %v216
    %1347 = vmatprep.subr.mxu0 0.0
    %1348 = vmatpush1.msra.mxu0 %v217
    %1349 = vmatprep.subr.mxu0 0.0
    %1350 = vmatpush1.msra.mxu0 %v218
    %1351 = vmatprep.subr.mxu0 0.0
    %1352 = vmatpush1.msra.mxu0 %v219
    %1353 = vmatprep.subr.mxu0 0.0
    %1354 = vmatpush1.msra.mxu0 %v220
    %1355 = vmatprep.subr.mxu0 0.0
    %1356 = vmatpush1.msra.mxu0 0.0
    %1357 = vmatprep.subr.mxu0 0.0
    %1358 = vmatpush1.msra.mxu0 0.0
    %1359 = vmatprep.subr.mxu0 0.0
    %1360 = vmatpush1.msra.mxu0 0.0
    %1361 = vmatprep.subr.mxu0 0.0
    %1362 = vmatpush1.msra.mxu0 0.0
    %1363 = vmatprep.subr.mxu0 0.0
    %1364 = vmatpush1.msra.mxu0 0.0
    %1365 = vmatprep.subr.mxu0 0.0
    %1366 = vmatpush1.msra.mxu0 0.0
    %1367 = vmatprep.subr.mxu0 0.0
    %1368 = vmatpush1.msra.mxu0 0.0
    %1369 = vmatprep.subr.mxu0 0.0
    %1370 = vmatpush1.msra.mxu0 0.0
    %1371 = vmatprep.subr.mxu0 0.0
    %1372 = vmatpush1.msra.mxu0 0.0
    %1373 = vmatprep.subr.mxu0 0.0
    %1374 = vmatpush1.msra.mxu0 0.0
    %1375 = vmatprep.subr.mxu0 0.0
    %1376 = vmatpush1.msra.mxu0 0.0
    %1377 = vmatprep.subr.mxu0 0.0
    %1378 = vmatpush1.msra.mxu0 0.0
    %1379 = vmatprep.subr.mxu0 0.0
    %1380 = vmatpush1.msra.mxu0 0.0
    %1381 = vmatprep.subr.mxu0 0.0
    %1382 = vmatpush1.msra.mxu0 0.0
    %1383 = vmatprep.subr.mxu0 0.0
    %1384 = vmatpush1.msra.mxu0 0.0
    %1385 = vmatprep.subr.mxu0 0.0
    %1386 = vmatpush1.msra.mxu0 0.0
    %1387 = vmatprep.mubr.f32.mxu0 0.0
    %1388 = vmatmul.mubr.f32.gmra.mrb[0].mxu0 %v1320
    %v1389 = vpop.f32.mrb[0].mxu0
    %v1390 = vadd.f32 %v290, %v1389
    %v1391 = vpop.f32.mrb[0].mxu0
    %1392 = vdwg.mxu0
    %v1393 = vmax.f32 %v1390, 0.0
    %1394 = vmatprep.subr.mxu0 %v222
    %1395 = vmatpush1.msra.mxu0 %v221
    %1396 = vmatprep.subr.mxu0 %v226
    %1397 = vmatpush1.msra.mxu0 %v225
    %1398 = vmatprep.subr.mxu0 %v230
    %1399 = vmatpush1.msra.mxu0 %v229
    %1400 = vmatprep.subr.mxu0 %v234
    %1401 = vmatpush1.msra.mxu0 %v233
    %1402 = vmatprep.subr.mxu0 %v238
    %1403 = vmatpush1.msra.mxu0 %v237
    %1404 = vmatprep.subr.mxu0 %v242
    %1405 = vmatpush1.msra.mxu0 %v241
    %1406 = vmatprep.subr.mxu0 %v246
    %1407 = vmatpush1.msra.mxu0 %v245
    %1408 = vmatprep.subr.mxu0 %v250
    %1409 = vmatpush1.msra.mxu0 %v249
    %1410 = vmatprep.subr.mxu0 %v254
    %1411 = vmatpush1.msra.mxu0 %v253
    %1412 = vmatprep.subr.mxu0 %v258
    %1413 = vmatpush1.msra.mxu0 %v257
    %1414 = vmatprep.subr.mxu0 %v262
    %1415 = vmatpush1.msra.mxu0 %v261
    %1416 = vmatprep.subr.mxu0 %v266
    %1417 = vmatpush1.msra.mxu0 %v265
    %1418 = vmatprep.subr.mxu0 %v270
    %1419 = vmatpush1.msra.mxu0 %v269
    %1420 = vmatprep.subr.mxu0 %v274
    %1421 = vmatpush1.msra.mxu0 %v273
    %1422 = vmatprep.subr.mxu0 %v278
    %1423 = vmatpush1.msra.mxu0 %v277
    %1424 = vmatprep.subr.mxu0 %v282
    %1425 = vmatpush1.msra.mxu0 %v281
    %1426 = vmatprep.subr.mxu0 0.0
    %1427 = vmatpush1.msra.mxu0 0.0
    %1428 = vmatprep.subr.mxu0 0.0
    %1429 = vmatpush1.msra.mxu0 0.0
    %1430 = vmatprep.subr.mxu0 0.0
    %1431 = vmatpush1.msra.mxu0 0.0
    %1432 = vmatprep.subr.mxu0 0.0
    %1433 = vmatpush1.msra.mxu0 0.0
    %1434 = vmatprep.subr.mxu0 0.0
    %1435 = vmatpush1.msra.mxu0 0.0
    %1436 = vmatprep.subr.mxu0 0.0
    %1437 = vmatpush1.msra.mxu0 0.0
    %1438 = vmatprep.subr.mxu0 0.0
    %1439 = vmatpush1.msra.mxu0 0.0
    %1440 = vmatprep.subr.mxu0 0.0
    %1441 = vmatpush1.msra.mxu0 0.0
    %1442 = vmatprep.subr.mxu0 0.0
    %1443 = vmatpush1.msra.mxu0 0.0
    %1444 = vmatprep.subr.mxu0 0.0
    %1445 = vmatpush1.msra.mxu0 0.0
    %1446 = vmatprep.subr.mxu0 0.0
    %1447 = vmatpush1.msra.mxu0 0.0
    %1448 = vmatprep.subr.mxu0 0.0
    %1449 = vmatpush1.msra.mxu0 0.0
    %1450 = vmatprep.subr.mxu0 0.0
    %1451 = vmatpush1.msra.mxu0 0.0
    %1452 = vmatprep.subr.mxu0 0.0
    %1453 = vmatpush1.msra.mxu0 0.0
    %1454 = vmatprep.subr.mxu0 0.0
    %1455 = vmatpush1.msra.mxu0 0.0
    %1456 = vmatprep.subr.mxu0 0.0
    %1457 = vmatpush1.msra.mxu0 0.0
    %1458 = vmatprep.mubr.f32.mxu0 0.0
    %1459 = vmatmul.mubr.f32.gmra.mrb[0].mxu0 %v1393
    %v1460 = vpop.f32.mrb[0].mxu0
    %v1461 = vadd.f32 %v297, %v1460
    %v1462 = vpop.f32.mrb[0].mxu0
    %v1463 = vadd.f32 %v301, %v1462
    %1464 = vdwg.mxu0
    %1465 = vmatprep.subr.mxu0 %v224
    %1466 = vmatpush1.msra.mxu0 %v223
    %1467 = vmatprep.subr.mxu0 %v228
    %1468 = vmatpush1.msra.mxu0 %v227
    %1469 = vmatprep.subr.mxu0 %v232
    %1470 = vmatpush1.msra.mxu0 %v231
    %1471 = vmatprep.subr.mxu0 %v236
    %1472 = vmatpush1.msra.mxu0 %v235
    %1473 = vmatprep.subr.mxu0 %v240
    %1474 = vmatpush1.msra.mxu0 %v239
    %1475 = vmatprep.subr.mxu0 %v244
    %1476 = vmatpush1.msra.mxu0 %v243
    %1477 = vmatprep.subr.mxu0 %v248
    %1478 = vmatpush1.msra.mxu0 %v247
    %1479 = vmatprep.subr.mxu0 %v252
    %1480 = vmatpush1.msra.mxu0 %v251
    %1481 = vmatprep.subr.mxu0 %v256
    %1482 = vmatpush1.msra.mxu0 %v255
    %1483 = vmatprep.subr.mxu0 %v260
    %1484 = vmatpush1.msra.mxu0 %v259
    %1485 = vmatprep.subr.mxu0 %v264
    %1486 = vmatpush1.msra.mxu0 %v263
    %1487 = vmatprep.subr.mxu0 %v268
    %1488 = vmatpush1.msra.mxu0 %v267
    %1489 = vmatprep.subr.mxu0 %v272
    %1490 = vmatpush1.msra.mxu0 %v271
    %1491 = vmatprep.subr.mxu0 %v276
    %1492 = vmatpush1.msra.mxu0 %v275
    %1493 = vmatprep.subr.mxu0 %v280
    %1494 = vmatpush1.msra.mxu0 %v279
    %1495 = vmatprep.subr.mxu0 %v284
    %1496 = vmatpush1.msra.mxu0 %v283
    %1497 = vmatprep.subr.mxu0 0.0
    %1498 = vmatpush1.msra.mxu0 0.0
    %1499 = vmatprep.subr.mxu0 0.0
    %1500 = vmatpush1.msra.mxu0 0.0
    %1501 = vmatprep.subr.mxu0 0.0
    %1502 = vmatpush1.msra.mxu0 0.0
    %1503 = vmatprep.subr.mxu0 0.0
    %1504 = vmatpush1.msra.mxu0 0.0
    %1505 = vmatprep.subr.mxu0 0.0
    %1506 = vmatpush1.msra.mxu0 0.0
    %1507 = vmatprep.subr.mxu0 0.0
    %1508 = vmatpush1.msra.mxu0 0.0
    %1509 = vmatprep.subr.mxu0 0.0
    %1510 = vmatpush1.msra.mxu0 0.0
    %1511 = vmatprep.subr.mxu0 0.0
    %1512 = vmatpush1.msra.mxu0 0.0
    %1513 = vmatprep.subr.mxu0 0.0
    %1514 = vmatpush1.msra.mxu0 0.0
    %1515 = vmatprep.subr.mxu0 0.0
    %1516 = vmatpush1.msra.mxu0 0.0
    %1517 = vmatprep.subr.mxu0 0.0
    %1518 = vmatpush1.msra.mxu0 0.0
    %1519 = vmatprep.subr.mxu0 0.0
    %1520 = vmatpush1.msra.mxu0 0.0
    %1521 = vmatprep.subr.mxu0 0.0
    %1522 = vmatpush1.msra.mxu0 0.0
    %1523 = vmatprep.subr.mxu0 0.0
    %1524 = vmatpush1.msra.mxu0 0.0
    %1525 = vmatprep.subr.mxu0 0.0
    %1526 = vmatpush1.msra.mxu0 0.0
    %1527 = vmatprep.subr.mxu0 0.0
    %1528 = vmatpush1.msra.mxu0 0.0
    %1529 = vmatprep.mubr.f32.mxu0 0.0
    %1530 = vmatmul.mubr.f32.gmra.mrb[0].mxu0 %v1393
    %v1531 = vpop.f32.mrb[0].mxu0
    %v1532 = vadd.f32 %v305, %v1531
    %v1533 = vpop.f32.mrb[0].mxu0
    %v1534 = vadd.f32 %v309, %v1533
    %1535 = vdwg.mxu0
    %v1536 = vsel %vm701, %v1534, -inf
    %1537 = vmax.xlane.f32.xlu0 %v1536
    %v1538 = vpop.xlane.xlu0 %1537
    %v1539 = vsub.f32 %v1534, %v1538
    %v1540 = vmul.f32 %v1539, 1.442695
    %v1541 = vpow.pop %v1540
    %v1542 = vsel %vm701, %v1541, 0.0
    %1543 = vadd.xlane.f32.xlu0 %v1542
    %v1544 = vpop.xlane.xlu0 %1543
    %v1545 = vrcp.pop %v1544
    %v1546 = vmul.f32 %v1541, %v1545
    %1548 = vset.pattern.permute.xlu0 0
    %1549 = vperm.xlu0 %1548, %v1546
    %v1550 = vpop.permute.xlu0 %1549
    %v1552 = vmul.f32 %v1550, %v1461
    %1553 = vset.pattern.permute.xlu0 1
    %1554 = vperm.xlu0 %1553, %v1546
    %v1555 = vpop.permute.xlu0 %1554
    %v1557 = vmul.f32 %v1555, %v1463
    %v1558 = vadd.f32 %v1552, %v1557
    %1559 = vset.pattern.permute.xlu0 2
    %1560 = vperm.xlu0 %1559, %v1546
    %v1561 = vpop.permute.xlu0 %1560
    %v1563 = vmul.f32 %v1561, %v1532
    %v1564 = vadd.f32 %v1558, %v1563
    %s1565 = scalar_lea.vmem %s0, 96
    %v1566 = vld [vmem:[%s1565] sm:$0xff]
    %v1567 = vld [vmem:[%s1565 + $0x8] sm:$0xff]
    %v1568 = vld [vmem:[%s1565 + $0x10] sm:$0xff]
    %v1569 = vld [vmem:[%s1565 + $0x18] sm:$0xff]
    %1570 = vmatprep.subr.mxu0 %v78
    %1571 = vmatpush1.msra.mxu0 %v77
    %1572 = vmatprep.subr.mxu0 %v82
    %1573 = vmatpush1.msra.mxu0 %v81
    %1574 = vmatprep.subr.mxu0 %v86
    %1575 = vmatpush1.msra.mxu0 %v85
    %1576 = vmatprep.subr.mxu0 %v90
    %1577 = vmatpush1.msra.mxu0 %v89
    %1578 = vmatprep.subr.mxu0 %v94
    %1579 = vmatpush1.msra.mxu0 %v93
    %1580 = vmatprep.subr.mxu0 %v98
    %1581 = vmatpush1.msra.mxu0 %v97
    %1582 = vmatprep.subr.mxu0 %v102
    %1583 = vmatpush1.msra.mxu0 %v101
    %1584 = vmatprep.subr.mxu0 %v106
    %1585 = vmatpush1.msra.mxu0 %v105
    %1586 = vmatprep.subr.mxu0 %v110
    %1587 = vmatpush1.msra.mxu0 %v109
    %1588 = vmatprep.subr.mxu0 %v114
    %1589 = vmatpush1.msra.mxu0 %v113
    %1590 = vmatprep.subr.mxu0 %v118
    %1591 = vmatpush1.msra.mxu0 %v117
    %1592 = vmatprep.subr.mxu0 %v122
    %1593 = vmatpush1.msra.mxu0 %v121
    %1594 = vmatprep.subr.mxu0 %v126
    %1595 = vmatpush1.msra.mxu0 %v125
    %1596 = vmatprep.subr.mxu0 %v130
    %1597 = vmatpush1.msra.mxu0 %v129
    %1598 = vmatprep.subr.mxu0 %v134
    %1599 = vmatpush1.msra.mxu0 %v133
    %1600 = vmatprep.subr.mxu0 %v138
    %1601 = vmatpush1.msra.mxu0 %v137
    %1602 = vmatprep.subr.mxu0 %v142
    %1603 = vmatpush1.msra.mxu0 %v141
    %1604 = vmatprep.subr.mxu0 %v146
    %1605 = vmatpush1.msra.mxu0 %v145
    %1606 = vmatprep.subr.mxu0 %v150
    %1607 = vmatpush1.msra.mxu0 %v149
    %1608 = vmatprep.subr.mxu0 %v154
    %1609 = vmatpush1.msra.mxu0 %v153
    %1610 = vmatprep.subr.mxu0 %v158
    %1611 = vmatpush1.msra.mxu0 %v157
    %1612 = vmatprep.subr.mxu0 %v162
    %1613 = vmatpush1.msra.mxu0 %v161
    %1614 = vmatprep.subr.mxu0 %v166
    %1615 = vmatpush1.msra.mxu0 %v165
    %1616 = vmatprep.subr.mxu0 %v170
    %1617 = vmatpush1.msra.mxu0 %v169
    %1618 = vmatprep.subr.mxu0 %v174
    %1619 = vmatpush1.msra.mxu0 %v173
    %1620 = vmatprep.subr.mxu0 %v178
    %1621 = vmatpush1.msra.mxu0 %v177
    %1622 = vmatprep.subr.mxu0 %v182
    %1623 = vmatpush1.msra.mxu0 %v181
    %1624 = vmatprep.subr.mxu0 %v186
    %1625 = vmatpush1.msra.mxu0 %v185
    %1626 = vmatprep.subr.mxu0 %v190
    %1627 = vmatpush1.msra.mxu0 %v189
    %1628 = vmatprep.subr.mxu0 %v194
    %1629 = vmatpush1.msra.mxu0 %v193
    %1630 = vmatprep.subr.mxu0 %v198
    %1631 = vmatpush1.msra.mxu0 %v197
    %1632 = vmatprep.subr.mxu0 %v202
    %1633 = vmatpush1.msra.mxu0 %v201
    %1634 = vmatprep.mubr.f32.mxu0 %v1564
    %1635 = vmatmul.mubr.f32.gmra.mrb[0].mxu0 %v1322
    %v1636 = vpop.f32.mrb[0].mxu0
    %v1637 = vadd.f32 0.0, %v1636
    %v1638 = vpop.f32.mrb[0].mxu0
    %v1639 = vadd.f32 0.0, %v1638
    %1640 = vdwg.mxu0
    %1641 = vmatprep.subr.mxu0 %v80
    %1642 = vmatpush1.msra.mxu0 %v79
    %1643 = vmatprep.subr.mxu0 %v84
    %1644 = vmatpush1.msra.mxu0 %v83
    %1645 = vmatprep.subr.mxu0 %v88
    %1646 = vmatpush1.msra.mxu0 %v87
    %1647 = vmatprep.subr.mxu0 %v92
    %1648 = vmatpush1.msra.mxu0 %v91
    %1649 = vmatprep.subr.mxu0 %v96
    %1650 = vmatpush1.msra.mxu0 %v95
    %1651 = vmatprep.subr.mxu0 %v100
    %1652 = vmatpush1.msra.mxu0 %v99
    %1653 = vmatprep.subr.mxu0 %v104
    %1654 = vmatpush1.msra.mxu0 %v103
    %1655 = vmatprep.subr.mxu0 %v108
    %1656 = vmatpush1.msra.mxu0 %v107
    %1657 = vmatprep.subr.mxu0 %v112
    %1658 = vmatpush1.msra.mxu0 %v111
    %1659 = vmatprep.subr.mxu0 %v116
    %1660 = vmatpush1.msra.mxu0 %v115
    %1661 = vmatprep.subr.mxu0 %v120
    %1662 = vmatpush1.msra.mxu0 %v119
    %1663 = vmatprep.subr.mxu0 %v124
    %1664 = vmatpush1.msra.mxu0 %v123
    %1665 = vmatprep.subr.mxu0 %v128
    %1666 = vmatpush1.msra.mxu0 %v127
    %1667 = vmatprep.subr.mxu0 %v132
    %1668 = vmatpush1.msra.mxu0 %v131
    %1669 = vmatprep.subr.mxu0 %v136
    %1670 = vmatpush1.msra.mxu0 %v135
    %1671 = vmatprep.subr.mxu0 %v140
    %1672 = vmatpush1.msra.mxu0 %v139
    %1673 = vmatprep.subr.mxu0 %v144
    %1674 = vmatpush1.msra.mxu0 %v143
    %1675 = vmatprep.subr.mxu0 %v148
    %1676 = vmatpush1.msra.mxu0 %v147
    %1677 = vmatprep.subr.mxu0 %v152
    %1678 = vmatpush1.msra.mxu0 %v151
    %1679 = vmatprep.subr.mxu0 %v156
    %1680 = vmatpush1.msra.mxu0 %v155
    %1681 = vmatprep.subr.mxu0 %v160
    %1682 = vmatpush1.msra.mxu0 %v159
    %1683 = vmatprep.subr.mxu0 %v164
    %1684 = vmatpush1.msra.mxu0 %v163
    %1685 = vmatprep.subr.mxu0 %v168
    %1686 = vmatpush1.msra.mxu0 %v167
    %1687 = vmatprep.subr.mxu0 %v172
    %1688 = vmatpush1.msra.mxu0 %v171
    %1689 = vmatprep.subr.mxu0 %v176
    %1690 = vmatpush1.msra.mxu0 %v175
    %1691 = vmatprep.subr.mxu0 %v180
    %1692 = vmatpush1.msra.mxu0 %v179
    %1693 = vmatprep.subr.mxu0 %v184
    %1694 = vmatpush1.msra.mxu0 %v183
    %1695 = vmatprep.subr.mxu0 %v188
    %1696 = vmatpush1.msra.mxu0 %v187
    %1697 = vmatprep.subr.mxu0 %v192
    %1698 = vmatpush1.msra.mxu0 %v191
    %1699 = vmatprep.subr.mxu0 %v196
    %1700 = vmatpush1.msra.mxu0 %v195
    %1701 = vmatprep.subr.mxu0 %v200
    %1702 = vmatpush1.msra.mxu0 %v199
    %1703 = vmatprep.subr.mxu0 %v204
    %1704 = vmatpush1.msra.mxu0 %v203
    %1705 = vmatprep.mubr.f32.mxu0 %v1564
    %1706 = vmatmul.mubr.f32.gmra.mrb[0].mxu0 %v1322
    %v1707 = vpop.f32.mrb[0].mxu0
    %v1708 = vadd.f32 0.0, %v1707
    %v1709 = vpop.f32.mrb[0].mxu0
    %v1710 = vadd.f32 0.0, %v1709
    %1711 = vdwg.mxu0
    %v1712 = vadd.f32 %v1566, %v1637
    %v1713 = vadd.f32 %v1567, %v1639
    %v1714 = vadd.f32 %v1568, %v1708
    %v1715 = vadd.f32 %v1569, %v1710
    %v1716 = vxor.u32 %v1712, 2147483648
    %v1717 = vxor.u32 %v1713, 2147483648
    %v1718 = vxor.u32 %v1714, 2147483648
    %v1719 = vmul.f32 %v1716, 1.442695
    %v1720 = vpow.pop %v1719
    %v1721 = vmul.f32 %v1717, 1.442695
    %v1722 = vpow.pop %v1721
    %v1723 = vmul.f32 %v1718, 1.442695
    %v1724 = vpow.pop %v1723
    %v1725 = vadd.f32 %v1720, 1.0
    %v1726 = vadd.f32 %v1722, 1.0
    %v1727 = vadd.f32 %v1724, 1.0
    %v1728 = vrcp.pop %v1725
    %v1729 = vmul.f32 1.0, %v1728
    %v1730 = vrcp.pop %v1726
    %v1731 = vmul.f32 1.0, %v1730
    %v1732 = vrcp.pop %v1727
    %v1733 = vmul.f32 1.0, %v1732
    %v1734 = vtanh.pop %v1715
    %v1735 = vmul.f32 %v1729, %v1320
    %v1736 = vmul.f32 %v1731, %v1734
    %v1737 = vadd.f32 %v1735, %v1736
    %v1738 = vtanh.pop %v1737
    %v1739 = vmul.f32 %v1738, %v1733
    %1740 = vmatprep.subr.mxu0 0.0
    %1741 = vmatpush1.msra.mxu0 %v205
    %1742 = vmatprep.subr.mxu0 0.0
    %1743 = vmatpush1.msra.mxu0 %v206
    %1744 = vmatprep.subr.mxu0 0.0
    %1745 = vmatpush1.msra.mxu0 %v207
    %1746 = vmatprep.subr.mxu0 0.0
    %1747 = vmatpush1.msra.mxu0 %v208
    %1748 = vmatprep.subr.mxu0 0.0
    %1749 = vmatpush1.msra.mxu0 %v209
    %1750 = vmatprep.subr.mxu0 0.0
    %1751 = vmatpush1.msra.mxu0 %v210
    %1752 = vmatprep.subr.mxu0 0.0
    %1753 = vmatpush1.msra.mxu0 %v211
    %1754 = vmatprep.subr.mxu0 0.0
    %1755 = vmatpush1.msra.mxu0 %v212
    %1756 = vmatprep.subr.mxu0 0.0
    %1757 = vmatpush1.msra.mxu0 %v213
    %1758 = vmatprep.subr.mxu0 0.0
    %1759 = vmatpush1.msra.mxu0 %v214
    %1760 = vmatprep.subr.mxu0 0.0
    %1761 = vmatpush1.msra.mxu0 %v215
    %1762 = vmatprep.subr.mxu0 0.0
    %1763 = vmatpush1.msra.mxu0 %v216
    %1764 = vmatprep.subr.mxu0 0.0
    %1765 = vmatpush1.msra.mxu0 %v217
    %1766 = vmatprep.subr.mxu0 0.0
    %1767 = vmatpush1.msra.mxu0 %v218
    %1768 = vmatprep.subr.mxu0 0.0
    %1769 = vmatpush1.msra.mxu0 %v219
    %1770 = vmatprep.subr.mxu0 0.0
    %1771 = vmatpush1.msra.mxu0 %v220
    %1772 = vmatprep.subr.mxu0 0.0
    %1773 = vmatpush1.msra.mxu0 0.0
    %1774 = vmatprep.subr.mxu0 0.0
    %1775 = vmatpush1.msra.mxu0 0.0
    %1776 = vmatprep.subr.mxu0 0.0
    %1777 = vmatpush1.msra.mxu0 0.0
    %1778 = vmatprep.subr.mxu0 0.0
    %1779 = vmatpush1.msra.mxu0 0.0
    %1780 = vmatprep.subr.mxu0 0.0
    %1781 = vmatpush1.msra.mxu0 0.0
    %1782 = vmatprep.subr.mxu0 0.0
    %1783 = vmatpush1.msra.mxu0 0.0
    %1784 = vmatprep.subr.mxu0 0.0
    %1785 = vmatpush1.msra.mxu0 0.0
    %1786 = vmatprep.subr.mxu0 0.0
    %1787 = vmatpush1.msra.mxu0 0.0
    %1788 = vmatprep.subr.mxu0 0.0
    %1789 = vmatpush1.msra.mxu0 0.0
    %1790 = vmatprep.subr.mxu0 0.0
    %1791 = vmatpush1.msra.mxu0 0.0
    %1792 = vmatprep.subr.mxu0 0.0
    %1793 = vmatpush1.msra.mxu0 0.0
    %1794 = vmatprep.subr.mxu0 0.0
    %1795 = vmatpush1.msra.mxu0 0.0
    %1796 = vmatprep.subr.mxu0 0.0
    %1797 = vmatpush1.msra.mxu0 0.0
    %1798 = vmatprep.subr.mxu0 0.0
    %1799 = vmatpush1.msra.mxu0 0.0
    %1800 = vmatprep.subr.mxu0 0.0
    %1801 = vmatpush1.msra.mxu0 0.0
    %1802 = vmatprep.subr.mxu0 0.0
    %1803 = vmatpush1.msra.mxu0 0.0
    %1804 = vmatprep.mubr.f32.mxu0 0.0
    %1805 = vmatmul.mubr.f32.gmra.mrb[0].mxu0 %v1737
    %v1806 = vpop.f32.mrb[0].mxu0
    %v1807 = vadd.f32 %v290, %v1806
    %v1808 = vpop.f32.mrb[0].mxu0
    %1809 = vdwg.mxu0
    %v1810 = vmax.f32 %v1807, 0.0
    %1811 = vmatprep.subr.mxu0 %v222
    %1812 = vmatpush1.msra.mxu0 %v221
    %1813 = vmatprep.subr.mxu0 %v226
    %1814 = vmatpush1.msra.mxu0 %v225
    %1815 = vmatprep.subr.mxu0 %v230
    %1816 = vmatpush1.msra.mxu0 %v229
    %1817 = vmatprep.subr.mxu0 %v234
    %1818 = vmatpush1.msra.mxu0 %v233
    %1819 = vmatprep.subr.mxu0 %v238
    %1820 = vmatpush1.msra.mxu0 %v237
    %1821 = vmatprep.subr.mxu0 %v242
    %1822 = vmatpush1.msra.mxu0 %v241
    %1823 = vmatprep.subr.mxu0 %v246
    %1824 = vmatpush1.msra.mxu0 %v245
    %1825 = vmatprep.subr.mxu0 %v250
    %1826 = vmatpush1.msra.mxu0 %v249
    %1827 = vmatprep.subr.mxu0 %v254
    %1828 = vmatpush1.msra.mxu0 %v253
    %1829 = vmatprep.subr.mxu0 %v258
    %1830 = vmatpush1.msra.mxu0 %v257
    %1831 = vmatprep.subr.mxu0 %v262
    %1832 = vmatpush1.msra.mxu0 %v261
    %1833 = vmatprep.subr.mxu0 %v266
    %1834 = vmatpush1.msra.mxu0 %v265
    %1835 = vmatprep.subr.mxu0 %v270
    %1836 = vmatpush1.msra.mxu0 %v269
    %1837 = vmatprep.subr.mxu0 %v274
    %1838 = vmatpush1.msra.mxu0 %v273
    %1839 = vmatprep.subr.mxu0 %v278
    %1840 = vmatpush1.msra.mxu0 %v277
    %1841 = vmatprep.subr.mxu0 %v282
    %1842 = vmatpush1.msra.mxu0 %v281
    %1843 = vmatprep.subr.mxu0 0.0
    %1844 = vmatpush1.msra.mxu0 0.0
    %1845 = vmatprep.subr.mxu0 0.0
    %1846 = vmatpush1.msra.mxu0 0.0
    %1847 = vmatprep.subr.mxu0 0.0
    %1848 = vmatpush1.msra.mxu0 0.0
    %1849 = vmatprep.subr.mxu0 0.0
    %1850 = vmatpush1.msra.mxu0 0.0
    %1851 = vmatprep.subr.mxu0 0.0
    %1852 = vmatpush1.msra.mxu0 0.0
    %1853 = vmatprep.subr.mxu0 0.0
    %1854 = vmatpush1.msra.mxu0 0.0
    %1855 = vmatprep.subr.mxu0 0.0
    %1856 = vmatpush1.msra.mxu0 0.0
    %1857 = vmatprep.subr.mxu0 0.0
    %1858 = vmatpush1.msra.mxu0 0.0
    %1859 = vmatprep.subr.mxu0 0.0
    %1860 = vmatpush1.msra.mxu0 0.0
    %1861 = vmatprep.subr.mxu0 0.0
    %1862 = vmatpush1.msra.mxu0 0.0
    %1863 = vmatprep.subr.mxu0 0.0
    %1864 = vmatpush1.msra.mxu0 0.0
    %1865 = vmatprep.subr.mxu0 0.0
    %1866 = vmatpush1.msra.mxu0 0.0
    %1867 = vmatprep.subr.mxu0 0.0
    %1868 = vmatpush1.msra.mxu0 0.0
    %1869 = vmatprep.subr.mxu0 0.0
    %1870 = vmatpush1.msra.mxu0 0.0
    %1871 = vmatprep.subr.mxu0 0.0
    %1872 = vmatpush1.msra.mxu0 0.0
    %1873 = vmatprep.subr.mxu0 0.0
    %1874 = vmatpush1.msra.mxu0 0.0
    %1875 = vmatprep.mubr.f32.mxu0 0.0
    %1876 = vmatmul.mubr.f32.gmra.mrb[0].mxu0 %v1810
    %v1877 = vpop.f32.mrb[0].mxu0
    %v1878 = vadd.f32 %v297, %v1877
    %v1879 = vpop.f32.mrb[0].mxu0
    %v1880 = vadd.f32 %v301, %v1879
    %1881 = vdwg.mxu0
    %1882 = vmatprep.subr.mxu0 %v224
    %1883 = vmatpush1.msra.mxu0 %v223
    %1884 = vmatprep.subr.mxu0 %v228
    %1885 = vmatpush1.msra.mxu0 %v227
    %1886 = vmatprep.subr.mxu0 %v232
    %1887 = vmatpush1.msra.mxu0 %v231
    %1888 = vmatprep.subr.mxu0 %v236
    %1889 = vmatpush1.msra.mxu0 %v235
    %1890 = vmatprep.subr.mxu0 %v240
    %1891 = vmatpush1.msra.mxu0 %v239
    %1892 = vmatprep.subr.mxu0 %v244
    %1893 = vmatpush1.msra.mxu0 %v243
    %1894 = vmatprep.subr.mxu0 %v248
    %1895 = vmatpush1.msra.mxu0 %v247
    %1896 = vmatprep.subr.mxu0 %v252
    %1897 = vmatpush1.msra.mxu0 %v251
    %1898 = vmatprep.subr.mxu0 %v256
    %1899 = vmatpush1.msra.mxu0 %v255
    %1900 = vmatprep.subr.mxu0 %v260
    %1901 = vmatpush1.msra.mxu0 %v259
    %1902 = vmatprep.subr.mxu0 %v264
    %1903 = vmatpush1.msra.mxu0 %v263
    %1904 = vmatprep.subr.mxu0 %v268
    %1905 = vmatpush1.msra.mxu0 %v267
    %1906 = vmatprep.subr.mxu0 %v272
    %1907 = vmatpush1.msra.mxu0 %v271
    %1908 = vmatprep.subr.mxu0 %v276
    %1909 = vmatpush1.msra.mxu0 %v275
    %1910 = vmatprep.subr.mxu0 %v280
    %1911 = vmatpush1.msra.mxu0 %v279
    %1912 = vmatprep.subr.mxu0 %v284
    %1913 = vmatpush1.msra.mxu0 %v283
    %1914 = vmatprep.subr.mxu0 0.0
    %1915 = vmatpush1.msra.mxu0 0.0
    %1916 = vmatprep.subr.mxu0 0.0
    %1917 = vmatpush1.msra.mxu0 0.0
    %1918 = vmatprep.subr.mxu0 0.0
    %1919 = vmatpush1.msra.mxu0 0.0
    %1920 = vmatprep.subr.mxu0 0.0
    %1921 = vmatpush1.msra.mxu0 0.0
    %1922 = vmatprep.subr.mxu0 0.0
    %1923 = vmatpush1.msra.mxu0 0.0
    %1924 = vmatprep.subr.mxu0 0.0
    %1925 = vmatpush1.msra.mxu0 0.0
    %1926 = vmatprep.subr.mxu0 0.0
    %1927 = vmatpush1.msra.mxu0 0.0
    %1928 = vmatprep.subr.mxu0 0.0
    %1929 = vmatpush1.msra.mxu0 0.0
    %1930 = vmatprep.subr.mxu0 0.0
    %1931 = vmatpush1.msra.mxu0 0.0
    %1932 = vmatprep.subr.mxu0 0.0
    %1933 = vmatpush1.msra.mxu0 0.0
    %1934 = vmatprep.subr.mxu0 0.0
    %1935 = vmatpush1.msra.mxu0 0.0
    %1936 = vmatprep.subr.mxu0 0.0
    %1937 = vmatpush1.msra.mxu0 0.0
    %1938 = vmatprep.subr.mxu0 0.0
    %1939 = vmatpush1.msra.mxu0 0.0
    %1940 = vmatprep.subr.mxu0 0.0
    %1941 = vmatpush1.msra.mxu0 0.0
    %1942 = vmatprep.subr.mxu0 0.0
    %1943 = vmatpush1.msra.mxu0 0.0
    %1944 = vmatprep.subr.mxu0 0.0
    %1945 = vmatpush1.msra.mxu0 0.0
    %1946 = vmatprep.mubr.f32.mxu0 0.0
    %1947 = vmatmul.mubr.f32.gmra.mrb[0].mxu0 %v1810
    %v1948 = vpop.f32.mrb[0].mxu0
    %v1949 = vadd.f32 %v305, %v1948
    %v1950 = vpop.f32.mrb[0].mxu0
    %v1951 = vadd.f32 %v309, %v1950
    %1952 = vdwg.mxu0
    %v1953 = vsel %vm701, %v1951, -inf
    %1954 = vmax.xlane.f32.xlu0 %v1953
    %v1955 = vpop.xlane.xlu0 %1954
    %v1956 = vsub.f32 %v1951, %v1955
    %v1957 = vmul.f32 %v1956, 1.442695
    %v1958 = vpow.pop %v1957
    %v1959 = vsel %vm701, %v1958, 0.0
    %1960 = vadd.xlane.f32.xlu0 %v1959
    %v1961 = vpop.xlane.xlu0 %1960
    %v1962 = vrcp.pop %v1961
    %v1963 = vmul.f32 %v1958, %v1962
    %1965 = vset.pattern.permute.xlu0 0
    %1966 = vperm.xlu0 %1965, %v1963
    %v1967 = vpop.permute.xlu0 %1966
    %v1969 = vmul.f32 %v1967, %v1878
    %1970 = vset.pattern.permute.xlu0 1
    %1971 = vperm.xlu0 %1970, %v1963
    %v1972 = vpop.permute.xlu0 %1971
    %v1974 = vmul.f32 %v1972, %v1880
    %v1975 = vadd.f32 %v1969, %v1974
    %1976 = vset.pattern.permute.xlu0 2
    %1977 = vperm.xlu0 %1976, %v1963
    %v1978 = vpop.permute.xlu0 %1977
    %v1980 = vmul.f32 %v1978, %v1949
    %v1981 = vadd.f32 %v1975, %v1980
    %s1982 = scalar_lea.vmem %s0, 128
    %v1983 = vld [vmem:[%s1982] sm:$0xff]
    %v1984 = vld [vmem:[%s1982 + $0x8] sm:$0xff]
    %v1985 = vld [vmem:[%s1982 + $0x10] sm:$0xff]
    %v1986 = vld [vmem:[%s1982 + $0x18] sm:$0xff]
    %1987 = vmatprep.subr.mxu0 %v78
    %1988 = vmatpush1.msra.mxu0 %v77
    %1989 = vmatprep.subr.mxu0 %v82
    %1990 = vmatpush1.msra.mxu0 %v81
    %1991 = vmatprep.subr.mxu0 %v86
    %1992 = vmatpush1.msra.mxu0 %v85
    %1993 = vmatprep.subr.mxu0 %v90
    %1994 = vmatpush1.msra.mxu0 %v89
    %1995 = vmatprep.subr.mxu0 %v94
    %1996 = vmatpush1.msra.mxu0 %v93
    %1997 = vmatprep.subr.mxu0 %v98
    %1998 = vmatpush1.msra.mxu0 %v97
    %1999 = vmatprep.subr.mxu0 %v102
    %2000 = vmatpush1.msra.mxu0 %v101
    %2001 = vmatprep.subr.mxu0 %v106
    %2002 = vmatpush1.msra.mxu0 %v105
    %2003 = vmatprep.subr.mxu0 %v110
    %2004 = vmatpush1.msra.mxu0 %v109
    %2005 = vmatprep.subr.mxu0 %v114
    %2006 = vmatpush1.msra.mxu0 %v113
    %2007 = vmatprep.subr.mxu0 %v118
    %2008 = vmatpush1.msra.mxu0 %v117
    %2009 = vmatprep.subr.mxu0 %v122
    %2010 = vmatpush1.msra.mxu0 %v121
    %2011 = vmatprep.subr.mxu0 %v126
    %2012 = vmatpush1.msra.mxu0 %v125
    %2013 = vmatprep.subr.mxu0 %v130
    %2014 = vmatpush1.msra.mxu0 %v129
    %2015 = vmatprep.subr.mxu0 %v134
    %2016 = vmatpush1.msra.mxu0 %v133
    %2017 = vmatprep.subr.mxu0 %v138
    %2018 = vmatpush1.msra.mxu0 %v137
    %2019 = vmatprep.subr.mxu0 %v142
    %2020 = vmatpush1.msra.mxu0 %v141
    %2021 = vmatprep.subr.mxu0 %v146
    %2022 = vmatpush1.msra.mxu0 %v145
    %2023 = vmatprep.subr.mxu0 %v150
    %2024 = vmatpush1.msra.mxu0 %v149
    %2025 = vmatprep.subr.mxu0 %v154
    %2026 = vmatpush1.msra.mxu0 %v153
    %2027 = vmatprep.subr.mxu0 %v158
    %2028 = vmatpush1.msra.mxu0 %v157
    %2029 = vmatprep.subr.mxu0 %v162
    %2030 = vmatpush1.msra.mxu0 %v161
    %2031 = vmatprep.subr.mxu0 %v166
    %2032 = vmatpush1.msra.mxu0 %v165
    %2033 = vmatprep.subr.mxu0 %v170
    %2034 = vmatpush1.msra.mxu0 %v169
    %2035 = vmatprep.subr.mxu0 %v174
    %2036 = vmatpush1.msra.mxu0 %v173
    %2037 = vmatprep.subr.mxu0 %v178
    %2038 = vmatpush1.msra.mxu0 %v177
    %2039 = vmatprep.subr.mxu0 %v182
    %2040 = vmatpush1.msra.mxu0 %v181
    %2041 = vmatprep.subr.mxu0 %v186
    %2042 = vmatpush1.msra.mxu0 %v185
    %2043 = vmatprep.subr.mxu0 %v190
    %2044 = vmatpush1.msra.mxu0 %v189
    %2045 = vmatprep.subr.mxu0 %v194
    %2046 = vmatpush1.msra.mxu0 %v193
    %2047 = vmatprep.subr.mxu0 %v198
    %2048 = vmatpush1.msra.mxu0 %v197
    %2049 = vmatprep.subr.mxu0 %v202
    %2050 = vmatpush1.msra.mxu0 %v201
    %2051 = vmatprep.mubr.f32.mxu0 %v1981
    %2052 = vmatmul.mubr.f32.gmra.mrb[0].mxu0 %v1739
    %v2053 = vpop.f32.mrb[0].mxu0
    %v2054 = vadd.f32 0.0, %v2053
    %v2055 = vpop.f32.mrb[0].mxu0
    %v2056 = vadd.f32 0.0, %v2055
    %2057 = vdwg.mxu0
    %2058 = vmatprep.subr.mxu0 %v80
    %2059 = vmatpush1.msra.mxu0 %v79
    %2060 = vmatprep.subr.mxu0 %v84
    %2061 = vmatpush1.msra.mxu0 %v83
    %2062 = vmatprep.subr.mxu0 %v88
    %2063 = vmatpush1.msra.mxu0 %v87
    %2064 = vmatprep.subr.mxu0 %v92
    %2065 = vmatpush1.msra.mxu0 %v91
    %2066 = vmatprep.subr.mxu0 %v96
    %2067 = vmatpush1.msra.mxu0 %v95
    %2068 = vmatprep.subr.mxu0 %v100
    %2069 = vmatpush1.msra.mxu0 %v99
    %2070 = vmatprep.subr.mxu0 %v104
    %2071 = vmatpush1.msra.mxu0 %v103
    %2072 = vmatprep.subr.mxu0 %v108
    %2073 = vmatpush1.msra.mxu0 %v107
    %2074 = vmatprep.subr.mxu0 %v112
    %2075 = vmatpush1.msra.mxu0 %v111
    %2076 = vmatprep.subr.mxu0 %v116
    %2077 = vmatpush1.msra.mxu0 %v115
    %2078 = vmatprep.subr.mxu0 %v120
    %2079 = vmatpush1.msra.mxu0 %v119
    %2080 = vmatprep.subr.mxu0 %v124
    %2081 = vmatpush1.msra.mxu0 %v123
    %2082 = vmatprep.subr.mxu0 %v128
    %2083 = vmatpush1.msra.mxu0 %v127
    %2084 = vmatprep.subr.mxu0 %v132
    %2085 = vmatpush1.msra.mxu0 %v131
    %2086 = vmatprep.subr.mxu0 %v136
    %2087 = vmatpush1.msra.mxu0 %v135
    %2088 = vmatprep.subr.mxu0 %v140
    %2089 = vmatpush1.msra.mxu0 %v139
    %2090 = vmatprep.subr.mxu0 %v144
    %2091 = vmatpush1.msra.mxu0 %v143
    %2092 = vmatprep.subr.mxu0 %v148
    %2093 = vmatpush1.msra.mxu0 %v147
    %2094 = vmatprep.subr.mxu0 %v152
    %2095 = vmatpush1.msra.mxu0 %v151
    %2096 = vmatprep.subr.mxu0 %v156
    %2097 = vmatpush1.msra.mxu0 %v155
    %2098 = vmatprep.subr.mxu0 %v160
    %2099 = vmatpush1.msra.mxu0 %v159
    %2100 = vmatprep.subr.mxu0 %v164
    %2101 = vmatpush1.msra.mxu0 %v163
    %2102 = vmatprep.subr.mxu0 %v168
    %2103 = vmatpush1.msra.mxu0 %v167
    %2104 = vmatprep.subr.mxu0 %v172
    %2105 = vmatpush1.msra.mxu0 %v171
    %2106 = vmatprep.subr.mxu0 %v176
    %2107 = vmatpush1.msra.mxu0 %v175
    %2108 = vmatprep.subr.mxu0 %v180
    %2109 = vmatpush1.msra.mxu0 %v179
    %2110 = vmatprep.subr.mxu0 %v184
    %2111 = vmatpush1.msra.mxu0 %v183
    %2112 = vmatprep.subr.mxu0 %v188
    %2113 = vmatpush1.msra.mxu0 %v187
    %2114 = vmatprep.subr.mxu0 %v192
    %2115 = vmatpush1.msra.mxu0 %v191
    %2116 = vmatprep.subr.mxu0 %v196
    %2117 = vmatpush1.msra.mxu0 %v195
    %2118 = vmatprep.subr.mxu0 %v200
    %2119 = vmatpush1.msra.mxu0 %v199
    %2120 = vmatprep.subr.mxu0 %v204
    %2121 = vmatpush1.msra.mxu0 %v203
    %2122 = vmatprep.mubr.f32.mxu0 %v1981
    %2123 = vmatmul.mubr.f32.gmra.mrb[0].mxu0 %v1739
    %v2124 = vpop.f32.mrb[0].mxu0
    %v2125 = vadd.f32 0.0, %v2124
    %v2126 = vpop.f32.mrb[0].mxu0
    %v2127 = vadd.f32 0.0, %v2126
    %2128 = vdwg.mxu0
    %v2129 = vadd.f32 %v1983, %v2054
    %v2130 = vadd.f32 %v1984, %v2056
    %v2131 = vadd.f32 %v1985, %v2125
    %v2132 = vadd.f32 %v1986, %v2127
    %v2133 = vxor.u32 %v2129, 2147483648
    %v2134 = vxor.u32 %v2130, 2147483648
    %v2135 = vxor.u32 %v2131, 2147483648
    %v2136 = vmul.f32 %v2133, 1.442695
    %v2137 = vpow.pop %v2136
    %v2138 = vmul.f32 %v2134, 1.442695
    %v2139 = vpow.pop %v2138
    %v2140 = vmul.f32 %v2135, 1.442695
    %v2141 = vpow.pop %v2140
    %v2142 = vadd.f32 %v2137, 1.0
    %v2143 = vadd.f32 %v2139, 1.0
    %v2144 = vadd.f32 %v2141, 1.0
    %v2145 = vrcp.pop %v2142
    %v2146 = vmul.f32 1.0, %v2145
    %v2147 = vrcp.pop %v2143
    %v2148 = vmul.f32 1.0, %v2147
    %v2149 = vrcp.pop %v2144
    %v2150 = vmul.f32 1.0, %v2149
    %v2151 = vtanh.pop %v2132
    %v2152 = vmul.f32 %v2146, %v1737
    %v2153 = vmul.f32 %v2148, %v2151
    %v2154 = vadd.f32 %v2152, %v2153
    %v2155 = vtanh.pop %v2154
    %v2156 = vmul.f32 %v2155, %v2150
    %2157 = vmatprep.subr.mxu0 0.0
    %2158 = vmatpush1.msra.mxu0 %v205
    %2159 = vmatprep.subr.mxu0 0.0
    %2160 = vmatpush1.msra.mxu0 %v206
    %2161 = vmatprep.subr.mxu0 0.0
    %2162 = vmatpush1.msra.mxu0 %v207
    %2163 = vmatprep.subr.mxu0 0.0
    %2164 = vmatpush1.msra.mxu0 %v208
    %2165 = vmatprep.subr.mxu0 0.0
    %2166 = vmatpush1.msra.mxu0 %v209
    %2167 = vmatprep.subr.mxu0 0.0
    %2168 = vmatpush1.msra.mxu0 %v210
    %2169 = vmatprep.subr.mxu0 0.0
    %2170 = vmatpush1.msra.mxu0 %v211
    %2171 = vmatprep.subr.mxu0 0.0
    %2172 = vmatpush1.msra.mxu0 %v212
    %2173 = vmatprep.subr.mxu0 0.0
    %2174 = vmatpush1.msra.mxu0 %v213
    %2175 = vmatprep.subr.mxu0 0.0
    %2176 = vmatpush1.msra.mxu0 %v214
    %2177 = vmatprep.subr.mxu0 0.0
    %2178 = vmatpush1.msra.mxu0 %v215
    %2179 = vmatprep.subr.mxu0 0.0
    %2180 = vmatpush1.msra.mxu0 %v216
    %2181 = vmatprep.subr.mxu0 0.0
    %2182 = vmatpush1.msra.mxu0 %v217
    %2183 = vmatprep.subr.mxu0 0.0
    %2184 = vmatpush1.msra.mxu0 %v218
    %2185 = vmatprep.subr.mxu0 0.0
    %2186 = vmatpush1.msra.mxu0 %v219
    %2187 = vmatprep.subr.mxu0 0.0
    %2188 = vmatpush1.msra.mxu0 %v220
    %2189 = vmatprep.subr.mxu0 0.0
    %2190 = vmatpush1.msra.mxu0 0.0
    %2191 = vmatprep.subr.mxu0 0.0
    %2192 = vmatpush1.msra.mxu0 0.0
    %2193 = vmatprep.subr.mxu0 0.0
    %2194 = vmatpush1.msra.mxu0 0.0
    %2195 = vmatprep.subr.mxu0 0.0
    %2196 = vmatpush1.msra.mxu0 0.0
    %2197 = vmatprep.subr.mxu0 0.0
    %2198 = vmatpush1.msra.mxu0 0.0
    %2199 = vmatprep.subr.mxu0 0.0
    %2200 = vmatpush1.msra.mxu0 0.0
    %2201 = vmatprep.subr.mxu0 0.0
    %2202 = vmatpush1.msra.mxu0 0.0
    %2203 = vmatprep.subr.mxu0 0.0
    %2204 = vmatpush1.msra.mxu0 0.0
    %2205 = vmatprep.subr.mxu0 0.0
    %2206 = vmatpush1.msra.mxu0 0.0
    %2207 = vmatprep.subr.mxu0 0.0
    %2208 = vmatpush1.msra.mxu0 0.0
    %2209 = vmatprep.subr.mxu0 0.0
    %2210 = vmatpush1.msra.mxu0 0.0
    %2211 = vmatprep.subr.mxu0 0.0
    %2212 = vmatpush1.msra.mxu0 0.0
    %2213 = vmatprep.subr.mxu0 0.0
    %2214 = vmatpush1.msra.mxu0 0.0
    %2215 = vmatprep.subr.mxu0 0.0
    %2216 = vmatpush1.msra.mxu0 0.0
    %2217 = vmatprep.subr.mxu0 0.0
    %2218 = vmatpush1.msra.mxu0 0.0
    %2219 = vmatprep.subr.mxu0 0.0
    %2220 = vmatpush1.msra.mxu0 0.0
    %2221 = vmatprep.mubr.f32.mxu0 0.0
    %2222 = vmatmul.mubr.f32.gmra.mrb[0].mxu0 %v2154
    %v2223 = vpop.f32.mrb[0].mxu0
    %v2224 = vadd.f32 %v290, %v2223
    %v2225 = vpop.f32.mrb[0].mxu0
    %2226 = vdwg.mxu0
    %v2227 = vmax.f32 %v2224, 0.0
    %2228 = vmatprep.subr.mxu0 %v222
    %2229 = vmatpush1.msra.mxu0 %v221
    %2230 = vmatprep.subr.mxu0 %v226
    %2231 = vmatpush1.msra.mxu0 %v225
    %2232 = vmatprep.subr.mxu0 %v230
    %2233 = vmatpush1.msra.mxu0 %v229
    %2234 = vmatprep.subr.mxu0 %v234
    %2235 = vmatpush1.msra.mxu0 %v233
    %2236 = vmatprep.subr.mxu0 %v238
    %2237 = vmatpush1.msra.mxu0 %v237
    %2238 = vmatprep.subr.mxu0 %v242
    %2239 = vmatpush1.msra.mxu0 %v241
    %2240 = vmatprep.subr.mxu0 %v246
    %2241 = vmatpush1.msra.mxu0 %v245
    %2242 = vmatprep.subr.mxu0 %v250
    %2243 = vmatpush1.msra.mxu0 %v249
    %2244 = vmatprep.subr.mxu0 %v254
    %2245 = vmatpush1.msra.mxu0 %v253
    %2246 = vmatprep.subr.mxu0 %v258
    %2247 = vmatpush1.msra.mxu0 %v257
    %2248 = vmatprep.subr.mxu0 %v262
    %2249 = vmatpush1.msra.mxu0 %v261
    %2250 = vmatprep.subr.mxu0 %v266
    %2251 = vmatpush1.msra.mxu0 %v265
    %2252 = vmatprep.subr.mxu0 %v270
    %2253 = vmatpush1.msra.mxu0 %v269
    %2254 = vmatprep.subr.mxu0 %v274
    %2255 = vmatpush1.msra.mxu0 %v273
    %2256 = vmatprep.subr.mxu0 %v278
    %2257 = vmatpush1.msra.mxu0 %v277
    %2258 = vmatprep.subr.mxu0 %v282
    %2259 = vmatpush1.msra.mxu0 %v281
    %2260 = vmatprep.subr.mxu0 0.0
    %2261 = vmatpush1.msra.mxu0 0.0
    %2262 = vmatprep.subr.mxu0 0.0
    %2263 = vmatpush1.msra.mxu0 0.0
    %2264 = vmatprep.subr.mxu0 0.0
    %2265 = vmatpush1.msra.mxu0 0.0
    %2266 = vmatprep.subr.mxu0 0.0
    %2267 = vmatpush1.msra.mxu0 0.0
    %2268 = vmatprep.subr.mxu0 0.0
    %2269 = vmatpush1.msra.mxu0 0.0
    %2270 = vmatprep.subr.mxu0 0.0
    %2271 = vmatpush1.msra.mxu0 0.0
    %2272 = vmatprep.subr.mxu0 0.0
    %2273 = vmatpush1.msra.mxu0 0.0
    %2274 = vmatprep.subr.mxu0 0.0
    %2275 = vmatpush1.msra.mxu0 0.0
    %2276 = vmatprep.subr.mxu0 0.0
    %2277 = vmatpush1.msra.mxu0 0.0
    %2278 = vmatprep.subr.mxu0 0.0
    %2279 = vmatpush1.msra.mxu0 0.0
    %2280 = vmatprep.subr.mxu0 0.0
    %2281 = vmatpush1.msra.mxu0 0.0
    %2282 = vmatprep.subr.mxu0 0.0
    %2283 = vmatpush1.msra.mxu0 0.0
    %2284 = vmatprep.subr.mxu0 0.0
    %2285 = vmatpush1.msra.mxu0 0.0
    %2286 = vmatprep.subr.mxu0 0.0
    %2287 = vmatpush1.msra.mxu0 0.0
    %2288 = vmatprep.subr.mxu0 0.0
    %2289 = vmatpush1.msra.mxu0 0.0
    %2290 = vmatprep.subr.mxu0 0.0
    %2291 = vmatpush1.msra.mxu0 0.0
    %2292 = vmatprep.mubr.f32.mxu0 0.0
    %2293 = vmatmul.mubr.f32.gmra.mrb[0].mxu0 %v2227
    %v2294 = vpop.f32.mrb[0].mxu0
    %v2295 = vadd.f32 %v297, %v2294
    %v2296 = vpop.f32.mrb[0].mxu0
    %v2297 = vadd.f32 %v301, %v2296
    %2298 = vdwg.mxu0
    %2299 = vmatprep.subr.mxu0 %v224
    %2300 = vmatpush1.msra.mxu0 %v223
    %2301 = vmatprep.subr.mxu0 %v228
    %2302 = vmatpush1.msra.mxu0 %v227
    %2303 = vmatprep.subr.mxu0 %v232
    %2304 = vmatpush1.msra.mxu0 %v231
    %2305 = vmatprep.subr.mxu0 %v236
    %2306 = vmatpush1.msra.mxu0 %v235
    %2307 = vmatprep.subr.mxu0 %v240
    %2308 = vmatpush1.msra.mxu0 %v239
    %2309 = vmatprep.subr.mxu0 %v244
    %2310 = vmatpush1.msra.mxu0 %v243
    %2311 = vmatprep.subr.mxu0 %v248
    %2312 = vmatpush1.msra.mxu0 %v247
    %2313 = vmatprep.subr.mxu0 %v252
    %2314 = vmatpush1.msra.mxu0 %v251
    %2315 = vmatprep.subr.mxu0 %v256
    %2316 = vmatpush1.msra.mxu0 %v255
    %2317 = vmatprep.subr.mxu0 %v260
    %2318 = vmatpush1.msra.mxu0 %v259
    %2319 = vmatprep.subr.mxu0 %v264
    %2320 = vmatpush1.msra.mxu0 %v263
    %2321 = vmatprep.subr.mxu0 %v268
    %2322 = vmatpush1.msra.mxu0 %v267
    %2323 = vmatprep.subr.mxu0 %v272
    %2324 = vmatpush1.msra.mxu0 %v271
    %2325 = vmatprep.subr.mxu0 %v276
    %2326 = vmatpush1.msra.mxu0 %v275
    %2327 = vmatprep.subr.mxu0 %v280
    %2328 = vmatpush1.msra.mxu0 %v279
    %2329 = vmatprep.subr.mxu0 %v284
    %2330 = vmatpush1.msra.mxu0 %v283
    %2331 = vmatprep.subr.mxu0 0.0
    %2332 = vmatpush1.msra.mxu0 0.0
    %2333 = vmatprep.subr.mxu0 0.0
    %2334 = vmatpush1.msra.mxu0 0.0
    %2335 = vmatprep.subr.mxu0 0.0
    %2336 = vmatpush1.msra.mxu0 0.0
    %2337 = vmatprep.subr.mxu0 0.0
    %2338 = vmatpush1.msra.mxu0 0.0
    %2339 = vmatprep.subr.mxu0 0.0
    %2340 = vmatpush1.msra.mxu0 0.0
    %2341 = vmatprep.subr.mxu0 0.0
    %2342 = vmatpush1.msra.mxu0 0.0
    %2343 = vmatprep.subr.mxu0 0.0
    %2344 = vmatpush1.msra.mxu0 0.0
    %2345 = vmatprep.subr.mxu0 0.0
    %2346 = vmatpush1.msra.mxu0 0.0
    %2347 = vmatprep.subr.mxu0 0.0
    %2348 = vmatpush1.msra.mxu0 0.0
    %2349 = vmatprep.subr.mxu0 0.0
    %2350 = vmatpush1.msra.mxu0 0.0
    %2351 = vmatprep.subr.mxu0 0.0
    %2352 = vmatpush1.msra.mxu0 0.0
    %2353 = vmatprep.subr.mxu0 0.0
    %2354 = vmatpush1.msra.mxu0 0.0
    %2355 = vmatprep.subr.mxu0 0.0
    %2356 = vmatpush1.msra.mxu0 0.0
    %2357 = vmatprep.subr.mxu0 0.0
    %2358 = vmatpush1.msra.mxu0 0.0
    %2359 = vmatprep.subr.mxu0 0.0
    %2360 = vmatpush1.msra.mxu0 0.0
    %2361 = vmatprep.subr.mxu0 0.0
    %2362 = vmatpush1.msra.mxu0 0.0
    %2363 = vmatprep.mubr.f32.mxu0 0.0
    %2364 = vmatmul.mubr.f32.gmra.mrb[0].mxu0 %v2227
    %v2365 = vpop.f32.mrb[0].mxu0
    %v2366 = vadd.f32 %v305, %v2365
    %v2367 = vpop.f32.mrb[0].mxu0
    %v2368 = vadd.f32 %v309, %v2367
    %2369 = vdwg.mxu0
    %v2370 = vsel %vm701, %v2368, -inf
    %2371 = vmax.xlane.f32.xlu0 %v2370
    %v2372 = vpop.xlane.xlu0 %2371
    %v2373 = vsub.f32 %v2368, %v2372
    %v2374 = vmul.f32 %v2373, 1.442695
    %v2375 = vpow.pop %v2374
    %v2376 = vsel %vm701, %v2375, 0.0
    %2377 = vadd.xlane.f32.xlu0 %v2376
    %v2378 = vpop.xlane.xlu0 %2377
    %v2379 = vrcp.pop %v2378
    %v2380 = vmul.f32 %v2375, %v2379
    %2382 = vset.pattern.permute.xlu0 0
    %2383 = vperm.xlu0 %2382, %v2380
    %v2384 = vpop.permute.xlu0 %2383
    %v2386 = vmul.f32 %v2384, %v2295
    %2387 = vset.pattern.permute.xlu0 1
    %2388 = vperm.xlu0 %2387, %v2380
    %v2389 = vpop.permute.xlu0 %2388
    %v2391 = vmul.f32 %v2389, %v2297
    %v2392 = vadd.f32 %v2386, %v2391
    %2393 = vset.pattern.permute.xlu0 2
    %2394 = vperm.xlu0 %2393, %v2380
    %v2395 = vpop.permute.xlu0 %2394
    %v2397 = vmul.f32 %v2395, %v2366
    %v2398 = vadd.f32 %v2392, %v2397
    %s2399 = scalar_lea.vmem %s0, 160
    %v2400 = vld [vmem:[%s2399] sm:$0xff]
    %v2401 = vld [vmem:[%s2399 + $0x8] sm:$0xff]
    %v2402 = vld [vmem:[%s2399 + $0x10] sm:$0xff]
    %v2403 = vld [vmem:[%s2399 + $0x18] sm:$0xff]
    %2404 = vmatprep.subr.mxu0 %v78
    %2405 = vmatpush1.msra.mxu0 %v77
    %2406 = vmatprep.subr.mxu0 %v82
    %2407 = vmatpush1.msra.mxu0 %v81
    %2408 = vmatprep.subr.mxu0 %v86
    %2409 = vmatpush1.msra.mxu0 %v85
    %2410 = vmatprep.subr.mxu0 %v90
    %2411 = vmatpush1.msra.mxu0 %v89
    %2412 = vmatprep.subr.mxu0 %v94
    %2413 = vmatpush1.msra.mxu0 %v93
    %2414 = vmatprep.subr.mxu0 %v98
    %2415 = vmatpush1.msra.mxu0 %v97
    %2416 = vmatprep.subr.mxu0 %v102
    %2417 = vmatpush1.msra.mxu0 %v101
    %2418 = vmatprep.subr.mxu0 %v106
    %2419 = vmatpush1.msra.mxu0 %v105
    %2420 = vmatprep.subr.mxu0 %v110
    %2421 = vmatpush1.msra.mxu0 %v109
    %2422 = vmatprep.subr.mxu0 %v114
    %2423 = vmatpush1.msra.mxu0 %v113
    %2424 = vmatprep.subr.mxu0 %v118
    %2425 = vmatpush1.msra.mxu0 %v117
    %2426 = vmatprep.subr.mxu0 %v122
    %2427 = vmatpush1.msra.mxu0 %v121
    %2428 = vmatprep.subr.mxu0 %v126
    %2429 = vmatpush1.msra.mxu0 %v125
    %2430 = vmatprep.subr.mxu0 %v130
    %2431 = vmatpush1.msra.mxu0 %v129
    %2432 = vmatprep.subr.mxu0 %v134
    %2433 = vmatpush1.msra.mxu0 %v133
    %2434 = vmatprep.subr.mxu0 %v138
    %2435 = vmatpush1.msra.mxu0 %v137
    %2436 = vmatprep.subr.mxu0 %v142
    %2437 = vmatpush1.msra.mxu0 %v141
    %2438 = vmatprep.subr.mxu0 %v146
    %2439 = vmatpush1.msra.mxu0 %v145
    %2440 = vmatprep.subr.mxu0 %v150
    %2441 = vmatpush1.msra.mxu0 %v149
    %2442 = vmatprep.subr.mxu0 %v154
    %2443 = vmatpush1.msra.mxu0 %v153
    %2444 = vmatprep.subr.mxu0 %v158
    %2445 = vmatpush1.msra.mxu0 %v157
    %2446 = vmatprep.subr.mxu0 %v162
    %2447 = vmatpush1.msra.mxu0 %v161
    %2448 = vmatprep.subr.mxu0 %v166
    %2449 = vmatpush1.msra.mxu0 %v165
    %2450 = vmatprep.subr.mxu0 %v170
    %2451 = vmatpush1.msra.mxu0 %v169
    %2452 = vmatprep.subr.mxu0 %v174
    %2453 = vmatpush1.msra.mxu0 %v173
    %2454 = vmatprep.subr.mxu0 %v178
    %2455 = vmatpush1.msra.mxu0 %v177
    %2456 = vmatprep.subr.mxu0 %v182
    %2457 = vmatpush1.msra.mxu0 %v181
    %2458 = vmatprep.subr.mxu0 %v186
    %2459 = vmatpush1.msra.mxu0 %v185
    %2460 = vmatprep.subr.mxu0 %v190
    %2461 = vmatpush1.msra.mxu0 %v189
    %2462 = vmatprep.subr.mxu0 %v194
    %2463 = vmatpush1.msra.mxu0 %v193
    %2464 = vmatprep.subr.mxu0 %v198
    %2465 = vmatpush1.msra.mxu0 %v197
    %2466 = vmatprep.subr.mxu0 %v202
    %2467 = vmatpush1.msra.mxu0 %v201
    %2468 = vmatprep.mubr.f32.mxu0 %v2398
    %2469 = vmatmul.mubr.f32.gmra.mrb[0].mxu0 %v2156
    %v2470 = vpop.f32.mrb[0].mxu0
    %v2471 = vadd.f32 0.0, %v2470
    %v2472 = vpop.f32.mrb[0].mxu0
    %v2473 = vadd.f32 0.0, %v2472
    %2474 = vdwg.mxu0
    %2475 = vmatprep.subr.mxu0 %v80
    %2476 = vmatpush1.msra.mxu0 %v79
    %2477 = vmatprep.subr.mxu0 %v84
    %2478 = vmatpush1.msra.mxu0 %v83
    %2479 = vmatprep.subr.mxu0 %v88
    %2480 = vmatpush1.msra.mxu0 %v87
    %2481 = vmatprep.subr.mxu0 %v92
    %2482 = vmatpush1.msra.mxu0 %v91
    %2483 = vmatprep.subr.mxu0 %v96
    %2484 = vmatpush1.msra.mxu0 %v95
    %2485 = vmatprep.subr.mxu0 %v100
    %2486 = vmatpush1.msra.mxu0 %v99
    %2487 = vmatprep.subr.mxu0 %v104
    %2488 = vmatpush1.msra.mxu0 %v103
    %2489 = vmatprep.subr.mxu0 %v108
    %2490 = vmatpush1.msra.mxu0 %v107
    %2491 = vmatprep.subr.mxu0 %v112
    %2492 = vmatpush1.msra.mxu0 %v111
    %2493 = vmatprep.subr.mxu0 %v116
    %2494 = vmatpush1.msra.mxu0 %v115
    %2495 = vmatprep.subr.mxu0 %v120
    %2496 = vmatpush1.msra.mxu0 %v119
    %2497 = vmatprep.subr.mxu0 %v124
    %2498 = vmatpush1.msra.mxu0 %v123
    %2499 = vmatprep.subr.mxu0 %v128
    %2500 = vmatpush1.msra.mxu0 %v127
    %2501 = vmatprep.subr.mxu0 %v132
    %2502 = vmatpush1.msra.mxu0 %v131
    %2503 = vmatprep.subr.mxu0 %v136
    %2504 = vmatpush1.msra.mxu0 %v135
    %2505 = vmatprep.subr.mxu0 %v140
    %2506 = vmatpush1.msra.mxu0 %v139
    %2507 = vmatprep.subr.mxu0 %v144
    %2508 = vmatpush1.msra.mxu0 %v143
    %2509 = vmatprep.subr.mxu0 %v148
    %2510 = vmatpush1.msra.mxu0 %v147
    %2511 = vmatprep.subr.mxu0 %v152
    %2512 = vmatpush1.msra.mxu0 %v151
    %2513 = vmatprep.subr.mxu0 %v156
    %2514 = vmatpush1.msra.mxu0 %v155
    %2515 = vmatprep.subr.mxu0 %v160
    %2516 = vmatpush1.msra.mxu0 %v159
    %2517 = vmatprep.subr.mxu0 %v164
    %2518 = vmatpush1.msra.mxu0 %v163
    %2519 = vmatprep.subr.mxu0 %v168
    %2520 = vmatpush1.msra.mxu0 %v167
    %2521 = vmatprep.subr.mxu0 %v172
    %2522 = vmatpush1.msra.mxu0 %v171
    %2523 = vmatprep.subr.mxu0 %v176
    %2524 = vmatpush1.msra.mxu0 %v175
    %2525 = vmatprep.subr.mxu0 %v180
    %2526 = vmatpush1.msra.mxu0 %v179
    %2527 = vmatprep.subr.mxu0 %v184
    %2528 = vmatpush1.msra.mxu0 %v183
    %2529 = vmatprep.subr.mxu0 %v188
    %2530 = vmatpush1.msra.mxu0 %v187
    %2531 = vmatprep.subr.mxu0 %v192
    %2532 = vmatpush1.msra.mxu0 %v191
    %2533 = vmatprep.subr.mxu0 %v196
    %2534 = vmatpush1.msra.mxu0 %v195
    %2535 = vmatprep.subr.mxu0 %v200
    %2536 = vmatpush1.msra.mxu0 %v199
    %2537 = vmatprep.subr.mxu0 %v204
    %2538 = vmatpush1.msra.mxu0 %v203
    %2539 = vmatprep.mubr.f32.mxu0 %v2398
    %2540 = vmatmul.mubr.f32.gmra.mrb[0].mxu0 %v2156
    %v2541 = vpop.f32.mrb[0].mxu0
    %v2542 = vadd.f32 0.0, %v2541
    %v2543 = vpop.f32.mrb[0].mxu0
    %v2544 = vadd.f32 0.0, %v2543
    %2545 = vdwg.mxu0
    %v2546 = vadd.f32 %v2400, %v2471
    %v2547 = vadd.f32 %v2401, %v2473
    %v2548 = vadd.f32 %v2402, %v2542
    %v2549 = vadd.f32 %v2403, %v2544
    %v2550 = vxor.u32 %v2546, 2147483648
    %v2551 = vxor.u32 %v2547, 2147483648
    %v2552 = vxor.u32 %v2548, 2147483648
    %v2553 = vmul.f32 %v2550, 1.442695
    %v2554 = vpow.pop %v2553
    %v2555 = vmul.f32 %v2551, 1.442695
    %v2556 = vpow.pop %v2555
    %v2557 = vmul.f32 %v2552, 1.442695
    %v2558 = vpow.pop %v2557
    %v2559 = vadd.f32 %v2554, 1.0
    %v2560 = vadd.f32 %v2556, 1.0
    %v2561 = vadd.f32 %v2558, 1.0
    %v2562 = vrcp.pop %v2559
    %v2563 = vmul.f32 1.0, %v2562
    %v2564 = vrcp.pop %v2560
    %v2565 = vmul.f32 1.0, %v2564
    %v2566 = vrcp.pop %v2561
    %v2567 = vmul.f32 1.0, %v2566
    %v2568 = vtanh.pop %v2549
    %v2569 = vmul.f32 %v2563, %v2154
    %v2570 = vmul.f32 %v2565, %v2568
    %v2571 = vadd.f32 %v2569, %v2570
    %v2572 = vtanh.pop %v2571
    %v2573 = vmul.f32 %v2572, %v2567
    %2574 = vmatprep.subr.mxu0 0.0
    %2575 = vmatpush1.msra.mxu0 %v205
    %2576 = vmatprep.subr.mxu0 0.0
    %2577 = vmatpush1.msra.mxu0 %v206
    %2578 = vmatprep.subr.mxu0 0.0
    %2579 = vmatpush1.msra.mxu0 %v207
    %2580 = vmatprep.subr.mxu0 0.0
    %2581 = vmatpush1.msra.mxu0 %v208
    %2582 = vmatprep.subr.mxu0 0.0
    %2583 = vmatpush1.msra.mxu0 %v209
    %2584 = vmatprep.subr.mxu0 0.0
    %2585 = vmatpush1.msra.mxu0 %v210
    %2586 = vmatprep.subr.mxu0 0.0
    %2587 = vmatpush1.msra.mxu0 %v211
    %2588 = vmatprep.subr.mxu0 0.0
    %2589 = vmatpush1.msra.mxu0 %v212
    %2590 = vmatprep.subr.mxu0 0.0
    %2591 = vmatpush1.msra.mxu0 %v213
    %2592 = vmatprep.subr.mxu0 0.0
    %2593 = vmatpush1.msra.mxu0 %v214
    %2594 = vmatprep.subr.mxu0 0.0
    %2595 = vmatpush1.msra.mxu0 %v215
    %2596 = vmatprep.subr.mxu0 0.0
    %2597 = vmatpush1.msra.mxu0 %v216
    %2598 = vmatprep.subr.mxu0 0.0
    %2599 = vmatpush1.msra.mxu0 %v217
    %2600 = vmatprep.subr.mxu0 0.0
    %2601 = vmatpush1.msra.mxu0 %v218
    %2602 = vmatprep.subr.mxu0 0.0
    %2603 = vmatpush1.msra.mxu0 %v219
    %2604 = vmatprep.subr.mxu0 0.0
    %2605 = vmatpush1.msra.mxu0 %v220
    %2606 = vmatprep.subr.mxu0 0.0
    %2607 = vmatpush1.msra.mxu0 0.0
    %2608 = vmatprep.subr.mxu0 0.0
    %2609 = vmatpush1.msra.mxu0 0.0
    %2610 = vmatprep.subr.mxu0 0.0
    %2611 = vmatpush1.msra.mxu0 0.0
    %2612 = vmatprep.subr.mxu0 0.0
    %2613 = vmatpush1.msra.mxu0 0.0
    %2614 = vmatprep.subr.mxu0 0.0
    %2615 = vmatpush1.msra.mxu0 0.0
    %2616 = vmatprep.subr.mxu0 0.0
    %2617 = vmatpush1.msra.mxu0 0.0
    %2618 = vmatprep.subr.mxu0 0.0
    %2619 = vmatpush1.msra.mxu0 0.0
    %2620 = vmatprep.subr.mxu0 0.0
    %2621 = vmatpush1.msra.mxu0 0.0
    %2622 = vmatprep.subr.mxu0 0.0
    %2623 = vmatpush1.msra.mxu0 0.0
    %2624 = vmatprep.subr.mxu0 0.0
    %2625 = vmatpush1.msra.mxu0 0.0
    %2626 = vmatprep.subr.mxu0 0.0
    %2627 = vmatpush1.msra.mxu0 0.0
    %2628 = vmatprep.subr.mxu0 0.0
    %2629 = vmatpush1.msra.mxu0 0.0
    %2630 = vmatprep.subr.mxu0 0.0
    %2631 = vmatpush1.msra.mxu0 0.0
    %2632 = vmatprep.subr.mxu0 0.0
    %2633 = vmatpush1.msra.mxu0 0.0
    %2634 = vmatprep.subr.mxu0 0.0
    %2635 = vmatpush1.msra.mxu0 0.0
    %2636 = vmatprep.subr.mxu0 0.0
    %2637 = vmatpush1.msra.mxu0 0.0
    %2638 = vmatprep.mubr.f32.mxu0 0.0
    %2639 = vmatmul.mubr.f32.gmra.mrb[0].mxu0 %v2571
    %v2640 = vpop.f32.mrb[0].mxu0
    %v2641 = vadd.f32 %v290, %v2640
    %v2642 = vpop.f32.mrb[0].mxu0
    %2643 = vdwg.mxu0
    %v2644 = vmax.f32 %v2641, 0.0
    %2645 = vmatprep.subr.mxu0 %v222
    %2646 = vmatpush1.msra.mxu0 %v221
    %2647 = vmatprep.subr.mxu0 %v226
    %2648 = vmatpush1.msra.mxu0 %v225
    %2649 = vmatprep.subr.mxu0 %v230
    %2650 = vmatpush1.msra.mxu0 %v229
    %2651 = vmatprep.subr.mxu0 %v234
    %2652 = vmatpush1.msra.mxu0 %v233
    %2653 = vmatprep.subr.mxu0 %v238
    %2654 = vmatpush1.msra.mxu0 %v237
    %2655 = vmatprep.subr.mxu0 %v242
    %2656 = vmatpush1.msra.mxu0 %v241
    %2657 = vmatprep.subr.mxu0 %v246
    %2658 = vmatpush1.msra.mxu0 %v245
    %2659 = vmatprep.subr.mxu0 %v250
    %2660 = vmatpush1.msra.mxu0 %v249
    %2661 = vmatprep.subr.mxu0 %v254
    %2662 = vmatpush1.msra.mxu0 %v253
    %2663 = vmatprep.subr.mxu0 %v258
    %2664 = vmatpush1.msra.mxu0 %v257
    %2665 = vmatprep.subr.mxu0 %v262
    %2666 = vmatpush1.msra.mxu0 %v261
    %2667 = vmatprep.subr.mxu0 %v266
    %2668 = vmatpush1.msra.mxu0 %v265
    %2669 = vmatprep.subr.mxu0 %v270
    %2670 = vmatpush1.msra.mxu0 %v269
    %2671 = vmatprep.subr.mxu0 %v274
    %2672 = vmatpush1.msra.mxu0 %v273
    %2673 = vmatprep.subr.mxu0 %v278
    %2674 = vmatpush1.msra.mxu0 %v277
    %2675 = vmatprep.subr.mxu0 %v282
    %2676 = vmatpush1.msra.mxu0 %v281
    %2677 = vmatprep.subr.mxu0 0.0
    %2678 = vmatpush1.msra.mxu0 0.0
    %2679 = vmatprep.subr.mxu0 0.0
    %2680 = vmatpush1.msra.mxu0 0.0
    %2681 = vmatprep.subr.mxu0 0.0
    %2682 = vmatpush1.msra.mxu0 0.0
    %2683 = vmatprep.subr.mxu0 0.0
    %2684 = vmatpush1.msra.mxu0 0.0
    %2685 = vmatprep.subr.mxu0 0.0
    %2686 = vmatpush1.msra.mxu0 0.0
    %2687 = vmatprep.subr.mxu0 0.0
    %2688 = vmatpush1.msra.mxu0 0.0
    %2689 = vmatprep.subr.mxu0 0.0
    %2690 = vmatpush1.msra.mxu0 0.0
    %2691 = vmatprep.subr.mxu0 0.0
    %2692 = vmatpush1.msra.mxu0 0.0
    %2693 = vmatprep.subr.mxu0 0.0
    %2694 = vmatpush1.msra.mxu0 0.0
    %2695 = vmatprep.subr.mxu0 0.0
    %2696 = vmatpush1.msra.mxu0 0.0
    %2697 = vmatprep.subr.mxu0 0.0
    %2698 = vmatpush1.msra.mxu0 0.0
    %2699 = vmatprep.subr.mxu0 0.0
    %2700 = vmatpush1.msra.mxu0 0.0
    %2701 = vmatprep.subr.mxu0 0.0
    %2702 = vmatpush1.msra.mxu0 0.0
    %2703 = vmatprep.subr.mxu0 0.0
    %2704 = vmatpush1.msra.mxu0 0.0
    %2705 = vmatprep.subr.mxu0 0.0
    %2706 = vmatpush1.msra.mxu0 0.0
    %2707 = vmatprep.subr.mxu0 0.0
    %2708 = vmatpush1.msra.mxu0 0.0
    %2709 = vmatprep.mubr.f32.mxu0 0.0
    %2710 = vmatmul.mubr.f32.gmra.mrb[0].mxu0 %v2644
    %v2711 = vpop.f32.mrb[0].mxu0
    %v2712 = vadd.f32 %v297, %v2711
    %v2713 = vpop.f32.mrb[0].mxu0
    %v2714 = vadd.f32 %v301, %v2713
    %2715 = vdwg.mxu0
    %2716 = vmatprep.subr.mxu0 %v224
    %2717 = vmatpush1.msra.mxu0 %v223
    %2718 = vmatprep.subr.mxu0 %v228
    %2719 = vmatpush1.msra.mxu0 %v227
    %2720 = vmatprep.subr.mxu0 %v232
    %2721 = vmatpush1.msra.mxu0 %v231
    %2722 = vmatprep.subr.mxu0 %v236
    %2723 = vmatpush1.msra.mxu0 %v235
    %2724 = vmatprep.subr.mxu0 %v240
    %2725 = vmatpush1.msra.mxu0 %v239
    %2726 = vmatprep.subr.mxu0 %v244
    %2727 = vmatpush1.msra.mxu0 %v243
    %2728 = vmatprep.subr.mxu0 %v248
    %2729 = vmatpush1.msra.mxu0 %v247
    %2730 = vmatprep.subr.mxu0 %v252
    %2731 = vmatpush1.msra.mxu0 %v251
    %2732 = vmatprep.subr.mxu0 %v256
    %2733 = vmatpush1.msra.mxu0 %v255
    %2734 = vmatprep.subr.mxu0 %v260
    %2735 = vmatpush1.msra.mxu0 %v259
    %2736 = vmatprep.subr.mxu0 %v264
    %2737 = vmatpush1.msra.mxu0 %v263
    %2738 = vmatprep.subr.mxu0 %v268
    %2739 = vmatpush1.msra.mxu0 %v267
    %2740 = vmatprep.subr.mxu0 %v272
    %2741 = vmatpush1.msra.mxu0 %v271
    %2742 = vmatprep.subr.mxu0 %v276
    %2743 = vmatpush1.msra.mxu0 %v275
    %2744 = vmatprep.subr.mxu0 %v280
    %2745 = vmatpush1.msra.mxu0 %v279
    %2746 = vmatprep.subr.mxu0 %v284
    %2747 = vmatpush1.msra.mxu0 %v283
    %2748 = vmatprep.subr.mxu0 0.0
    %2749 = vmatpush1.msra.mxu0 0.0
    %2750 = vmatprep.subr.mxu0 0.0
    %2751 = vmatpush1.msra.mxu0 0.0
    %2752 = vmatprep.subr.mxu0 0.0
    %2753 = vmatpush1.msra.mxu0 0.0
    %2754 = vmatprep.subr.mxu0 0.0
    %2755 = vmatpush1.msra.mxu0 0.0
    %2756 = vmatprep.subr.mxu0 0.0
    %2757 = vmatpush1.msra.mxu0 0.0
    %2758 = vmatprep.subr.mxu0 0.0
    %2759 = vmatpush1.msra.mxu0 0.0
    %2760 = vmatprep.subr.mxu0 0.0
    %2761 = vmatpush1.msra.mxu0 0.0
    %2762 = vmatprep.subr.mxu0 0.0
    %2763 = vmatpush1.msra.mxu0 0.0
    %2764 = vmatprep.subr.mxu0 0.0
    %2765 = vmatpush1.msra.mxu0 0.0
    %2766 = vmatprep.subr.mxu0 0.0
    %2767 = vmatpush1.msra.mxu0 0.0
    %2768 = vmatprep.subr.mxu0 0.0
    %2769 = vmatpush1.msra.mxu0 0.0
    %2770 = vmatprep.subr.mxu0 0.0
    %2771 = vmatpush1.msra.mxu0 0.0
    %2772 = vmatprep.subr.mxu0 0.0
    %2773 = vmatpush1.msra.mxu0 0.0
    %2774 = vmatprep.subr.mxu0 0.0
    %2775 = vmatpush1.msra.mxu0 0.0
    %2776 = vmatprep.subr.mxu0 0.0
    %2777 = vmatpush1.msra.mxu0 0.0
    %2778 = vmatprep.subr.mxu0 0.0
    %2779 = vmatpush1.msra.mxu0 0.0
    %2780 = vmatprep.mubr.f32.mxu0 0.0
    %2781 = vmatmul.mubr.f32.gmra.mrb[0].mxu0 %v2644
    %v2782 = vpop.f32.mrb[0].mxu0
    %v2783 = vadd.f32 %v305, %v2782
    %v2784 = vpop.f32.mrb[0].mxu0
    %v2785 = vadd.f32 %v309, %v2784
    %2786 = vdwg.mxu0
    %v2787 = vsel %vm701, %v2785, -inf
    %2788 = vmax.xlane.f32.xlu0 %v2787
    %v2789 = vpop.xlane.xlu0 %2788
    %v2790 = vsub.f32 %v2785, %v2789
    %v2791 = vmul.f32 %v2790, 1.442695
    %v2792 = vpow.pop %v2791
    %v2793 = vsel %vm701, %v2792, 0.0
    %2794 = vadd.xlane.f32.xlu0 %v2793
    %v2795 = vpop.xlane.xlu0 %2794
    %v2796 = vrcp.pop %v2795
    %v2797 = vmul.f32 %v2792, %v2796
    %2799 = vset.pattern.permute.xlu0 0
    %2800 = vperm.xlu0 %2799, %v2797
    %v2801 = vpop.permute.xlu0 %2800
    %v2803 = vmul.f32 %v2801, %v2712
    %2804 = vset.pattern.permute.xlu0 1
    %2805 = vperm.xlu0 %2804, %v2797
    %v2806 = vpop.permute.xlu0 %2805
    %v2808 = vmul.f32 %v2806, %v2714
    %v2809 = vadd.f32 %v2803, %v2808
    %2810 = vset.pattern.permute.xlu0 2
    %2811 = vperm.xlu0 %2810, %v2797
    %v2812 = vpop.permute.xlu0 %2811
    %v2814 = vmul.f32 %v2812, %v2783
    %v2815 = vadd.f32 %v2809, %v2814
    %s2816 = scalar_lea.vmem %s0, 192
    %v2817 = vld [vmem:[%s2816] sm:$0xff]
    %v2818 = vld [vmem:[%s2816 + $0x8] sm:$0xff]
    %v2819 = vld [vmem:[%s2816 + $0x10] sm:$0xff]
    %v2820 = vld [vmem:[%s2816 + $0x18] sm:$0xff]
    %2821 = vmatprep.subr.mxu0 %v78
    %2822 = vmatpush1.msra.mxu0 %v77
    %2823 = vmatprep.subr.mxu0 %v82
    %2824 = vmatpush1.msra.mxu0 %v81
    %2825 = vmatprep.subr.mxu0 %v86
    %2826 = vmatpush1.msra.mxu0 %v85
    %2827 = vmatprep.subr.mxu0 %v90
    %2828 = vmatpush1.msra.mxu0 %v89
    %2829 = vmatprep.subr.mxu0 %v94
    %2830 = vmatpush1.msra.mxu0 %v93
    %2831 = vmatprep.subr.mxu0 %v98
    %2832 = vmatpush1.msra.mxu0 %v97
    %2833 = vmatprep.subr.mxu0 %v102
    %2834 = vmatpush1.msra.mxu0 %v101
    %2835 = vmatprep.subr.mxu0 %v106
    %2836 = vmatpush1.msra.mxu0 %v105
    %2837 = vmatprep.subr.mxu0 %v110
    %2838 = vmatpush1.msra.mxu0 %v109
    %2839 = vmatprep.subr.mxu0 %v114
    %2840 = vmatpush1.msra.mxu0 %v113
    %2841 = vmatprep.subr.mxu0 %v118
    %2842 = vmatpush1.msra.mxu0 %v117
    %2843 = vmatprep.subr.mxu0 %v122
    %2844 = vmatpush1.msra.mxu0 %v121
    %2845 = vmatprep.subr.mxu0 %v126
    %2846 = vmatpush1.msra.mxu0 %v125
    %2847 = vmatprep.subr.mxu0 %v130
    %2848 = vmatpush1.msra.mxu0 %v129
    %2849 = vmatprep.subr.mxu0 %v134
    %2850 = vmatpush1.msra.mxu0 %v133
    %2851 = vmatprep.subr.mxu0 %v138
    %2852 = vmatpush1.msra.mxu0 %v137
    %2853 = vmatprep.subr.mxu0 %v142
    %2854 = vmatpush1.msra.mxu0 %v141
    %2855 = vmatprep.subr.mxu0 %v146
    %2856 = vmatpush1.msra.mxu0 %v145
    %2857 = vmatprep.subr.mxu0 %v150
    %2858 = vmatpush1.msra.mxu0 %v149
    %2859 = vmatprep.subr.mxu0 %v154
    %2860 = vmatpush1.msra.mxu0 %v153
    %2861 = vmatprep.subr.mxu0 %v158
    %2862 = vmatpush1.msra.mxu0 %v157
    %2863 = vmatprep.subr.mxu0 %v162
    %2864 = vmatpush1.msra.mxu0 %v161
    %2865 = vmatprep.subr.mxu0 %v166
    %2866 = vmatpush1.msra.mxu0 %v165
    %2867 = vmatprep.subr.mxu0 %v170
    %2868 = vmatpush1.msra.mxu0 %v169
    %2869 = vmatprep.subr.mxu0 %v174
    %2870 = vmatpush1.msra.mxu0 %v173
    %2871 = vmatprep.subr.mxu0 %v178
    %2872 = vmatpush1.msra.mxu0 %v177
    %2873 = vmatprep.subr.mxu0 %v182
    %2874 = vmatpush1.msra.mxu0 %v181
    %2875 = vmatprep.subr.mxu0 %v186
    %2876 = vmatpush1.msra.mxu0 %v185
    %2877 = vmatprep.subr.mxu0 %v190
    %2878 = vmatpush1.msra.mxu0 %v189
    %2879 = vmatprep.subr.mxu0 %v194
    %2880 = vmatpush1.msra.mxu0 %v193
    %2881 = vmatprep.subr.mxu0 %v198
    %2882 = vmatpush1.msra.mxu0 %v197
    %2883 = vmatprep.subr.mxu0 %v202
    %2884 = vmatpush1.msra.mxu0 %v201
    %2885 = vmatprep.mubr.f32.mxu0 %v2815
    %2886 = vmatmul.mubr.f32.gmra.mrb[0].mxu0 %v2573
    %v2887 = vpop.f32.mrb[0].mxu0
    %v2888 = vadd.f32 0.0, %v2887
    %v2889 = vpop.f32.mrb[0].mxu0
    %v2890 = vadd.f32 0.0, %v2889
    %2891 = vdwg.mxu0
    %2892 = vmatprep.subr.mxu0 %v80
    %2893 = vmatpush1.msra.mxu0 %v79
    %2894 = vmatprep.subr.mxu0 %v84
    %2895 = vmatpush1.msra.mxu0 %v83
    %2896 = vmatprep.subr.mxu0 %v88
    %2897 = vmatpush1.msra.mxu0 %v87
    %2898 = vmatprep.subr.mxu0 %v92
    %2899 = vmatpush1.msra.mxu0 %v91
    %2900 = vmatprep.subr.mxu0 %v96
    %2901 = vmatpush1.msra.mxu0 %v95
    %2902 = vmatprep.subr.mxu0 %v100
    %2903 = vmatpush1.msra.mxu0 %v99
    %2904 = vmatprep.subr.mxu0 %v104
    %2905 = vmatpush1.msra.mxu0 %v103
    %2906 = vmatprep.subr.mxu0 %v108
    %2907 = vmatpush1.msra.mxu0 %v107
    %2908 = vmatprep.subr.mxu0 %v112
    %2909 = vmatpush1.msra.mxu0 %v111
    %2910 = vmatprep.subr.mxu0 %v116
    %2911 = vmatpush1.msra.mxu0 %v115
    %2912 = vmatprep.subr.mxu0 %v120
    %2913 = vmatpush1.msra.mxu0 %v119
    %2914 = vmatprep.subr.mxu0 %v124
    %2915 = vmatpush1.msra.mxu0 %v123
    %2916 = vmatprep.subr.mxu0 %v128
    %2917 = vmatpush1.msra.mxu0 %v127
    %2918 = vmatprep.subr.mxu0 %v132
    %2919 = vmatpush1.msra.mxu0 %v131
    %2920 = vmatprep.subr.mxu0 %v136
    %2921 = vmatpush1.msra.mxu0 %v135
    %2922 = vmatprep.subr.mxu0 %v140
    %2923 = vmatpush1.msra.mxu0 %v139
    %2924 = vmatprep.subr.mxu0 %v144
    %2925 = vmatpush1.msra.mxu0 %v143
    %2926 = vmatprep.subr.mxu0 %v148
    %2927 = vmatpush1.msra.mxu0 %v147
    %2928 = vmatprep.subr.mxu0 %v152
    %2929 = vmatpush1.msra.mxu0 %v151
    %2930 = vmatprep.subr.mxu0 %v156
    %2931 = vmatpush1.msra.mxu0 %v155
    %2932 = vmatprep.subr.mxu0 %v160
    %2933 = vmatpush1.msra.mxu0 %v159
    %2934 = vmatprep.subr.mxu0 %v164
    %2935 = vmatpush1.msra.mxu0 %v163
    %2936 = vmatprep.subr.mxu0 %v168
    %2937 = vmatpush1.msra.mxu0 %v167
    %2938 = vmatprep.subr.mxu0 %v172
    %2939 = vmatpush1.msra.mxu0 %v171
    %2940 = vmatprep.subr.mxu0 %v176
    %2941 = vmatpush1.msra.mxu0 %v175
    %2942 = vmatprep.subr.mxu0 %v180
    %2943 = vmatpush1.msra.mxu0 %v179
    %2944 = vmatprep.subr.mxu0 %v184
    %2945 = vmatpush1.msra.mxu0 %v183
    %2946 = vmatprep.subr.mxu0 %v188
    %2947 = vmatpush1.msra.mxu0 %v187
    %2948 = vmatprep.subr.mxu0 %v192
    %2949 = vmatpush1.msra.mxu0 %v191
    %2950 = vmatprep.subr.mxu0 %v196
    %2951 = vmatpush1.msra.mxu0 %v195
    %2952 = vmatprep.subr.mxu0 %v200
    %2953 = vmatpush1.msra.mxu0 %v199
    %2954 = vmatprep.subr.mxu0 %v204
    %2955 = vmatpush1.msra.mxu0 %v203
    %2956 = vmatprep.mubr.f32.mxu0 %v2815
    %2957 = vmatmul.mubr.f32.gmra.mrb[0].mxu0 %v2573
    %v2958 = vpop.f32.mrb[0].mxu0
    %v2959 = vadd.f32 0.0, %v2958
    %v2960 = vpop.f32.mrb[0].mxu0
    %v2961 = vadd.f32 0.0, %v2960
    %2962 = vdwg.mxu0
    %v2963 = vadd.f32 %v2817, %v2888
    %v2964 = vadd.f32 %v2818, %v2890
    %v2965 = vadd.f32 %v2819, %v2959
    %v2966 = vadd.f32 %v2820, %v2961
    %v2967 = vxor.u32 %v2963, 2147483648
    %v2968 = vxor.u32 %v2964, 2147483648
    %v2969 = vxor.u32 %v2965, 2147483648
    %v2970 = vmul.f32 %v2967, 1.442695
    %v2971 = vpow.pop %v2970
    %v2972 = vmul.f32 %v2968, 1.442695
    %v2973 = vpow.pop %v2972
    %v2974 = vmul.f32 %v2969, 1.442695
    %v2975 = vpow.pop %v2974
    %v2976 = vadd.f32 %v2971, 1.0
    %v2977 = vadd.f32 %v2973, 1.0
    %v2978 = vadd.f32 %v2975, 1.0
    %v2979 = vrcp.pop %v2976
    %v2980 = vmul.f32 1.0, %v2979
    %v2981 = vrcp.pop %v2977
    %v2982 = vmul.f32 1.0, %v2981
    %v2983 = vrcp.pop %v2978
    %v2984 = vmul.f32 1.0, %v2983
    %v2985 = vtanh.pop %v2966
    %v2986 = vmul.f32 %v2980, %v2571
    %v2987 = vmul.f32 %v2982, %v2985
    %v2988 = vadd.f32 %v2986, %v2987
    %v2989 = vtanh.pop %v2988
    %v2990 = vmul.f32 %v2989, %v2984
    %2991 = vmatprep.subr.mxu0 0.0
    %2992 = vmatpush1.msra.mxu0 %v205
    %2993 = vmatprep.subr.mxu0 0.0
    %2994 = vmatpush1.msra.mxu0 %v206
    %2995 = vmatprep.subr.mxu0 0.0
    %2996 = vmatpush1.msra.mxu0 %v207
    %2997 = vmatprep.subr.mxu0 0.0
    %2998 = vmatpush1.msra.mxu0 %v208
    %2999 = vmatprep.subr.mxu0 0.0
    %3000 = vmatpush1.msra.mxu0 %v209
    %3001 = vmatprep.subr.mxu0 0.0
    %3002 = vmatpush1.msra.mxu0 %v210
    %3003 = vmatprep.subr.mxu0 0.0
    %3004 = vmatpush1.msra.mxu0 %v211
    %3005 = vmatprep.subr.mxu0 0.0
    %3006 = vmatpush1.msra.mxu0 %v212
    %3007 = vmatprep.subr.mxu0 0.0
    %3008 = vmatpush1.msra.mxu0 %v213
    %3009 = vmatprep.subr.mxu0 0.0
    %3010 = vmatpush1.msra.mxu0 %v214
    %3011 = vmatprep.subr.mxu0 0.0
    %3012 = vmatpush1.msra.mxu0 %v215
    %3013 = vmatprep.subr.mxu0 0.0
    %3014 = vmatpush1.msra.mxu0 %v216
    %3015 = vmatprep.subr.mxu0 0.0
    %3016 = vmatpush1.msra.mxu0 %v217
    %3017 = vmatprep.subr.mxu0 0.0
    %3018 = vmatpush1.msra.mxu0 %v218
    %3019 = vmatprep.subr.mxu0 0.0
    %3020 = vmatpush1.msra.mxu0 %v219
    %3021 = vmatprep.subr.mxu0 0.0
    %3022 = vmatpush1.msra.mxu0 %v220
    %3023 = vmatprep.subr.mxu0 0.0
    %3024 = vmatpush1.msra.mxu0 0.0
    %3025 = vmatprep.subr.mxu0 0.0
    %3026 = vmatpush1.msra.mxu0 0.0
    %3027 = vmatprep.subr.mxu0 0.0
    %3028 = vmatpush1.msra.mxu0 0.0
    %3029 = vmatprep.subr.mxu0 0.0
    %3030 = vmatpush1.msra.mxu0 0.0
    %3031 = vmatprep.subr.mxu0 0.0
    %3032 = vmatpush1.msra.mxu0 0.0
    %3033 = vmatprep.subr.mxu0 0.0
    %3034 = vmatpush1.msra.mxu0 0.0
    %3035 = vmatprep.subr.mxu0 0.0
    %3036 = vmatpush1.msra.mxu0 0.0
    %3037 = vmatprep.subr.mxu0 0.0
    %3038 = vmatpush1.msra.mxu0 0.0
    %3039 = vmatprep.subr.mxu0 0.0
    %3040 = vmatpush1.msra.mxu0 0.0
    %3041 = vmatprep.subr.mxu0 0.0
    %3042 = vmatpush1.msra.mxu0 0.0
    %3043 = vmatprep.subr.mxu0 0.0
    %3044 = vmatpush1.msra.mxu0 0.0
    %3045 = vmatprep.subr.mxu0 0.0
    %3046 = vmatpush1.msra.mxu0 0.0
    %3047 = vmatprep.subr.mxu0 0.0
    %3048 = vmatpush1.msra.mxu0 0.0
    %3049 = vmatprep.subr.mxu0 0.0
    %3050 = vmatpush1.msra.mxu0 0.0
    %3051 = vmatprep.subr.mxu0 0.0
    %3052 = vmatpush1.msra.mxu0 0.0
    %3053 = vmatprep.subr.mxu0 0.0
    %3054 = vmatpush1.msra.mxu0 0.0
    %3055 = vmatprep.mubr.f32.mxu0 0.0
    %3056 = vmatmul.mubr.f32.gmra.mrb[0].mxu0 %v2988
    %v3057 = vpop.f32.mrb[0].mxu0
    %v3058 = vadd.f32 %v290, %v3057
    %v3059 = vpop.f32.mrb[0].mxu0
    %3060 = vdwg.mxu0
    %v3061 = vmax.f32 %v3058, 0.0
    %3062 = vmatprep.subr.mxu0 %v222
    %3063 = vmatpush1.msra.mxu0 %v221
    %3064 = vmatprep.subr.mxu0 %v226
    %3065 = vmatpush1.msra.mxu0 %v225
    %3066 = vmatprep.subr.mxu0 %v230
    %3067 = vmatpush1.msra.mxu0 %v229
    %3068 = vmatprep.subr.mxu0 %v234
    %3069 = vmatpush1.msra.mxu0 %v233
    %3070 = vmatprep.subr.mxu0 %v238
    %3071 = vmatpush1.msra.mxu0 %v237
    %3072 = vmatprep.subr.mxu0 %v242
    %3073 = vmatpush1.msra.mxu0 %v241
    %3074 = vmatprep.subr.mxu0 %v246
    %3075 = vmatpush1.msra.mxu0 %v245
    %3076 = vmatprep.subr.mxu0 %v250
    %3077 = vmatpush1.msra.mxu0 %v249
    %3078 = vmatprep.subr.mxu0 %v254
    %3079 = vmatpush1.msra.mxu0 %v253
    %3080 = vmatprep.subr.mxu0 %v258
    %3081 = vmatpush1.msra.mxu0 %v257
    %3082 = vmatprep.subr.mxu0 %v262
    %3083 = vmatpush1.msra.mxu0 %v261
    %3084 = vmatprep.subr.mxu0 %v266
    %3085 = vmatpush1.msra.mxu0 %v265
    %3086 = vmatprep.subr.mxu0 %v270
    %3087 = vmatpush1.msra.mxu0 %v269
    %3088 = vmatprep.subr.mxu0 %v274
    %3089 = vmatpush1.msra.mxu0 %v273
    %3090 = vmatprep.subr.mxu0 %v278
    %3091 = vmatpush1.msra.mxu0 %v277
    %3092 = vmatprep.subr.mxu0 %v282
    %3093 = vmatpush1.msra.mxu0 %v281
    %3094 = vmatprep.subr.mxu0 0.0
    %3095 = vmatpush1.msra.mxu0 0.0
    %3096 = vmatprep.subr.mxu0 0.0
    %3097 = vmatpush1.msra.mxu0 0.0
    %3098 = vmatprep.subr.mxu0 0.0
    %3099 = vmatpush1.msra.mxu0 0.0
    %3100 = vmatprep.subr.mxu0 0.0
    %3101 = vmatpush1.msra.mxu0 0.0
    %3102 = vmatprep.subr.mxu0 0.0
    %3103 = vmatpush1.msra.mxu0 0.0
    %3104 = vmatprep.subr.mxu0 0.0
    %3105 = vmatpush1.msra.mxu0 0.0
    %3106 = vmatprep.subr.mxu0 0.0
    %3107 = vmatpush1.msra.mxu0 0.0
    %3108 = vmatprep.subr.mxu0 0.0
    %3109 = vmatpush1.msra.mxu0 0.0
    %3110 = vmatprep.subr.mxu0 0.0
    %3111 = vmatpush1.msra.mxu0 0.0
    %3112 = vmatprep.subr.mxu0 0.0
    %3113 = vmatpush1.msra.mxu0 0.0
    %3114 = vmatprep.subr.mxu0 0.0
    %3115 = vmatpush1.msra.mxu0 0.0
    %3116 = vmatprep.subr.mxu0 0.0
    %3117 = vmatpush1.msra.mxu0 0.0
    %3118 = vmatprep.subr.mxu0 0.0
    %3119 = vmatpush1.msra.mxu0 0.0
    %3120 = vmatprep.subr.mxu0 0.0
    %3121 = vmatpush1.msra.mxu0 0.0
    %3122 = vmatprep.subr.mxu0 0.0
    %3123 = vmatpush1.msra.mxu0 0.0
    %3124 = vmatprep.subr.mxu0 0.0
    %3125 = vmatpush1.msra.mxu0 0.0
    %3126 = vmatprep.mubr.f32.mxu0 0.0
    %3127 = vmatmul.mubr.f32.gmra.mrb[0].mxu0 %v3061
    %v3128 = vpop.f32.mrb[0].mxu0
    %v3129 = vadd.f32 %v297, %v3128
    %v3130 = vpop.f32.mrb[0].mxu0
    %v3131 = vadd.f32 %v301, %v3130
    %3132 = vdwg.mxu0
    %3133 = vmatprep.subr.mxu0 %v224
    %3134 = vmatpush1.msra.mxu0 %v223
    %3135 = vmatprep.subr.mxu0 %v228
    %3136 = vmatpush1.msra.mxu0 %v227
    %3137 = vmatprep.subr.mxu0 %v232
    %3138 = vmatpush1.msra.mxu0 %v231
    %3139 = vmatprep.subr.mxu0 %v236
    %3140 = vmatpush1.msra.mxu0 %v235
    %3141 = vmatprep.subr.mxu0 %v240
    %3142 = vmatpush1.msra.mxu0 %v239
    %3143 = vmatprep.subr.mxu0 %v244
    %3144 = vmatpush1.msra.mxu0 %v243
    %3145 = vmatprep.subr.mxu0 %v248
    %3146 = vmatpush1.msra.mxu0 %v247
    %3147 = vmatprep.subr.mxu0 %v252
    %3148 = vmatpush1.msra.mxu0 %v251
    %3149 = vmatprep.subr.mxu0 %v256
    %3150 = vmatpush1.msra.mxu0 %v255
    %3151 = vmatprep.subr.mxu0 %v260
    %3152 = vmatpush1.msra.mxu0 %v259
    %3153 = vmatprep.subr.mxu0 %v264
    %3154 = vmatpush1.msra.mxu0 %v263
    %3155 = vmatprep.subr.mxu0 %v268
    %3156 = vmatpush1.msra.mxu0 %v267
    %3157 = vmatprep.subr.mxu0 %v272
    %3158 = vmatpush1.msra.mxu0 %v271
    %3159 = vmatprep.subr.mxu0 %v276
    %3160 = vmatpush1.msra.mxu0 %v275
    %3161 = vmatprep.subr.mxu0 %v280
    %3162 = vmatpush1.msra.mxu0 %v279
    %3163 = vmatprep.subr.mxu0 %v284
    %3164 = vmatpush1.msra.mxu0 %v283
    %3165 = vmatprep.subr.mxu0 0.0
    %3166 = vmatpush1.msra.mxu0 0.0
    %3167 = vmatprep.subr.mxu0 0.0
    %3168 = vmatpush1.msra.mxu0 0.0
    %3169 = vmatprep.subr.mxu0 0.0
    %3170 = vmatpush1.msra.mxu0 0.0
    %3171 = vmatprep.subr.mxu0 0.0
    %3172 = vmatpush1.msra.mxu0 0.0
    %3173 = vmatprep.subr.mxu0 0.0
    %3174 = vmatpush1.msra.mxu0 0.0
    %3175 = vmatprep.subr.mxu0 0.0
    %3176 = vmatpush1.msra.mxu0 0.0
    %3177 = vmatprep.subr.mxu0 0.0
    %3178 = vmatpush1.msra.mxu0 0.0
    %3179 = vmatprep.subr.mxu0 0.0
    %3180 = vmatpush1.msra.mxu0 0.0
    %3181 = vmatprep.subr.mxu0 0.0
    %3182 = vmatpush1.msra.mxu0 0.0
    %3183 = vmatprep.subr.mxu0 0.0
    %3184 = vmatpush1.msra.mxu0 0.0
    %3185 = vmatprep.subr.mxu0 0.0
    %3186 = vmatpush1.msra.mxu0 0.0
    %3187 = vmatprep.subr.mxu0 0.0
    %3188 = vmatpush1.msra.mxu0 0.0
    %3189 = vmatprep.subr.mxu0 0.0
    %3190 = vmatpush1.msra.mxu0 0.0
    %3191 = vmatprep.subr.mxu0 0.0
    %3192 = vmatpush1.msra.mxu0 0.0
    %3193 = vmatprep.subr.mxu0 0.0
    %3194 = vmatpush1.msra.mxu0 0.0
    %3195 = vmatprep.subr.mxu0 0.0
    %3196 = vmatpush1.msra.mxu0 0.0
    %3197 = vmatprep.mubr.f32.mxu0 0.0
    %3198 = vmatmul.mubr.f32.gmra.mrb[0].mxu0 %v3061
    %v3199 = vpop.f32.mrb[0].mxu0
    %v3200 = vadd.f32 %v305, %v3199
    %v3201 = vpop.f32.mrb[0].mxu0
    %v3202 = vadd.f32 %v309, %v3201
    %3203 = vdwg.mxu0
    %v3204 = vsel %vm701, %v3202, -inf
    %3205 = vmax.xlane.f32.xlu0 %v3204
    %v3206 = vpop.xlane.xlu0 %3205
    %v3207 = vsub.f32 %v3202, %v3206
    %v3208 = vmul.f32 %v3207, 1.442695
    %v3209 = vpow.pop %v3208
    %v3210 = vsel %vm701, %v3209, 0.0
    %3211 = vadd.xlane.f32.xlu0 %v3210
    %v3212 = vpop.xlane.xlu0 %3211
    %v3213 = vrcp.pop %v3212
    %v3214 = vmul.f32 %v3209, %v3213
    %3216 = vset.pattern.permute.xlu0 0
    %3217 = vperm.xlu0 %3216, %v3214
    %v3218 = vpop.permute.xlu0 %3217
    %v3220 = vmul.f32 %v3218, %v3129
    %3221 = vset.pattern.permute.xlu0 1
    %3222 = vperm.xlu0 %3221, %v3214
    %v3223 = vpop.permute.xlu0 %3222
    %v3225 = vmul.f32 %v3223, %v3131
    %v3226 = vadd.f32 %v3220, %v3225
    %3227 = vset.pattern.permute.xlu0 2
    %3228 = vperm.xlu0 %3227, %v3214
    %v3229 = vpop.permute.xlu0 %3228
    %v3231 = vmul.f32 %v3229, %v3200
    %v3232 = vadd.f32 %v3226, %v3231
    %s3233 = scalar_lea.vmem %s0, 224
    %v3234 = vld [vmem:[%s3233] sm:$0xff]
    %v3235 = vld [vmem:[%s3233 + $0x8] sm:$0xff]
    %v3236 = vld [vmem:[%s3233 + $0x10] sm:$0xff]
    %v3237 = vld [vmem:[%s3233 + $0x18] sm:$0xff]
    %3238 = vmatprep.subr.mxu0 %v78
    %3239 = vmatpush1.msra.mxu0 %v77
    %3240 = vmatprep.subr.mxu0 %v82
    %3241 = vmatpush1.msra.mxu0 %v81
    %3242 = vmatprep.subr.mxu0 %v86
    %3243 = vmatpush1.msra.mxu0 %v85
    %3244 = vmatprep.subr.mxu0 %v90
    %3245 = vmatpush1.msra.mxu0 %v89
    %3246 = vmatprep.subr.mxu0 %v94
    %3247 = vmatpush1.msra.mxu0 %v93
    %3248 = vmatprep.subr.mxu0 %v98
    %3249 = vmatpush1.msra.mxu0 %v97
    %3250 = vmatprep.subr.mxu0 %v102
    %3251 = vmatpush1.msra.mxu0 %v101
    %3252 = vmatprep.subr.mxu0 %v106
    %3253 = vmatpush1.msra.mxu0 %v105
    %3254 = vmatprep.subr.mxu0 %v110
    %3255 = vmatpush1.msra.mxu0 %v109
    %3256 = vmatprep.subr.mxu0 %v114
    %3257 = vmatpush1.msra.mxu0 %v113
    %3258 = vmatprep.subr.mxu0 %v118
    %3259 = vmatpush1.msra.mxu0 %v117
    %3260 = vmatprep.subr.mxu0 %v122
    %3261 = vmatpush1.msra.mxu0 %v121
    %3262 = vmatprep.subr.mxu0 %v126
    %3263 = vmatpush1.msra.mxu0 %v125
    %3264 = vmatprep.subr.mxu0 %v130
    %3265 = vmatpush1.msra.mxu0 %v129
    %3266 = vmatprep.subr.mxu0 %v134
    %3267 = vmatpush1.msra.mxu0 %v133
    %3268 = vmatprep.subr.mxu0 %v138
    %3269 = vmatpush1.msra.mxu0 %v137
    %3270 = vmatprep.subr.mxu0 %v142
    %3271 = vmatpush1.msra.mxu0 %v141
    %3272 = vmatprep.subr.mxu0 %v146
    %3273 = vmatpush1.msra.mxu0 %v145
    %3274 = vmatprep.subr.mxu0 %v150
    %3275 = vmatpush1.msra.mxu0 %v149
    %3276 = vmatprep.subr.mxu0 %v154
    %3277 = vmatpush1.msra.mxu0 %v153
    %3278 = vmatprep.subr.mxu0 %v158
    %3279 = vmatpush1.msra.mxu0 %v157
    %3280 = vmatprep.subr.mxu0 %v162
    %3281 = vmatpush1.msra.mxu0 %v161
    %3282 = vmatprep.subr.mxu0 %v166
    %3283 = vmatpush1.msra.mxu0 %v165
    %3284 = vmatprep.subr.mxu0 %v170
    %3285 = vmatpush1.msra.mxu0 %v169
    %3286 = vmatprep.subr.mxu0 %v174
    %3287 = vmatpush1.msra.mxu0 %v173
    %3288 = vmatprep.subr.mxu0 %v178
    %3289 = vmatpush1.msra.mxu0 %v177
    %3290 = vmatprep.subr.mxu0 %v182
    %3291 = vmatpush1.msra.mxu0 %v181
    %3292 = vmatprep.subr.mxu0 %v186
    %3293 = vmatpush1.msra.mxu0 %v185
    %3294 = vmatprep.subr.mxu0 %v190
    %3295 = vmatpush1.msra.mxu0 %v189
    %3296 = vmatprep.subr.mxu0 %v194
    %3297 = vmatpush1.msra.mxu0 %v193
    %3298 = vmatprep.subr.mxu0 %v198
    %3299 = vmatpush1.msra.mxu0 %v197
    %3300 = vmatprep.subr.mxu0 %v202
    %3301 = vmatpush1.msra.mxu0 %v201
    %3302 = vmatprep.mubr.f32.mxu0 %v3232
    %3303 = vmatmul.mubr.f32.gmra.mrb[0].mxu0 %v2990
    %v3304 = vpop.f32.mrb[0].mxu0
    %v3305 = vadd.f32 0.0, %v3304
    %v3306 = vpop.f32.mrb[0].mxu0
    %v3307 = vadd.f32 0.0, %v3306
    %3308 = vdwg.mxu0
    %3309 = vmatprep.subr.mxu0 %v80
    %3310 = vmatpush1.msra.mxu0 %v79
    %3311 = vmatprep.subr.mxu0 %v84
    %3312 = vmatpush1.msra.mxu0 %v83
    %3313 = vmatprep.subr.mxu0 %v88
    %3314 = vmatpush1.msra.mxu0 %v87
    %3315 = vmatprep.subr.mxu0 %v92
    %3316 = vmatpush1.msra.mxu0 %v91
    %3317 = vmatprep.subr.mxu0 %v96
    %3318 = vmatpush1.msra.mxu0 %v95
    %3319 = vmatprep.subr.mxu0 %v100
    %3320 = vmatpush1.msra.mxu0 %v99
    %3321 = vmatprep.subr.mxu0 %v104
    %3322 = vmatpush1.msra.mxu0 %v103
    %3323 = vmatprep.subr.mxu0 %v108
    %3324 = vmatpush1.msra.mxu0 %v107
    %3325 = vmatprep.subr.mxu0 %v112
    %3326 = vmatpush1.msra.mxu0 %v111
    %3327 = vmatprep.subr.mxu0 %v116
    %3328 = vmatpush1.msra.mxu0 %v115
    %3329 = vmatprep.subr.mxu0 %v120
    %3330 = vmatpush1.msra.mxu0 %v119
    %3331 = vmatprep.subr.mxu0 %v124
    %3332 = vmatpush1.msra.mxu0 %v123
    %3333 = vmatprep.subr.mxu0 %v128
    %3334 = vmatpush1.msra.mxu0 %v127
    %3335 = vmatprep.subr.mxu0 %v132
    %3336 = vmatpush1.msra.mxu0 %v131
    %3337 = vmatprep.subr.mxu0 %v136
    %3338 = vmatpush1.msra.mxu0 %v135
    %3339 = vmatprep.subr.mxu0 %v140
    %3340 = vmatpush1.msra.mxu0 %v139
    %3341 = vmatprep.subr.mxu0 %v144
    %3342 = vmatpush1.msra.mxu0 %v143
    %3343 = vmatprep.subr.mxu0 %v148
    %3344 = vmatpush1.msra.mxu0 %v147
    %3345 = vmatprep.subr.mxu0 %v152
    %3346 = vmatpush1.msra.mxu0 %v151
    %3347 = vmatprep.subr.mxu0 %v156
    %3348 = vmatpush1.msra.mxu0 %v155
    %3349 = vmatprep.subr.mxu0 %v160
    %3350 = vmatpush1.msra.mxu0 %v159
    %3351 = vmatprep.subr.mxu0 %v164
    %3352 = vmatpush1.msra.mxu0 %v163
    %3353 = vmatprep.subr.mxu0 %v168
    %3354 = vmatpush1.msra.mxu0 %v167
    %3355 = vmatprep.subr.mxu0 %v172
    %3356 = vmatpush1.msra.mxu0 %v171
    %3357 = vmatprep.subr.mxu0 %v176
    %3358 = vmatpush1.msra.mxu0 %v175
    %3359 = vmatprep.subr.mxu0 %v180
    %3360 = vmatpush1.msra.mxu0 %v179
    %3361 = vmatprep.subr.mxu0 %v184
    %3362 = vmatpush1.msra.mxu0 %v183
    %3363 = vmatprep.subr.mxu0 %v188
    %3364 = vmatpush1.msra.mxu0 %v187
    %3365 = vmatprep.subr.mxu0 %v192
    %3366 = vmatpush1.msra.mxu0 %v191
    %3367 = vmatprep.subr.mxu0 %v196
    %3368 = vmatpush1.msra.mxu0 %v195
    %3369 = vmatprep.subr.mxu0 %v200
    %3370 = vmatpush1.msra.mxu0 %v199
    %3371 = vmatprep.subr.mxu0 %v204
    %3372 = vmatpush1.msra.mxu0 %v203
    %3373 = vmatprep.mubr.f32.mxu0 %v3232
    %3374 = vmatmul.mubr.f32.gmra.mrb[0].mxu0 %v2990
    %v3375 = vpop.f32.mrb[0].mxu0
    %v3376 = vadd.f32 0.0, %v3375
    %v3377 = vpop.f32.mrb[0].mxu0
    %v3378 = vadd.f32 0.0, %v3377
    %3379 = vdwg.mxu0
    %v3380 = vadd.f32 %v3234, %v3305
    %v3381 = vadd.f32 %v3235, %v3307
    %v3382 = vadd.f32 %v3236, %v3376
    %v3383 = vadd.f32 %v3237, %v3378
    %v3384 = vxor.u32 %v3380, 2147483648
    %v3385 = vxor.u32 %v3381, 2147483648
    %v3386 = vxor.u32 %v3382, 2147483648
    %v3387 = vmul.f32 %v3384, 1.442695
    %v3388 = vpow.pop %v3387
    %v3389 = vmul.f32 %v3385, 1.442695
    %v3390 = vpow.pop %v3389
    %v3391 = vmul.f32 %v3386, 1.442695
    %v3392 = vpow.pop %v3391
    %v3393 = vadd.f32 %v3388, 1.0
    %v3394 = vadd.f32 %v3390, 1.0
    %v3395 = vadd.f32 %v3392, 1.0
    %v3396 = vrcp.pop %v3393
    %v3397 = vmul.f32 1.0, %v3396
    %v3398 = vrcp.pop %v3394
    %v3399 = vmul.f32 1.0, %v3398
    %v3400 = vrcp.pop %v3395
    %v3401 = vmul.f32 1.0, %v3400
    %v3402 = vtanh.pop %v3383
    %v3403 = vmul.f32 %v3397, %v2988
    %v3404 = vmul.f32 %v3399, %v3402
    %v3405 = vadd.f32 %v3403, %v3404
    %v3406 = vtanh.pop %v3405
    %v3407 = vmul.f32 %v3406, %v3401
    %3408 = vmatprep.subr.mxu0 0.0
    %3409 = vmatpush1.msra.mxu0 %v205
    %3410 = vmatprep.subr.mxu0 0.0
    %3411 = vmatpush1.msra.mxu0 %v206
    %3412 = vmatprep.subr.mxu0 0.0
    %3413 = vmatpush1.msra.mxu0 %v207
    %3414 = vmatprep.subr.mxu0 0.0
    %3415 = vmatpush1.msra.mxu0 %v208
    %3416 = vmatprep.subr.mxu0 0.0
    %3417 = vmatpush1.msra.mxu0 %v209
    %3418 = vmatprep.subr.mxu0 0.0
    %3419 = vmatpush1.msra.mxu0 %v210
    %3420 = vmatprep.subr.mxu0 0.0
    %3421 = vmatpush1.msra.mxu0 %v211
    %3422 = vmatprep.subr.mxu0 0.0
    %3423 = vmatpush1.msra.mxu0 %v212
    %3424 = vmatprep.subr.mxu0 0.0
    %3425 = vmatpush1.msra.mxu0 %v213
    %3426 = vmatprep.subr.mxu0 0.0
    %3427 = vmatpush1.msra.mxu0 %v214
    %3428 = vmatprep.subr.mxu0 0.0
    %3429 = vmatpush1.msra.mxu0 %v215
    %3430 = vmatprep.subr.mxu0 0.0
    %3431 = vmatpush1.msra.mxu0 %v216
    %3432 = vmatprep.subr.mxu0 0.0
    %3433 = vmatpush1.msra.mxu0 %v217
    %3434 = vmatprep.subr.mxu0 0.0
    %3435 = vmatpush1.msra.mxu0 %v218
    %3436 = vmatprep.subr.mxu0 0.0
    %3437 = vmatpush1.msra.mxu0 %v219
    %3438 = vmatprep.subr.mxu0 0.0
    %3439 = vmatpush1.msra.mxu0 %v220
    %3440 = vmatprep.subr.mxu0 0.0
    %3441 = vmatpush1.msra.mxu0 0.0
    %3442 = vmatprep.subr.mxu0 0.0
    %3443 = vmatpush1.msra.mxu0 0.0
    %3444 = vmatprep.subr.mxu0 0.0
    %3445 = vmatpush1.msra.mxu0 0.0
    %3446 = vmatprep.subr.mxu0 0.0
    %3447 = vmatpush1.msra.mxu0 0.0
    %3448 = vmatprep.subr.mxu0 0.0
    %3449 = vmatpush1.msra.mxu0 0.0
    %3450 = vmatprep.subr.mxu0 0.0
    %3451 = vmatpush1.msra.mxu0 0.0
    %3452 = vmatprep.subr.mxu0 0.0
    %3453 = vmatpush1.msra.mxu0 0.0
    %3454 = vmatprep.subr.mxu0 0.0
    %3455 = vmatpush1.msra.mxu0 0.0
    %3456 = vmatprep.subr.mxu0 0.0
    %3457 = vmatpush1.msra.mxu0 0.0
    %3458 = vmatprep.subr.mxu0 0.0
    %3459 = vmatpush1.msra.mxu0 0.0
    %3460 = vmatprep.subr.mxu0 0.0
    %3461 = vmatpush1.msra.mxu0 0.0
    %3462 = vmatprep.subr.mxu0 0.0
    %3463 = vmatpush1.msra.mxu0 0.0
    %3464 = vmatprep.subr.mxu0 0.0
    %3465 = vmatpush1.msra.mxu0 0.0
    %3466 = vmatprep.subr.mxu0 0.0
    %3467 = vmatpush1.msra.mxu0 0.0
    %3468 = vmatprep.subr.mxu0 0.0
    %3469 = vmatpush1.msra.mxu0 0.0
    %3470 = vmatprep.subr.mxu0 0.0
    %3471 = vmatpush1.msra.mxu0 0.0
    %3472 = vmatprep.mubr.f32.mxu0 0.0
    %3473 = vmatmul.mubr.f32.gmra.mrb[0].mxu0 %v3405
    %v3474 = vpop.f32.mrb[0].mxu0
    %v3475 = vadd.f32 %v290, %v3474
    %v3476 = vpop.f32.mrb[0].mxu0
    %3477 = vdwg.mxu0
    %v3478 = vmax.f32 %v3475, 0.0
    %3479 = vmatprep.subr.mxu0 %v222
    %3480 = vmatpush1.msra.mxu0 %v221
    %3481 = vmatprep.subr.mxu0 %v226
    %3482 = vmatpush1.msra.mxu0 %v225
    %3483 = vmatprep.subr.mxu0 %v230
    %3484 = vmatpush1.msra.mxu0 %v229
    %3485 = vmatprep.subr.mxu0 %v234
    %3486 = vmatpush1.msra.mxu0 %v233
    %3487 = vmatprep.subr.mxu0 %v238
    %3488 = vmatpush1.msra.mxu0 %v237
    %3489 = vmatprep.subr.mxu0 %v242
    %3490 = vmatpush1.msra.mxu0 %v241
    %3491 = vmatprep.subr.mxu0 %v246
    %3492 = vmatpush1.msra.mxu0 %v245
    %3493 = vmatprep.subr.mxu0 %v250
    %3494 = vmatpush1.msra.mxu0 %v249
    %3495 = vmatprep.subr.mxu0 %v254
    %3496 = vmatpush1.msra.mxu0 %v253
    %3497 = vmatprep.subr.mxu0 %v258
    %3498 = vmatpush1.msra.mxu0 %v257
    %3499 = vmatprep.subr.mxu0 %v262
    %3500 = vmatpush1.msra.mxu0 %v261
    %3501 = vmatprep.subr.mxu0 %v266
    %3502 = vmatpush1.msra.mxu0 %v265
    %3503 = vmatprep.subr.mxu0 %v270
    %3504 = vmatpush1.msra.mxu0 %v269
    %3505 = vmatprep.subr.mxu0 %v274
    %3506 = vmatpush1.msra.mxu0 %v273
    %3507 = vmatprep.subr.mxu0 %v278
    %3508 = vmatpush1.msra.mxu0 %v277
    %3509 = vmatprep.subr.mxu0 %v282
    %3510 = vmatpush1.msra.mxu0 %v281
    %3511 = vmatprep.subr.mxu0 0.0
    %3512 = vmatpush1.msra.mxu0 0.0
    %3513 = vmatprep.subr.mxu0 0.0
    %3514 = vmatpush1.msra.mxu0 0.0
    %3515 = vmatprep.subr.mxu0 0.0
    %3516 = vmatpush1.msra.mxu0 0.0
    %3517 = vmatprep.subr.mxu0 0.0
    %3518 = vmatpush1.msra.mxu0 0.0
    %3519 = vmatprep.subr.mxu0 0.0
    %3520 = vmatpush1.msra.mxu0 0.0
    %3521 = vmatprep.subr.mxu0 0.0
    %3522 = vmatpush1.msra.mxu0 0.0
    %3523 = vmatprep.subr.mxu0 0.0
    %3524 = vmatpush1.msra.mxu0 0.0
    %3525 = vmatprep.subr.mxu0 0.0
    %3526 = vmatpush1.msra.mxu0 0.0
    %3527 = vmatprep.subr.mxu0 0.0
    %3528 = vmatpush1.msra.mxu0 0.0
    %3529 = vmatprep.subr.mxu0 0.0
    %3530 = vmatpush1.msra.mxu0 0.0
    %3531 = vmatprep.subr.mxu0 0.0
    %3532 = vmatpush1.msra.mxu0 0.0
    %3533 = vmatprep.subr.mxu0 0.0
    %3534 = vmatpush1.msra.mxu0 0.0
    %3535 = vmatprep.subr.mxu0 0.0
    %3536 = vmatpush1.msra.mxu0 0.0
    %3537 = vmatprep.subr.mxu0 0.0
    %3538 = vmatpush1.msra.mxu0 0.0
    %3539 = vmatprep.subr.mxu0 0.0
    %3540 = vmatpush1.msra.mxu0 0.0
    %3541 = vmatprep.subr.mxu0 0.0
    %3542 = vmatpush1.msra.mxu0 0.0
    %3543 = vmatprep.mubr.f32.mxu0 0.0
    %3544 = vmatmul.mubr.f32.gmra.mrb[0].mxu0 %v3478
    %v3545 = vpop.f32.mrb[0].mxu0
    %v3546 = vadd.f32 %v297, %v3545
    %v3547 = vpop.f32.mrb[0].mxu0
    %v3548 = vadd.f32 %v301, %v3547
    %3549 = vdwg.mxu0
    %3550 = vmatprep.subr.mxu0 %v224
    %3551 = vmatpush1.msra.mxu0 %v223
    %3552 = vmatprep.subr.mxu0 %v228
    %3553 = vmatpush1.msra.mxu0 %v227
    %3554 = vmatprep.subr.mxu0 %v232
    %3555 = vmatpush1.msra.mxu0 %v231
    %3556 = vmatprep.subr.mxu0 %v236
    %3557 = vmatpush1.msra.mxu0 %v235
    %3558 = vmatprep.subr.mxu0 %v240
    %3559 = vmatpush1.msra.mxu0 %v239
    %3560 = vmatprep.subr.mxu0 %v244
    %3561 = vmatpush1.msra.mxu0 %v243
    %3562 = vmatprep.subr.mxu0 %v248
    %3563 = vmatpush1.msra.mxu0 %v247
    %3564 = vmatprep.subr.mxu0 %v252
    %3565 = vmatpush1.msra.mxu0 %v251
    %3566 = vmatprep.subr.mxu0 %v256
    %3567 = vmatpush1.msra.mxu0 %v255
    %3568 = vmatprep.subr.mxu0 %v260
    %3569 = vmatpush1.msra.mxu0 %v259
    %3570 = vmatprep.subr.mxu0 %v264
    %3571 = vmatpush1.msra.mxu0 %v263
    %3572 = vmatprep.subr.mxu0 %v268
    %3573 = vmatpush1.msra.mxu0 %v267
    %3574 = vmatprep.subr.mxu0 %v272
    %3575 = vmatpush1.msra.mxu0 %v271
    %3576 = vmatprep.subr.mxu0 %v276
    %3577 = vmatpush1.msra.mxu0 %v275
    %3578 = vmatprep.subr.mxu0 %v280
    %3579 = vmatpush1.msra.mxu0 %v279
    %3580 = vmatprep.subr.mxu0 %v284
    %3581 = vmatpush1.msra.mxu0 %v283
    %3582 = vmatprep.subr.mxu0 0.0
    %3583 = vmatpush1.msra.mxu0 0.0
    %3584 = vmatprep.subr.mxu0 0.0
    %3585 = vmatpush1.msra.mxu0 0.0
    %3586 = vmatprep.subr.mxu0 0.0
    %3587 = vmatpush1.msra.mxu0 0.0
    %3588 = vmatprep.subr.mxu0 0.0
    %3589 = vmatpush1.msra.mxu0 0.0
    %3590 = vmatprep.subr.mxu0 0.0
    %3591 = vmatpush1.msra.mxu0 0.0
    %3592 = vmatprep.subr.mxu0 0.0
    %3593 = vmatpush1.msra.mxu0 0.0
    %3594 = vmatprep.subr.mxu0 0.0
    %3595 = vmatpush1.msra.mxu0 0.0
    %3596 = vmatprep.subr.mxu0 0.0
    %3597 = vmatpush1.msra.mxu0 0.0
    %3598 = vmatprep.subr.mxu0 0.0
    %3599 = vmatpush1.msra.mxu0 0.0
    %3600 = vmatprep.subr.mxu0 0.0
    %3601 = vmatpush1.msra.mxu0 0.0
    %3602 = vmatprep.subr.mxu0 0.0
    %3603 = vmatpush1.msra.mxu0 0.0
    %3604 = vmatprep.subr.mxu0 0.0
    %3605 = vmatpush1.msra.mxu0 0.0
    %3606 = vmatprep.subr.mxu0 0.0
    %3607 = vmatpush1.msra.mxu0 0.0
    %3608 = vmatprep.subr.mxu0 0.0
    %3609 = vmatpush1.msra.mxu0 0.0
    %3610 = vmatprep.subr.mxu0 0.0
    %3611 = vmatpush1.msra.mxu0 0.0
    %3612 = vmatprep.subr.mxu0 0.0
    %3613 = vmatpush1.msra.mxu0 0.0
    %3614 = vmatprep.mubr.f32.mxu0 0.0
    %3615 = vmatmul.mubr.f32.gmra.mrb[0].mxu0 %v3478
    %v3616 = vpop.f32.mrb[0].mxu0
    %v3617 = vadd.f32 %v305, %v3616
    %v3618 = vpop.f32.mrb[0].mxu0
    %v3619 = vadd.f32 %v309, %v3618
    %3620 = vdwg.mxu0
    %v3621 = vsel %vm701, %v3619, -inf
    %3622 = vmax.xlane.f32.xlu0 %v3621
    %v3623 = vpop.xlane.xlu0 %3622
    %v3624 = vsub.f32 %v3619, %v3623
    %v3625 = vmul.f32 %v3624, 1.442695
    %v3626 = vpow.pop %v3625
    %v3627 = vsel %vm701, %v3626, 0.0
    %3628 = vadd.xlane.f32.xlu0 %v3627
    %v3629 = vpop.xlane.xlu0 %3628
    %v3630 = vrcp.pop %v3629
    %v3631 = vmul.f32 %v3626, %v3630
    %3633 = vset.pattern.permute.xlu0 0
    %3634 = vperm.xlu0 %3633, %v3631
    %v3635 = vpop.permute.xlu0 %3634
    %v3637 = vmul.f32 %v3635, %v3546
    %3638 = vset.pattern.permute.xlu0 1
    %3639 = vperm.xlu0 %3638, %v3631
    %v3640 = vpop.permute.xlu0 %3639
    %v3642 = vmul.f32 %v3640, %v3548
    %v3643 = vadd.f32 %v3637, %v3642
    %3644 = vset.pattern.permute.xlu0 2
    %3645 = vperm.xlu0 %3644, %v3631
    %v3646 = vpop.permute.xlu0 %3645
    %v3648 = vmul.f32 %v3646, %v3617
    %v3649 = vadd.f32 %v3643, %v3648
    %v3650 = vld [vmem:[%s6] sm:$0xff]
    %v3651 = vld [vmem:[%s6 + $0x8] sm:$0xff]
    %v3652 = vld [vmem:[%s6 + $0x10] sm:$0xff]
    %v3653 = vld [vmem:[%s6 + $0x18] sm:$0xff]
    %v3654 = vld [vmem:[%s6 + $0x20] sm:$0xff]
    %v3655 = vld [vmem:[%s6 + $0x28] sm:$0xff]
    %v3656 = vld [vmem:[%s6 + $0x30] sm:$0xff]
    %v3657 = vld [vmem:[%s6 + $0x38] sm:$0xff]
    %v3658 = vld [vmem:[%s6 + $0x40] sm:$0xff]
    %v3659 = vld [vmem:[%s6 + $0x48] sm:$0xff]
    %v3660 = vld [vmem:[%s6 + $0x50] sm:$0xff]
    %v3661 = vld [vmem:[%s6 + $0x58] sm:$0xff]
    %v3662 = vld [vmem:[%s6 + $0x60] sm:$0xff]
    %v3663 = vld [vmem:[%s6 + $0x68] sm:$0xff]
    %v3664 = vld [vmem:[%s6 + $0x70] sm:$0xff]
    %v3665 = vld [vmem:[%s6 + $0x78] sm:$0xff]
    %v3666 = vld [vmem:[%s6 + $0x80] sm:$0xff]
    %v3667 = vld [vmem:[%s6 + $0x88] sm:$0xff]
    %v3668 = vld [vmem:[%s6 + $0x90] sm:$0xff]
    %v3669 = vld [vmem:[%s6 + $0x98] sm:$0xff]
    %v3670 = vld [vmem:[%s6 + $0xa0] sm:$0xff]
    %v3671 = vld [vmem:[%s6 + $0xa8] sm:$0xff]
    %v3672 = vld [vmem:[%s6 + $0xb0] sm:$0xff]
    %v3673 = vld [vmem:[%s6 + $0xb8] sm:$0xff]
    %v3674 = vld [vmem:[%s6 + $0xc0] sm:$0xff]
    %v3675 = vld [vmem:[%s6 + $0xc8] sm:$0xff]
    %v3676 = vld [vmem:[%s6 + $0xd0] sm:$0xff]
    %v3677 = vld [vmem:[%s6 + $0xd8] sm:$0xff]
    %v3678 = vld [vmem:[%s6 + $0xe0] sm:$0xff]
    %v3679 = vld [vmem:[%s6 + $0xe8] sm:$0xff]
    %v3680 = vld [vmem:[%s6 + $0xf0] sm:$0xff]
    %v3681 = vld [vmem:[%s6 + $0xf8] sm:$0xff]
    %v3682 = vld [vmem:[%s7] sm:$0x1]
    %v3684 = vlaneseq
    %v3685 = vshrl.u32 %v3684, 7
    %v3686 = vsub.s32 0, %v3685
    %v3687 = vrot.slane %v3682, %v3686
    %3689 = vmatprep.subr.mxu0 0.0
    %3690 = vmatpush1.msra.mxu0 %v3650
    %3691 = vmatprep.subr.mxu0 0.0
    %3692 = vmatpush1.msra.mxu0 %v3651
    %3693 = vmatprep.subr.mxu0 0.0
    %3694 = vmatpush1.msra.mxu0 %v3652
    %3695 = vmatprep.subr.mxu0 0.0
    %3696 = vmatpush1.msra.mxu0 %v3653
    %3697 = vmatprep.subr.mxu0 0.0
    %3698 = vmatpush1.msra.mxu0 %v3654
    %3699 = vmatprep.subr.mxu0 0.0
    %3700 = vmatpush1.msra.mxu0 %v3655
    %3701 = vmatprep.subr.mxu0 0.0
    %3702 = vmatpush1.msra.mxu0 %v3656
    %3703 = vmatprep.subr.mxu0 0.0
    %3704 = vmatpush1.msra.mxu0 %v3657
    %3705 = vmatprep.subr.mxu0 0.0
    %3706 = vmatpush1.msra.mxu0 %v3658
    %3707 = vmatprep.subr.mxu0 0.0
    %3708 = vmatpush1.msra.mxu0 %v3659
    %3709 = vmatprep.subr.mxu0 0.0
    %3710 = vmatpush1.msra.mxu0 %v3660
    %3711 = vmatprep.subr.mxu0 0.0
    %3712 = vmatpush1.msra.mxu0 %v3661
    %3713 = vmatprep.subr.mxu0 0.0
    %3714 = vmatpush1.msra.mxu0 %v3662
    %3715 = vmatprep.subr.mxu0 0.0
    %3716 = vmatpush1.msra.mxu0 %v3663
    %3717 = vmatprep.subr.mxu0 0.0
    %3718 = vmatpush1.msra.mxu0 %v3664
    %3719 = vmatprep.subr.mxu0 0.0
    %3720 = vmatpush1.msra.mxu0 %v3665
    %3721 = vmatprep.subr.mxu0 0.0
    %3722 = vmatpush1.msra.mxu0 %v3666
    %3723 = vmatprep.subr.mxu0 0.0
    %3724 = vmatpush1.msra.mxu0 %v3667
    %3725 = vmatprep.subr.mxu0 0.0
    %3726 = vmatpush1.msra.mxu0 %v3668
    %3727 = vmatprep.subr.mxu0 0.0
    %3728 = vmatpush1.msra.mxu0 %v3669
    %3729 = vmatprep.subr.mxu0 0.0
    %3730 = vmatpush1.msra.mxu0 %v3670
    %3731 = vmatprep.subr.mxu0 0.0
    %3732 = vmatpush1.msra.mxu0 %v3671
    %3733 = vmatprep.subr.mxu0 0.0
    %3734 = vmatpush1.msra.mxu0 %v3672
    %3735 = vmatprep.subr.mxu0 0.0
    %3736 = vmatpush1.msra.mxu0 %v3673
    %3737 = vmatprep.subr.mxu0 0.0
    %3738 = vmatpush1.msra.mxu0 %v3674
    %3739 = vmatprep.subr.mxu0 0.0
    %3740 = vmatpush1.msra.mxu0 %v3675
    %3741 = vmatprep.subr.mxu0 0.0
    %3742 = vmatpush1.msra.mxu0 %v3676
    %3743 = vmatprep.subr.mxu0 0.0
    %3744 = vmatpush1.msra.mxu0 %v3677
    %3745 = vmatprep.subr.mxu0 0.0
    %3746 = vmatpush1.msra.mxu0 %v3678
    %3747 = vmatprep.subr.mxu0 0.0
    %3748 = vmatpush1.msra.mxu0 %v3679
    %3749 = vmatprep.subr.mxu0 0.0
    %3750 = vmatpush1.msra.mxu0 %v3680
    %3751 = vmatprep.subr.mxu0 0.0
    %3752 = vmatpush1.msra.mxu0 %v3681
    %3753 = vmatprep.mubr.f32.mxu0 %v3649
    %3754 = vmatmul.mubr.f32.gmra.mrb[0].mxu0 %v3407
    %v3755 = vpop.f32.mrb[0].mxu0
    %v3756 = vadd.f32 %v3687, %v3755
    %v3757 = vpop.f32.mrb[0].mxu0
    %3758 = vdwg.mxu0
    %v3759 = vmax.f32 %v3756, 0.0
    %v3760 = vld [vmem:[%s8] sm:$0xff]
    %v3761 = vld [vmem:[%s8 + $0x8] sm:$0xff]
    %v3762 = vld [vmem:[%s8 + $0x10] sm:$0xff]
    %v3763 = vld [vmem:[%s8 + $0x18] sm:$0xff]
    %v3764 = vld [vmem:[%s9] sm:$0x1]
    %v3766 = vlaneseq
    %v3767 = vshrl.u32 %v3766, 7
    %v3768 = vsub.s32 0, %v3767
    %v3769 = vrot.slane %v3764, %v3768
    %vm3771 = vcmask 261120
    %v3773 = vsel %vm3771, %v3759, 0
    %3775 = vmatprep.subr.mxu0 0.0
    %3776 = vmatpush1.msra.mxu0 %v3760
    %3777 = vmatprep.subr.mxu0 0.0
    %3778 = vmatpush1.msra.mxu0 %v3761
    %3779 = vmatprep.subr.mxu0 0.0
    %3780 = vmatpush1.msra.mxu0 %v3762
    %3781 = vmatprep.subr.mxu0 0.0
    %3782 = vmatpush1.msra.mxu0 %v3763
    %3783 = vmatprep.subr.mxu0 0.0
    %3784 = vmatpush1.msra.mxu0 0.0
    %3785 = vmatprep.subr.mxu0 0.0
    %3786 = vmatpush1.msra.mxu0 0.0
    %3787 = vmatprep.subr.mxu0 0.0
    %3788 = vmatpush1.msra.mxu0 0.0
    %3789 = vmatprep.subr.mxu0 0.0
    %3790 = vmatpush1.msra.mxu0 0.0
    %3791 = vmatprep.subr.mxu0 0.0
    %3792 = vmatpush1.msra.mxu0 0.0
    %3793 = vmatprep.subr.mxu0 0.0
    %3794 = vmatpush1.msra.mxu0 0.0
    %3795 = vmatprep.subr.mxu0 0.0
    %3796 = vmatpush1.msra.mxu0 0.0
    %3797 = vmatprep.subr.mxu0 0.0
    %3798 = vmatpush1.msra.mxu0 0.0
    %3799 = vmatprep.subr.mxu0 0.0
    %3800 = vmatpush1.msra.mxu0 0.0
    %3801 = vmatprep.subr.mxu0 0.0
    %3802 = vmatpush1.msra.mxu0 0.0
    %3803 = vmatprep.subr.mxu0 0.0
    %3804 = vmatpush1.msra.mxu0 0.0
    %3805 = vmatprep.subr.mxu0 0.0
    %3806 = vmatpush1.msra.mxu0 0.0
    %3807 = vmatprep.subr.mxu0 0.0
    %3808 = vmatpush1.msra.mxu0 0.0
    %3809 = vmatprep.subr.mxu0 0.0
    %3810 = vmatpush1.msra.mxu0 0.0
    %3811 = vmatprep.subr.mxu0 0.0
    %3812 = vmatpush1.msra.mxu0 0.0
    %3813 = vmatprep.subr.mxu0 0.0
    %3814 = vmatpush1.msra.mxu0 0.0
    %3815 = vmatprep.subr.mxu0 0.0
    %3816 = vmatpush1.msra.mxu0 0.0
    %3817 = vmatprep.subr.mxu0 0.0
    %3818 = vmatpush1.msra.mxu0 0.0
    %3819 = vmatprep.subr.mxu0 0.0
    %3820 = vmatpush1.msra.mxu0 0.0
    %3821 = vmatprep.subr.mxu0 0.0
    %3822 = vmatpush1.msra.mxu0 0.0
    %3823 = vmatprep.subr.mxu0 0.0
    %3824 = vmatpush1.msra.mxu0 0.0
    %3825 = vmatprep.subr.mxu0 0.0
    %3826 = vmatpush1.msra.mxu0 0.0
    %3827 = vmatprep.subr.mxu0 0.0
    %3828 = vmatpush1.msra.mxu0 0.0
    %3829 = vmatprep.subr.mxu0 0.0
    %3830 = vmatpush1.msra.mxu0 0.0
    %3831 = vmatprep.subr.mxu0 0.0
    %3832 = vmatpush1.msra.mxu0 0.0
    %3833 = vmatprep.subr.mxu0 0.0
    %3834 = vmatpush1.msra.mxu0 0.0
    %3835 = vmatprep.subr.mxu0 0.0
    %3836 = vmatpush1.msra.mxu0 0.0
    %3837 = vmatprep.subr.mxu0 0.0
    %3838 = vmatpush1.msra.mxu0 0.0
    %3839 = vmatprep.mubr.f32.mxu0 0.0
    %3840 = vmatmul.mubr.f32.gmra.mrb[0].mxu0 %v3773
    %v3841 = vpop.f32.mrb[0].mxu0
    %v3842 = vadd.f32 %v3769, %v3841
    %v3843 = vpop.f32.mrb[0].mxu0
    %3844 = vdwg.mxu0
    %3845 = vst [vmem:[#allocation8] sm:$0xff] %v3842
    // Predicated region
    $region54: #{tpu_custom_call.1} parent=1 // pred_check
      _
    $region55: #{tpu_custom_call.1} parent=1 // pred_check_branch
      %3847 = sbr.rel (0) target = $region57
    $region56: #{tpu_custom_call.1} parent=1 // pred_region
      %s3849 = ssub.s32 128, 128
      %3850 = vsyncadd [#allocation4], %s3849
      %s3852 = sshll.u32 [#allocation8], 4
      %s3853 = int_to_ptr.vmem [resolvable:$true] %s3852
      %3855 = dma.vmem_to_hbm [thread:$0]  %s3853, 128, %s10, [#allocation4]
    $region57: #{tpu_custom_call.1} parent=1 // pred_fallthru
      _
    // Predicated region
    $region58: #{tpu_custom_call.1} parent=1 // pred_check
      _
    $region59: #{tpu_custom_call.1} parent=1 // pred_check_branch
      %3857 = sbr.rel (0) target = $region61
    $region60: #{tpu_custom_call.1} parent=1 // pred_region
      %3858 = dma.done [#allocation4], 128
    $region61: #{tpu_custom_call.1} parent=1 // pred_fallthru
      _
    %3859 = vsyncpa [#allocation3], 1
    %3860 = vsyncpa [#allocation6], 1
    %3861 = vsyncpa [#allocation4], 1

</llo_original>
